<compile_context>
chip_gen: v6e
topology: v6e:2x2x1
jax: 0.10.0
libtpu: 0.0.40
codegen_flags: <defaults>
</compile_context>

<pallas_src>
import math

import jax
import jax.numpy as jnp
from jax.experimental import pallas as pl
from jax.experimental.pallas import tpu as pltpu


_P1 = pltpu.CompilerParams(dimension_semantics=("parallel",))
_P2 = pltpu.CompilerParams(dimension_semantics=("parallel", "parallel"))


def _round_up(x, m):
    return ((x + m - 1) // m) * m


def _pick_tile(rows, cap=256):
    # >=2 grid steps when rows allow (v7x: 2 TensorCores share the parallel axis),
    # multiples of 16 for bf16 sublane packing.
    return min(cap, _round_up(max(rows // 2, 16), 16))


def _pad_rows(x, rows_p):
    pad = rows_p - x.shape[0]
    if pad:
        x = jnp.pad(x, ((0, pad),) + ((0, 0),) * (x.ndim - 1))
    return x


def _bias(b, c):
    if b is None:
        b = jnp.zeros((c,), jnp.float32)
    return b.reshape(1, c).astype(jnp.float32)


def _full_spec_1d(a):
    zeros = (0,) * a.ndim
    return pl.BlockSpec(a.shape, lambda i: zeros)


# ----------------------------------------------------------------------------
# Fused level-0 feature kernel:
#   CBR0_RI -> CBR_Res_RI (both outputs), CBR0_RE (split weights, no concat),
#   concat(ri0, re) -> CBR01_F -> CBR02_F (split weights, fused chain).
# ----------------------------------------------------------------------------

def _level0_kernel(rif_ref, pts_ref, dlt_ref,
                   w_ri_ref, b_ri_ref, w_res_ref, b_res_ref,
                   w_re_p_ref, w_re_d_ref, b_re_ref,
                   w01a_ref, w01b_ref, b01_ref, w02_ref, b02_ref,
                   unary_ref, fuse_ref):
    bf = jnp.bfloat16
    # Geometry-facing first layers stay f32 (accuracy); deeper layers run bf16 on the MXU.
    ri0 = jnp.dot(rif_ref[...], w_ri_ref[...],
                  preferred_element_type=jnp.float32) + b_ri_ref[...]
    ri0 = jnp.maximum(ri0, 0.0)
    re = (jnp.dot(pts_ref[...], w_re_p_ref[...], preferred_element_type=jnp.float32)
          + jnp.dot(dlt_ref[...], w_re_d_ref[...], preferred_element_type=jnp.float32)
          + b_re_ref[...])
    re = jnp.maximum(re, 0.0)
    ri0b = ri0.astype(bf)
    unary = jnp.dot(ri0b, w_res_ref[...],
                    preferred_element_type=jnp.float32) + b_res_ref[...]
    unary_ref[...] = jnp.maximum(unary, 0.0)
    h01 = (jnp.dot(ri0b, w01a_ref[...], preferred_element_type=jnp.float32)
           + jnp.dot(re.astype(bf), w01b_ref[...], preferred_element_type=jnp.float32)
           + b01_ref[...])
    h01 = jnp.maximum(h01, 0.0)
    fuse = jnp.dot(h01.astype(bf), w02_ref[...],
                   preferred_element_type=jnp.float32) + b02_ref[...]
    fuse_ref[...] = jnp.maximum(fuse, 0.0)


def level0_features(params, rif_flat, pts_flat, delta_flat):
    B, N, c_rif = rif_flat.shape
    c_pd = pts_flat.shape[-1]
    rows = B * N
    tile = _pick_tile(rows, cap=512)
    nt = pl.cdiv(rows, tile)
    rows_p = nt * tile
    rif2 = _pad_rows(rif_flat.reshape(rows, c_rif).astype(jnp.float32), rows_p)
    pts2 = _pad_rows(pts_flat.reshape(rows, c_pd).astype(jnp.float32), rows_p)
    dlt2 = _pad_rows(delta_flat.reshape(rows, c_pd).astype(jnp.float32), rows_p)

    bf = jnp.bfloat16
    w_ri, b_ri = params['CBR0_RI']
    w_res, b_res = params['CBR_Res_RI']
    w_re, b_re = params['CBR0_RE']
    w01, b01 = params['CBR01_F']
    w02, b02 = params['CBR02_F']
    c1 = w_ri.shape[1]          # 64
    cu = w_res.shape[1]         # 128
    cf = w02.shape[1]           # 128

    args = [rif2, pts2, dlt2,
            w_ri.astype(jnp.float32), _bias(b_ri, c1),
            w_res.astype(bf), _bias(b_res, cu),
            w_re[:c_pd].astype(jnp.float32), w_re[c_pd:].astype(jnp.float32),
            _bias(b_re, w_re.shape[1]),
            w01[:c1].astype(bf), w01[c1:].astype(bf), _bias(b01, w01.shape[1]),
            w02.astype(bf), _bias(b02, cf)]
    in_specs = [pl.BlockSpec((tile, c_rif), lambda i: (i, 0)),
                pl.BlockSpec((tile, c_pd), lambda i: (i, 0)),
                pl.BlockSpec((tile, c_pd), lambda i: (i, 0))]
    in_specs += [_full_spec_1d(a) for a in args[3:]]

    unary, fuse = pl.pallas_call(
        _level0_kernel,
        out_shape=(jax.ShapeDtypeStruct((rows_p, cu), jnp.float32),
                   jax.ShapeDtypeStruct((rows_p, cf), jnp.float32)),
        grid=(nt,),
        in_specs=in_specs,
        out_specs=[pl.BlockSpec((tile, cu), lambda i: (i, 0)),
                   pl.BlockSpec((tile, cf), lambda i: (i, 0))],
        compiler_params=_P1,
    )(*args)
    return (unary[:rows].reshape(B, N, cu), fuse[:rows].reshape(B, N, cf))


# ----------------------------------------------------------------------------
# Fully fused Point_Transformer block (optionally including the trailing CBR chain).
# ----------------------------------------------------------------------------

def _make_pt_kernel(k, mid, mid_s, has_post):
    def kernel(*refs):
        (feats_ref, ppfs_ref, w0_ref, b0_ref, w1_ref, b1_ref, w23_ref, b23_ref,
         wp1_ref, wp2_ref, w1g_ref, w2p_ref, b2p_ref, sel_ref, wo_ref, bo_ref) = refs[:16]
        if has_post:
            wq1_ref, bq1_ref, wq2_ref, bq2_ref = refs[16:20]
            o_ref, x3_scr, id_scr = refs[20:]
        else:
            o_ref, x3_scr, id_scr = refs[16:]

        bf = jnp.bfloat16
        x1 = None
        h_acc = None
        for j in range(k):
            xn_j = jnp.dot(feats_ref[:, j, :], w0_ref[...],
                           preferred_element_type=jnp.float32) + b0_ref[...]
            xn_j = jnp.maximum(xn_j, 0.0)
            if j == 0:
                id_scr[...] = xn_j                                   # identity (center)
                x1 = jnp.dot(xn_j.astype(bf), w1_ref[...],
                             preferred_element_type=jnp.float32) + b1_ref[...]
            # conv2 || conv3 as one wide matmul, sliced in registers.
            x23 = jnp.dot(xn_j.astype(bf), w23_ref[...],
                          preferred_element_type=jnp.float32) + b23_ref[...]
            x2_j = x23[:, :mid]
            x3_j = x23[:, mid:]
            # pt_conv: first layer f32 (raw geometry), second bf16.
            ph = jnp.maximum(jnp.dot(ppfs_ref[:, j, :], wp1_ref[...],
                                     preferred_element_type=jnp.float32), 0.0)
            ptf_j = jnp.dot(ph.astype(bf), wp2_ref[...],
                            preferred_element_type=jnp.float32)
            x3_scr[:, j, :] = x3_j + ptf_j
            # cw1 contraction, accumulated per neighbor (rows of cw1 regrouped host-side).
            xfs_j = (x1 - x2_j + ptf_j).astype(bf)
            hc = jnp.dot(xfs_j, w1g_ref[j], preferred_element_type=jnp.float32)
            h_acc = hc if h_acc is None else h_acc + hc

        h = jnp.maximum(h_acc, 0.0)
        # cw2 as ONE lane-packed matmul -> (T, k*mid_s); columns are neighbor-major.
        logits = jnp.dot(h.astype(bf), w2p_ref[...],
                         preferred_element_type=jnp.float32) + b2p_ref[...]
        m = None
        for j in range(k):
            lj = logits[:, j * mid_s:(j + 1) * mid_s]
            m = lj if m is None else jnp.maximum(m, lj)
        sel = sel_ref[...]
        num = None
        denom = None
        for j in range(k):
            ej = jnp.exp(logits[:, j * mid_s:(j + 1) * mid_s] - m)
            denom = ej if denom is None else denom + ej
            # share_planes "repeat" = tiny 0/1 selection matmul (group = channel % mid_s).
            contrib = (jnp.dot(ej, sel, preferred_element_type=jnp.float32)
                       * x3_scr[:, j, :])
            num = contrib if num is None else num + contrib
        inv = pl.reciprocal(jnp.dot(denom, sel, preferred_element_type=jnp.float32),
                            approx=True)
        attn = jnp.maximum(num * inv, 0.0)
        out = (jnp.dot(attn.astype(bf), wo_ref[...], preferred_element_type=jnp.float32)
               + bo_ref[...] + id_scr[...])
        if has_post:
            q = jnp.maximum(jnp.dot(out.astype(bf), wq1_ref[...],
                                    preferred_element_type=jnp.float32) + bq1_ref[...], 0.0)
            q = jnp.maximum(jnp.dot(q.astype(bf), wq2_ref[...],
                                    preferred_element_type=jnp.float32) + bq2_ref[...], 0.0)
            o_ref[...] = q.astype(o_ref.dtype)
        else:
            o_ref[...] = out.astype(o_ref.dtype)

    return kernel


def point_transformer(p, sm_feats, sm_ppfs, post=None, share=8, row_cap=128):
    """sm_feats: (B,Nl,K,Cin), sm_ppfs: (B,Nl,K,P) -> (B,Nl,out) or (B,Nl,c2) if post."""
    B, Nl, K, Cin = sm_feats.shape
    P = sm_ppfs.shape[-1]
    out_c = p['conv0_w'].shape[1]
    mid = p['conv1_w'].shape[1]
    mid_s = mid // share
    rows = B * Nl
    tile = _pick_tile(rows, cap=row_cap)
    nt = pl.cdiv(rows, tile)
    rows_p = nt * tile
    bf = jnp.bfloat16
    feats2 = _pad_rows(sm_feats.reshape(rows, K, Cin).astype(bf), rows_p)
    ppfs2 = _pad_rows(sm_ppfs.reshape(rows, K, P).astype(jnp.float32), rows_p)

    # Trace-time weight re-layouts (all tiny):
    w23 = jnp.concatenate([p['conv2_w'], p['conv3_w']], axis=1).astype(bf)
    b23 = _bias(jnp.concatenate([p['conv2_b'], p['conv3_b']]), 2 * mid)
    # cw1 rows grouped per neighbor j (torch channel layout of xfs_flat is c*K + j).
    w1g = p['cw1_w'].reshape(mid, K, mid_s).transpose(1, 0, 2).astype(bf)
    # cw2 columns permuted to neighbor-major (j*mid_s + g); torch layout is g*K + j.
    w2p = (p['cw2_w'].reshape(mid_s, mid_s, K).transpose(0, 2, 1)
           .reshape(mid_s, K * mid_s).astype(bf))
    b2p = (p['cw2_b'].reshape(mid_s, K).transpose(1, 0)
           .reshape(1, K * mid_s).astype(jnp.float32))
    # torch .repeat over share_planes: output channel c uses attention group c % mid_s.
    sel = (jnp.arange(mid)[None, :] % mid_s ==
           jnp.arange(mid_s)[:, None]).astype(jnp.float32)

    args = [feats2, ppfs2,
            p['conv0_w'].astype(bf), _bias(p['conv0_b'], out_c),
            p['conv1_w'].astype(bf), _bias(p['conv1_b'], mid),
            w23, b23,
            p['ptc1_w'].astype(jnp.float32), p['ptc2_w'].astype(bf),
            w1g, w2p, b2p, sel,
            p['co_w'].astype(bf), _bias(p['co_b'], out_c)]
    in_specs = [pl.BlockSpec((tile, K, Cin), lambda i: (i, 0, 0)),
                pl.BlockSpec((tile, K, P), lambda i: (i, 0, 0))]
    in_specs += [_full_spec_1d(a) for a in args[2:]]

    c_final = out_c
    if post is not None:
        (wq1, bq1), (wq2, bq2) = post
        c1p, c2p = wq1.shape[1], wq2.shape[1]
        extra = [wq1.astype(bf), _bias(bq1, c1p), wq2.astype(bf), _bias(bq2, c2p)]
        args += extra
        in_specs += [_full_spec_1d(a) for a in extra]
        c_final = c2p

    out = pl.pallas_call(
        _make_pt_kernel(K, mid, mid_s, post is not None),
        out_shape=jax.ShapeDtypeStruct((rows_p, c_final), jnp.float32),
        grid=(nt,),
        in_specs=in_specs,
        out_specs=pl.BlockSpec((tile, c_final), lambda i: (i, 0)),
        scratch_shapes=[pltpu.VMEM((tile, K, mid), jnp.float32),   # x3 (+ptf) per neighbor
                        pltpu.VMEM((tile, out_c), jnp.float32)],   # identity (center feats)
        compiler_params=_P1,
    )(*args)
    return out[:rows].reshape(B, Nl, c_final)


# ----------------------------------------------------------------------------
# Pairwise squared distances (VPU broadcast-subtract-square-sum), tiled over N.
# ----------------------------------------------------------------------------

def _sqdist_kernel(a_ref, bt_ref, o_ref):
    acc = None
    for c in range(3):
        d = a_ref[0, :, c:c + 1] - bt_ref[0, c:c + 1, :]   # (tn,1)-(1,Mp) -> (tn,Mp)
        acc = d * d if acc is None else acc + d * d
    o_ref[0] = acc


def pairwise_sqdist(a, b):
    """a: (B,N,3), b: (B,M,3) -> (B,N,M) squared distances."""
    B, N, _ = a.shape
    M = b.shape[1]
    Mp = _round_up(M, 128)
    if N <= 512:
        tn = _round_up(N, 8)
        Np = tn
    else:
        tn = 512
        Np = _round_up(N, tn)
    a2 = a.astype(jnp.float32)
    if Np != N:
        a2 = jnp.pad(a2, ((0, 0), (0, Np - N), (0, 0)))
    bt = jnp.swapaxes(b.astype(jnp.float32), 1, 2)
    if Mp != M:
        bt = jnp.pad(bt, ((0, 0), (0, 0), (0, Mp - M)))    # padded cols sliced off below
    out = pl.pallas_call(
        _sqdist_kernel,
        out_shape=jax.ShapeDtypeStruct((B, Np, Mp), jnp.float32),
        grid=(B, Np // tn),
        in_specs=[pl.BlockSpec((1, tn, 3), lambda bi, i: (bi, i, 0)),
                  pl.BlockSpec((1, 3, Mp), lambda bi, i: (bi, 0, 0))],
        out_specs=pl.BlockSpec((1, tn, Mp), lambda bi, i: (bi, i, 0)),
        compiler_params=_P2,
    )(a2, bt)
    return out[:, :N, :M]


# ----------------------------------------------------------------------------
# 3-NN interpolation (weights broadcast inside the kernel).
# ----------------------------------------------------------------------------

def _interp3_kernel(w_ref, x_ref, o_ref):
    w = w_ref[...]
    o_ref[...] = (w[:, 0:1] * x_ref[:, 0, :]
                  + w[:, 1:2] * x_ref[:, 1, :]
                  + w[:, 2:3] * x_ref[:, 2, :]).astype(o_ref.dtype)


def three_interpolate(gathered, weight):
    """gathered: (B,Nt,3,C), weight: (B,Nt,3) -> (B,Nt,C)."""
    B, Nt, _, C = gathered.shape
    rows = B * Nt
    tile = _pick_tile(rows, cap=512)
    nt = pl.cdiv(rows, tile)
    rows_p = nt * tile
    x2 = _pad_rows(gathered.reshape(rows, 3, C).astype(jnp.float32), rows_p)
    w2 = _pad_rows(weight.reshape(rows, 3).astype(jnp.float32), rows_p)
    out = pl.pallas_call(
        _interp3_kernel,
        out_shape=jax.ShapeDtypeStruct((rows_p, C), jnp.float32),
        grid=(nt,),
        in_specs=[pl.BlockSpec((tile, 3), lambda i: (i, 0)),
                  pl.BlockSpec((tile, 3, C), lambda i: (i, 0, 0))],
        out_specs=pl.BlockSpec((tile, C), lambda i: (i, 0)),
        compiler_params=_P1,
    )(w2, x2)
    return out[:rows].reshape(B, Nt, C)


# ----------------------------------------------------------------------------
# Final fused concat + fuse_proj kernel: 4 weight-row slices summed, descriptor
# stored directly in the torch NCW layout (in-kernel transpose rides the XLU).
# ----------------------------------------------------------------------------

def _fuse_proj_kernel(u_ref, f0_ref, f1_ref, f2_ref,
                      wu_ref, w0_ref, w1_ref, w2_ref, o_ref):
    acc = jnp.dot(u_ref[0], wu_ref[...], preferred_element_type=jnp.float32)
    acc = acc + jnp.dot(f0_ref[0], w0_ref[...], preferred_element_type=jnp.float32)
    acc = acc + jnp.dot(f1_ref[0], w1_ref[...], preferred_element_type=jnp.float32)
    acc = acc + jnp.dot(f2_ref[0], w2_ref[...], preferred_element_type=jnp.float32)
    o_ref[0] = acc.T.astype(o_ref.dtype)


def fuse_descriptor(w_fp, unary, fuse0, f1_us, f2_us):
    B, N, cu = unary.shape
    c0, c1, c2 = fuse0.shape[-1], f1_us.shape[-1], f2_us.shape[-1]
    desc_c = w_fp.shape[1]
    if N <= 256:
        Np = _round_up(N, 8)
        tn = Np
    else:
        tn = 256
        Np = _round_up(N, tn)
    bf = jnp.bfloat16

    def prep(x):
        if Np != N:
            x = jnp.pad(x, ((0, 0), (0, Np - N), (0, 0)))
        return x.astype(bf)

    wu = w_fp[:cu].astype(bf)
    w0 = w_fp[cu:cu + c0].astype(bf)
    w1 = w_fp[cu + c0:cu + c0 + c1].astype(bf)
    w2 = w_fp[cu + c0 + c1:].astype(bf)
    desc = pl.pallas_call(
        _fuse_proj_kernel,
        out_shape=jax.ShapeDtypeStruct((B, desc_c, Np), jnp.float32),
        grid=(B, Np // tn),
        in_specs=[
            pl.BlockSpec((1, tn, cu), lambda b, i: (b, i, 0)),
            pl.BlockSpec((1, tn, c0), lambda b, i: (b, i, 0)),
            pl.BlockSpec((1, tn, c1), lambda b, i: (b, i, 0)),
            pl.BlockSpec((1, tn, c2), lambda b, i: (b, i, 0)),
            pl.BlockSpec((cu, desc_c), lambda b, i: (0, 0)),
            pl.BlockSpec((c0, desc_c), lambda b, i: (0, 0)),
            pl.BlockSpec((c1, desc_c), lambda b, i: (0, 0)),
            pl.BlockSpec((c2, desc_c), lambda b, i: (0, 0)),
        ],
        out_specs=pl.BlockSpec((1, desc_c, tn), lambda b, i: (b, 0, i)),
        compiler_params=_P2,
    )(prep(unary), prep(fuse0), prep(f1_us), prep(f2_us), wu, w0, w1, w2)
    return desc[:, :, :N]


# ----------------------------------------------------------------------------
# Point-cloud glue (kNN selection / gathers / PPF) in plain JAX
# ----------------------------------------------------------------------------

def knn_indices(query, ref, k):
    d = pairwise_sqdist(query, ref)
    # TODO(synk): for large N, fuse a running top-k into the distance kernel instead of
    # materializing (B, N, M) in HBM and calling XLA top_k.
    _, idx = jax.lax.top_k(-d, k)
    return idx  # (B, Nq, k)


def gather_points(x, idx):
    """x: (B,M,C), idx: (B,Nq,k) -> (B,Nq,k,C)."""
    return jax.vmap(lambda xb, ib: xb[ib])(x, idx)


def ppf_features(cent_pts, cent_nms, nbr_pts, nbr_nms):
    d = nbr_pts - cent_pts[:, :, None, :]
    n1 = jnp.broadcast_to(cent_nms[:, :, None, :], nbr_nms.shape)
    n2 = nbr_nms

    def angle(u, v):
        cross = jnp.cross(u, v)
        return jnp.arctan2(jnp.linalg.norm(cross, axis=-1), jnp.sum(u * v, axis=-1))

    nd = jnp.linalg.norm(d, axis=-1)
    return jnp.stack([angle(n1, d), angle(n2, d), angle(n1, n2), nd], axis=-1)


def sample_and_group_feats(npoint, k, pts, nms, feats=None):
    B, N, _ = pts.shape
    if npoint == -1 or npoint >= N:
        cent_pts, cent_nms = pts, nms
    else:
        # TODO(synk): original uses furthest-point sampling (CUDA ext); take first npoint.
        cent_pts, cent_nms = pts[:, :npoint], nms[:, :npoint]
    idx = knn_indices(cent_pts, pts, k)
    sm_pts = gather_points(pts, idx)
    sm_nms = gather_points(nms, idx)
    delta = sm_pts - cent_pts[:, :, None, :]
    rif = ppf_features(cent_pts, cent_nms, sm_pts, sm_nms)
    sm_feats = gather_points(feats, idx) if feats is not None else None
    return cent_pts, cent_nms, delta, rif, sm_pts, sm_feats


def get_cluster_feats(feats, pts, k):
    idx = knn_indices(pts, pts, k)
    return gather_points(feats, idx)


def three_nn_upsampling(target_pts, source_pts):
    d = pairwise_sqdist(target_pts, source_pts)
    neg, idx = jax.lax.top_k(-d, 3)
    dist = jnp.maximum(-neg, 1e-10)
    norm = jnp.sum(1.0 / dist, axis=2, keepdims=True)
    weight = 1.0 / dist / norm
    return idx, weight


def get_us_feats(feats, src_pts, tgt_pts):
    # TODO(synk): use a scalar-prefetch (pl.Element) gather so the (B,Nt,3,C) buffer
    # never hits HBM at production sizes.
    idx, weight = three_nn_upsampling(tgt_pts, src_pts)
    gathered = gather_points(feats, idx)
    return three_interpolate(gathered, weight)


# ----------------------------------------------------------------------------
# Parameter initialization (deterministic, torch-like uniform fan-in init)
# ----------------------------------------------------------------------------

def _init_linear(key, cin, cout, bias=True):
    kw, kb = jax.random.split(key)
    s = 1.0 / math.sqrt(cin)
    w = jax.random.uniform(kw, (cin, cout), jnp.float32, -s, s)
    b = jax.random.uniform(kb, (cout,), jnp.float32, -s, s) if bias else None
    return w, b


def init_pt(key, in_planes, mid, out, k, pt_planes, share=8):
    ks = jax.random.split(key, 9)
    p = {}
    p['conv0_w'], p['conv0_b'] = _init_linear(ks[0], in_planes, out)
    p['conv1_w'], p['conv1_b'] = _init_linear(ks[1], out, mid)
    p['conv2_w'], p['conv2_b'] = _init_linear(ks[2], out, mid)
    p['conv3_w'], p['conv3_b'] = _init_linear(ks[3], out, mid)
    p['cw1_w'], _ = _init_linear(ks[4], mid * k, mid // share, bias=False)
    p['cw2_w'], p['cw2_b'] = _init_linear(ks[5], mid // share, k * mid // share)
    p['co_w'], p['co_b'] = _init_linear(ks[6], mid, out)
    p['ptc1_w'], _ = _init_linear(ks[7], pt_planes, mid, bias=False)
    p['ptc2_w'], _ = _init_linear(ks[8], mid, mid, bias=False)
    return p


def init_params(key, knn=(5, 5, 5), feature_size_list=(128, 128, 32, 8),
                descriptor_size=128):
    ks = jax.random.split(key, 14)
    fsl = feature_size_list
    k0 = knn[0]
    ri_feat_size = 4                      # rif == 'ppf'
    pt_feat = ri_feat_size + 6            # rif_only == False
    p = {}
    p['CBR0_RI'] = _init_linear(ks[0], ri_feat_size * k0, 64)
    p['CBR_Res_RI'] = _init_linear(ks[1], 64, fsl[0])
    p['CBR0_RE'] = _init_linear(ks[2], 6 * k0, 64)
    p['CBR01_F'] = _init_linear(ks[3], 128, 128)
    p['CBR02_F'] = _init_linear(ks[4], 128, fsl[1])
    p['PT0'] = init_pt(ks[5], fsl[1], fsl[1] // 2, fsl[1], knn[0], pt_feat)
    p['PT1'] = init_pt(ks[6], fsl[0] + fsl[1], (fsl[0] + fsl[1]) // 2, 128,
                       knn[1], pt_feat)
    p['CBR11_F'] = _init_linear(ks[7], 128, 64)
    p['CBR12_F'] = _init_linear(ks[8], 64, fsl[2])
    p['PT2'] = init_pt(ks[9], fsl[2], fsl[2] // 2, 32, knn[2], pt_feat)
    p['CBR21_F'] = _init_linear(ks[10], 32, 16)
    p['CBR22_F'] = _init_linear(ks[11], 16, fsl[3])
    w, _ = _init_linear(ks[12], sum(fsl), descriptor_size, bias=False)
    p['fuse_proj'] = (w, None)
    return p


# ----------------------------------------------------------------------------
# Forward pass
# ----------------------------------------------------------------------------

def feat_multi_fusion_forward(params, pts, nms, knn=(5, 5, 5), down_sample=(2, 4)):
    B, N, _ = pts.shape

    # ---- level 0 ------------------------------------------------------------
    _, _, delta0, rif0, sm_pts0, _ = sample_and_group_feats(-1, knn[0], pts, nms)
    sm_cluster0 = jnp.concatenate([sm_pts0, delta0, rif0], axis=-1)   # (B,N,K,10)
    rif_flat = rif0.reshape(B, N, -1)        # (B,N,4k)
    delta_flat = delta0.reshape(B, N, -1)    # (B,N,3k)
    pts_flat = sm_pts0.reshape(B, N, -1)     # (B,N,3k)

    unary_feats, fuse_feats = level0_features(params, rif_flat, pts_flat, delta_flat)

    sm_fuse_feats0 = get_cluster_feats(fuse_feats, pts, knn[0])
    fuse_feats0 = point_transformer(params['PT0'], sm_fuse_feats0, sm_cluster0)

    # ---- level 1 ------------------------------------------------------------
    cat01 = jnp.concatenate([unary_feats, fuse_feats0], axis=-1)
    np1 = N // down_sample[0]
    cent_pts1, cent_nms1, delta1, rif1, sm_pts1, sm_ff1 = \
        sample_and_group_feats(np1, knn[1], pts, nms, cat01)
    sm_cluster1 = jnp.concatenate([sm_pts1, delta1, rif1], axis=-1)
    fuse_feats1 = point_transformer(params['PT1'], sm_ff1, sm_cluster1,
                                    post=(params['CBR11_F'], params['CBR12_F']))

    # ---- level 2 ------------------------------------------------------------
    np2 = N // down_sample[1]
    cent_pts2, cent_nms2, delta2, rif2, sm_pts2, sm_ff2 = \
        sample_and_group_feats(np2, knn[2], cent_pts1, cent_nms1, fuse_feats1)
    sm_cluster2 = jnp.concatenate([sm_pts2, delta2, rif2], axis=-1)
    fuse_feats2 = point_transformer(params['PT2'], sm_ff2, sm_cluster2,
                                    post=(params['CBR21_F'], params['CBR22_F']))

    # ---- upsample + fused concat/projection ---------------------------------
    f1_us = get_us_feats(fuse_feats1, cent_pts1, pts)
    f2_us = get_us_feats(fuse_feats2, cent_pts2, pts)
    w_fp, _ = params['fuse_proj']
    return fuse_descriptor(w_fp, unary_feats, fuse_feats0, f1_us, f2_us)  # (B,128,N)


# ----------------------------------------------------------------------------
# Main
# ----------------------------------------------------------------------------

if __name__ == "__main__":
    key = jax.random.PRNGKey(0)
    kpts, knms, kparams = jax.random.split(key, 3)

    B, N = 2, 32
    pts = jax.random.normal(kpts, (B, N, 3), jnp.float32)
    nms = jax.random.normal(knms, (B, N, 3), jnp.float32)
    nms = nms / jnp.linalg.norm(nms, axis=-1, keepdims=True)

    params = init_params(kparams)

    out = jax.jit(feat_multi_fusion_forward)(params, pts, nms)
    out = jax.block_until_ready(out)
    assert out.shape == (B, 128, N), out.shape
    assert bool(jnp.all(jnp.isfinite(out)))
    print("KERNEL_OK")
</pallas_src>

<mosaic_0001>
module attributes {stable_mosaic.version = 11 : i64} {
  func.func @_sqdist_kernel(%arg0: i32, %arg1: i32, %arg2: memref<1x32x3xf32, #tpu.memory_space<vmem>>, %arg3: memref<1x3x128xf32, #tpu.memory_space<vmem>>, %arg4: memref<1x32x128xf32, #tpu.memory_space<vmem>>) attributes {dimension_semantics = [#tpu.dimension_semantics<parallel>, #tpu.dimension_semantics<parallel>], iteration_bounds = array<i64: 2, 1>, scalar_prefetch = 0 : i64, scratch_operands = 0 : i64, tpu.core_type = #tpu.core_type<tc>, window_params = [{transform_indices = @transform_0, window_bounds = array<i64: 1, 32, 3>}, {transform_indices = @transform_1, window_bounds = array<i64: 1, 3, 128>}, {transform_indices = @transform_2, window_bounds = array<i64: 1, 32, 128>}]} {
    %c0 = arith.constant 0 : index
    %c0_0 = arith.constant 0 : index
    %c0_1 = arith.constant 0 : index
    %0 = vector.load %arg2[%c0, %c0_0, %c0_1] : memref<1x32x3xf32, #tpu.memory_space<vmem>>, vector<1x32x1xf32>
    %1 = vector.shape_cast %0 : vector<1x32x1xf32> to vector<32x1xf32>
    %c0_2 = arith.constant 0 : index
    %c0_3 = arith.constant 0 : index
    %c0_4 = arith.constant 0 : index
    %2 = vector.load %arg3[%c0_2, %c0_3, %c0_4] : memref<1x3x128xf32, #tpu.memory_space<vmem>>, vector<1x1x128xf32>
    %3 = vector.shape_cast %2 : vector<1x1x128xf32> to vector<1x128xf32>
    %4 = vector.broadcast %1 : vector<32x1xf32> to vector<32x128xf32>
    %5 = vector.broadcast %3 : vector<1x128xf32> to vector<32x128xf32>
    %6 = arith.subf %4, %5 : vector<32x128xf32>
    %7 = arith.mulf %6, %6 : vector<32x128xf32>
    %c0_5 = arith.constant 0 : index
    %c0_6 = arith.constant 0 : index
    %c1 = arith.constant 1 : index
    %8 = vector.load %arg2[%c0_5, %c0_6, %c1] : memref<1x32x3xf32, #tpu.memory_space<vmem>>, vector<1x32x1xf32>
    %9 = vector.shape_cast %8 : vector<1x32x1xf32> to vector<32x1xf32>
    %c0_7 = arith.constant 0 : index
    %c1_8 = arith.constant 1 : index
    %c0_9 = arith.constant 0 : index
    %10 = vector.load %arg3[%c0_7, %c1_8, %c0_9] : memref<1x3x128xf32, #tpu.memory_space<vmem>>, vector<1x1x128xf32>
    %11 = vector.shape_cast %10 : vector<1x1x128xf32> to vector<1x128xf32>
    %12 = vector.broadcast %9 : vector<32x1xf32> to vector<32x128xf32>
    %13 = vector.broadcast %11 : vector<1x128xf32> to vector<32x128xf32>
    %14 = arith.subf %12, %13 : vector<32x128xf32>
    %15 = arith.mulf %14, %14 : vector<32x128xf32>
    %16 = arith.addf %7, %15 : vector<32x128xf32>
    %c0_10 = arith.constant 0 : index
    %c0_11 = arith.constant 0 : index
    %c2 = arith.constant 2 : index
    %17 = vector.load %arg2[%c0_10, %c0_11, %c2] : memref<1x32x3xf32, #tpu.memory_space<vmem>>, vector<1x32x1xf32>
    %18 = vector.shape_cast %17 : vector<1x32x1xf32> to vector<32x1xf32>
    %c0_12 = arith.constant 0 : index
    %c2_13 = arith.constant 2 : index
    %c0_14 = arith.constant 0 : index
    %19 = vector.load %arg3[%c0_12, %c2_13, %c0_14] : memref<1x3x128xf32, #tpu.memory_space<vmem>>, vector<1x1x128xf32>
    %20 = vector.shape_cast %19 : vector<1x1x128xf32> to vector<1x128xf32>
    %21 = vector.broadcast %18 : vector<32x1xf32> to vector<32x128xf32>
    %22 = vector.broadcast %20 : vector<1x128xf32> to vector<32x128xf32>
    %23 = arith.subf %21, %22 : vector<32x128xf32>
    %24 = arith.mulf %23, %23 : vector<32x128xf32>
    %25 = arith.addf %16, %24 : vector<32x128xf32>
    %c0_15 = arith.constant 0 : index
    %c0_16 = arith.constant 0 : index
    %c0_17 = arith.constant 0 : index
    %26 = vector.load %arg4[%c0_15, %c0_16, %c0_17] : memref<1x32x128xf32, #tpu.memory_space<vmem>>, vector<1x32x128xf32>
    %27 = vector.shape_cast %26 : vector<1x32x128xf32> to vector<32x128xf32>
    %28 = vector.shape_cast %25 : vector<32x128xf32> to vector<1x32x128xf32>
    tpu.vector_store %arg4[%c0_15, %c0_16, %c0_17], %28 {strides = array<i32>} : memref<1x32x128xf32, #tpu.memory_space<vmem>>, vector<1x32x128xf32>,
    return
  }
  func.func @transform_0(%arg0: i32, %arg1: i32) -> (i32, i32, i32) {
    %c0_i32 = arith.constant 0 : i32
    %c0_i32_0 = arith.constant 0 : i32
    return %arg0, %arg1, %c0_i32 : i32, i32, i32
  }
  func.func @transform_1(%arg0: i32, %arg1: i32) -> (i32, i32, i32) {
    %c0_i32 = arith.constant 0 : i32
    %c0_i32_0 = arith.constant 0 : i32
    %c0_i32_1 = arith.constant 0 : i32
    return %arg0, %c0_i32, %c0_i32_0 : i32, i32, i32
  }
  func.func @transform_2(%arg0: i32, %arg1: i32) -> (i32, i32, i32) {
    %c0_i32 = arith.constant 0 : i32
    %c0_i32_0 = arith.constant 0 : i32
    return %arg0, %arg1, %c0_i32 : i32, i32, i32
  }
}

module attributes {stable_mosaic.version = 11 : i64} {
  func.func @_level0_kernel(%arg0: i32, %arg1: memref<32x20xf32, #tpu.memory_space<vmem>>, %arg2: memref<32x15xf32, #tpu.memory_space<vmem>>, %arg3: memref<32x15xf32, #tpu.memory_space<vmem>>, %arg4: memref<20x64xf32, #tpu.memory_space<vmem>>, %arg5: memref<1x64xf32, #tpu.memory_space<vmem>>, %arg6: memref<64x128xbf16, #tpu.memory_space<vmem>>, %arg7: memref<1x128xf32, #tpu.memory_space<vmem>>, %arg8: memref<15x64xf32, #tpu.memory_space<vmem>>, %arg9: memref<15x64xf32, #tpu.memory_space<vmem>>, %arg10: memref<1x64xf32, #tpu.memory_space<vmem>>, %arg11: memref<64x128xbf16, #tpu.memory_space<vmem>>, %arg12: memref<64x128xbf16, #tpu.memory_space<vmem>>, %arg13: memref<1x128xf32, #tpu.memory_space<vmem>>, %arg14: memref<128x128xbf16, #tpu.memory_space<vmem>>, %arg15: memref<1x128xf32, #tpu.memory_space<vmem>>, %arg16: memref<32x128xf32, #tpu.memory_space<vmem>>, %arg17: memref<32x128xf32, #tpu.memory_space<vmem>>) attributes {dimension_semantics = [#tpu.dimension_semantics<parallel>], iteration_bounds = array<i64: 2>, scalar_prefetch = 0 : i64, scratch_operands = 0 : i64, tpu.core_type = #tpu.core_type<tc>, window_params = [{transform_indices = @transform_0, window_bounds = array<i64: 32, 20>}, {transform_indices = @transform_1, window_bounds = array<i64: 32, 15>}, {transform_indices = @transform_2, window_bounds = array<i64: 32, 15>}, {pipeline_mode = #tpu.pipeline_mode<synchronous>, transform_indices = @transform_3, window_bounds = array<i64: 20, 64>}, {pipeline_mode = #tpu.pipeline_mode<synchronous>, transform_indices = @transform_4, window_bounds = array<i64: 1, 64>}, {pipeline_mode = #tpu.pipeline_mode<synchronous>, transform_indices = @transform_5, window_bounds = array<i64: 64, 128>}, {pipeline_mode = #tpu.pipeline_mode<synchronous>, transform_indices = @transform_6, window_bounds = array<i64: 1, 128>}, {pipeline_mode = #tpu.pipeline_mode<synchronous>, transform_indices = @transform_7, window_bounds = array<i64: 15, 64>}, {pipeline_mode = #tpu.pipeline_mode<synchronous>, transform_indices = @transform_8, window_bounds = array<i64: 15, 64>}, {pipeline_mode = #tpu.pipeline_mode<synchronous>, transform_indices = @transform_9, window_bounds = array<i64: 1, 64>}, {pipeline_mode = #tpu.pipeline_mode<synchronous>, transform_indices = @transform_10, window_bounds = array<i64: 64, 128>}, {pipeline_mode = #tpu.pipeline_mode<synchronous>, transform_indices = @transform_11, window_bounds = array<i64: 64, 128>}, {pipeline_mode = #tpu.pipeline_mode<synchronous>, transform_indices = @transform_12, window_bounds = array<i64: 1, 128>}, {pipeline_mode = #tpu.pipeline_mode<synchronous>, transform_indices = @transform_13, window_bounds = array<i64: 128, 128>}, {pipeline_mode = #tpu.pipeline_mode<synchronous>, transform_indices = @transform_14, window_bounds = array<i64: 1, 128>}, {transform_indices = @transform_15, window_bounds = array<i64: 32, 128>}, {transform_indices = @transform_16, window_bounds = array<i64: 32, 128>}]} {
    %c0 = arith.constant 0 : index
    %c0_0 = arith.constant 0 : index
    %0 = vector.load %arg1[%c0, %c0_0] : memref<32x20xf32, #tpu.memory_space<vmem>>, vector<32x20xf32>
    %c0_1 = arith.constant 0 : index
    %c0_2 = arith.constant 0 : index
    %1 = vector.load %arg4[%c0_1, %c0_2] : memref<20x64xf32, #tpu.memory_space<vmem>>, vector<20x64xf32>
    %cst = arith.constant dense<0.000000e+00> : vector<32x64xf32>
    %2 = tpu.matmul %0, %1, %cst {dimension_numbers = #tpu.dot_dimension_numbers<[1], [0], [0], [1], [0, 0, 1, 1], [], []>} : vector<32x20xf32>, vector<20x64xf32>, vector<32x64xf32> -> vector<32x64xf32>
    %c0_3 = arith.constant 0 : index
    %c0_4 = arith.constant 0 : index
    %3 = vector.load %arg5[%c0_3, %c0_4] : memref<1x64xf32, #tpu.memory_space<vmem>>, vector<1x64xf32>
    %4 = vector.broadcast %3 : vector<1x64xf32> to vector<32x64xf32>
    %5 = arith.addf %2, %4 : vector<32x64xf32>
    %cst_5 = arith.constant 0.000000e+00 : f32
    %6 = vector.broadcast %cst_5 : f32 to vector<32x64xf32>
    %7 = arith.maximumf %5, %6 : vector<32x64xf32>
    %c0_6 = arith.constant 0 : index
    %c0_7 = arith.constant 0 : index
    %8 = vector.load %arg2[%c0_6, %c0_7] : memref<32x15xf32, #tpu.memory_space<vmem>>, vector<32x15xf32>
    %c0_8 = arith.constant 0 : index
    %c0_9 = arith.constant 0 : index
    %9 = vector.load %arg8[%c0_8, %c0_9] : memref<15x64xf32, #tpu.memory_space<vmem>>, vector<15x64xf32>
    %cst_10 = arith.constant dense<0.000000e+00> : vector<32x64xf32>
    %10 = tpu.matmul %8, %9, %cst_10 {dimension_numbers = #tpu.dot_dimension_numbers<[1], [0], [0], [1], [0, 0, 1, 1], [], []>} : vector<32x15xf32>, vector<15x64xf32>, vector<32x64xf32> -> vector<32x64xf32>
    %c0_11 = arith.constant 0 : index
    %c0_12 = arith.constant 0 : index
    %11 = vector.load %arg3[%c0_11, %c0_12] : memref<32x15xf32, #tpu.memory_space<vmem>>, vector<32x15xf32>
    %c0_13 = arith.constant 0 : index
    %c0_14 = arith.constant 0 : index
    %12 = vector.load %arg9[%c0_13, %c0_14] : memref<15x64xf32, #tpu.memory_space<vmem>>, vector<15x64xf32>
    %cst_15 = arith.constant dense<0.000000e+00> : vector<32x64xf32>
    %13 = tpu.matmul %11, %12, %cst_15 {dimension_numbers = #tpu.dot_dimension_numbers<[1], [0], [0], [1], [0, 0, 1, 1], [], []>} : vector<32x15xf32>, vector<15x64xf32>, vector<32x64xf32> -> vector<32x64xf32>
    %14 = arith.addf %10, %13 : vector<32x64xf32>
    %c0_16 = arith.constant 0 : index
    %c0_17 = arith.constant 0 : index
    %15 = vector.load %arg10[%c0_16, %c0_17] : memref<1x64xf32, #tpu.memory_space<vmem>>, vector<1x64xf32>
    %16 = vector.broadcast %15 : vector<1x64xf32> to vector<32x64xf32>
    %17 = arith.addf %14, %16 : vector<32x64xf32>
    %cst_18 = arith.constant 0.000000e+00 : f32
    %18 = vector.broadcast %cst_18 : f32 to vector<32x64xf32>
    %19 = arith.maximumf %17, %18 : vector<32x64xf32>
    %20 = arith.truncf %7 : vector<32x64xf32> to vector<32x64xbf16>
    %c0_19 = arith.constant 0 : index
    %c0_20 = arith.constant 0 : index
    %21 = vector.load %arg6[%c0_19, %c0_20] : memref<64x128xbf16, #tpu.memory_space<vmem>>, vector<64x128xbf16>
    %cst_21 = arith.constant dense<0.000000e+00> : vector<32x128xf32>
    %22 = tpu.matmul %20, %21, %cst_21 {dimension_numbers = #tpu.dot_dimension_numbers<[1], [0], [0], [1], [0, 0, 1, 1], [], []>} : vector<32x64xbf16>, vector<64x128xbf16>, vector<32x128xf32> -> vector<32x128xf32>
    %c0_22 = arith.constant 0 : index
    %c0_23 = arith.constant 0 : index
    %23 = vector.load %arg7[%c0_22, %c0_23] : memref<1x128xf32, #tpu.memory_space<vmem>>, vector<1x128xf32>
    %24 = vector.broadcast %23 : vector<1x128xf32> to vector<32x128xf32>
    %25 = arith.addf %22, %24 : vector<32x128xf32>
    %cst_24 = arith.constant 0.000000e+00 : f32
    %26 = vector.broadcast %cst_24 : f32 to vector<32x128xf32>
    %27 = arith.maximumf %25, %26 : vector<32x128xf32>
    %c0_25 = arith.constant 0 : index
    %c0_26 = arith.constant 0 : index
    %28 = vector.load %arg16[%c0_25, %c0_26] : memref<32x128xf32, #tpu.memory_space<vmem>>, vector<32x128xf32>
    tpu.vector_store %arg16[%c0_25, %c0_26], %27 {strides = array<i32>} : memref<32x128xf32, #tpu.memory_space<vmem>>, vector<32x128xf32>,
    %c0_27 = arith.constant 0 : index
    %c0_28 = arith.constant 0 : index
    %29 = vector.load %arg11[%c0_27, %c0_28] : memref<64x128xbf16, #tpu.memory_space<vmem>>, vector<64x128xbf16>
    %cst_29 = arith.constant dense<0.000000e+00> : vector<32x128xf32>
    %30 = tpu.matmul %20, %29, %cst_29 {dimension_numbers = #tpu.dot_dimension_numbers<[1], [0], [0], [1], [0, 0, 1, 1], [], []>} : vector<32x64xbf16>, vector<64x128xbf16>, vector<32x128xf32> -> vector<32x128xf32>
    %31 = arith.truncf %19 : vector<32x64xf32> to vector<32x64xbf16>
    %c0_30 = arith.constant 0 : index
    %c0_31 = arith.constant 0 : index
    %32 = vector.load %arg12[%c0_30, %c0_31] : memref<64x128xbf16, #tpu.memory_space<vmem>>, vector<64x128xbf16>
    %cst_32 = arith.constant dense<0.000000e+00> : vector<32x128xf32>
    %33 = tpu.matmul %31, %32, %cst_32 {dimension_numbers = #tpu.dot_dimension_numbers<[1], [0], [0], [1], [0, 0, 1, 1], [], []>} : vector<32x64xbf16>, vector<64x128xbf16>, vector<32x128xf32> -> vector<32x128xf32>
    %34 = arith.addf %30, %33 : vector<32x128xf32>
    %c0_33 = arith.constant 0 : index
    %c0_34 = arith.constant 0 : index
    %35 = vector.load %arg13[%c0_33, %c0_34] : memref<1x128xf32, #tpu.memory_space<vmem>>, vector<1x128xf32>
    %36 = vector.broadcast %35 : vector<1x128xf32> to vector<32x128xf32>
    %37 = arith.addf %34, %36 : vector<32x128xf32>
    %cst_35 = arith.constant 0.000000e+00 : f32
    %38 = vector.broadcast %cst_35 : f32 to vector<32x128xf32>
    %39 = arith.maximumf %37, %38 : vector<32x128xf32>
    %40 = arith.truncf %39 : vector<32x128xf32> to vector<32x128xbf16>
    %c0_36 = arith.constant 0 : index
    %c0_37 = arith.constant 0 : index
    %41 = vector.load %arg14[%c0_36, %c0_37] : memref<128x128xbf16, #tpu.memory_space<vmem>>, vector<128x128xbf16>
    %cst_38 = arith.constant dense<0.000000e+00> : vector<32x128xf32>
    %42 = tpu.matmul %40, %41, %cst_38 {dimension_numbers = #tpu.dot_dimension_numbers<[1], [0], [0], [1], [0, 0, 1, 1], [], []>} : vector<32x128xbf16>, vector<128x128xbf16>, vector<32x128xf32> -> vector<32x128xf32>
    %c0_39 = arith.constant 0 : index
    %c0_40 = arith.constant 0 : index
    %43 = vector.load %arg15[%c0_39, %c0_40] : memref<1x128xf32, #tpu.memory_space<vmem>>, vector<1x128xf32>
    %44 = vector.broadcast %43 : vector<1x128xf32> to vector<32x128xf32>
    %45 = arith.addf %42, %44 : vector<32x128xf32>
    %cst_41 = arith.constant 0.000000e+00 : f32
    %46 = vector.broadcast %cst_41 : f32 to vector<32x128xf32>
    %47 = arith.maximumf %45, %46 : vector<32x128xf32>
    %c0_42 = arith.constant 0 : index
    %c0_43 = arith.constant 0 : index
    %48 = vector.load %arg17[%c0_42, %c0_43] : memref<32x128xf32, #tpu.memory_space<vmem>>, vector<32x128xf32>
    tpu.vector_store %arg17[%c0_42, %c0_43], %47 {strides = array<i32>} : memref<32x128xf32, #tpu.memory_space<vmem>>, vector<32x128xf32>,
    return
  }
  func.func @transform_0(%arg0: i32) -> (i32, i32) {
    %c0_i32 = arith.constant 0 : i32
    %c0_i32_0 = arith.constant 0 : i32
    return %arg0, %c0_i32 : i32, i32
  }
  func.func @transform_1(%arg0: i32) -> (i32, i32) {
    %c0_i32 = arith.constant 0 : i32
    %c0_i32_0 = arith.constant 0 : i32
    return %arg0, %c0_i32 : i32, i32
  }
  func.func @transform_2(%arg0: i32) -> (i32, i32) {
    %c0_i32 = arith.constant 0 : i32
    %c0_i32_0 = arith.constant 0 : i32
    return %arg0, %c0_i32 : i32, i32
  }
  func.func @transform_3(%arg0: i32) -> (i32, i32) {
    %c0_i32 = arith.constant 0 : i32
    %c0_i32_0 = arith.constant 0 : i32
    %c0_i32_1 = arith.constant 0 : i32
    return %c0_i32, %c0_i32_0 : i32, i32
  }
  func.func @transform_4(%arg0: i32) -> (i32, i32) {
    %c0_i32 = arith.constant 0 : i32
    %c0_i32_0 = arith.constant 0 : i32
    %c0_i32_1 = arith.constant 0 : i32
    return %c0_i32, %c0_i32_0 : i32, i32
  }
  func.func @transform_5(%arg0: i32) -> (i32, i32) {
    %c0_i32 = arith.constant 0 : i32
    %c0_i32_0 = arith.constant 0 : i32
    %c0_i32_1 = arith.constant 0 : i32
    return %c0_i32, %c0_i32_0 : i32, i32
  }
  func.func @transform_6(%arg0: i32) -> (i32, i32) {
    %c0_i32 = arith.constant 0 : i32
    %c0_i32_0 = arith.constant 0 : i32
    %c0_i32_1 = arith.constant 0 : i32
    return %c0_i32, %c0_i32_0 : i32, i32
  }
  func.func @transform_7(%arg0: i32) -> (i32, i32) {
    %c0_i32 = arith.constant 0 : i32
    %c0_i32_0 = arith.constant 0 : i32
    %c0_i32_1 = arith.constant 0 : i32
    return %c0_i32, %c0_i32_0 : i32, i32
  }
  func.func @transform_8(%arg0: i32) -> (i32, i32) {
    %c0_i32 = arith.constant 0 : i32
    %c0_i32_0 = arith.constant 0 : i32
    %c0_i32_1 = arith.constant 0 : i32
    return %c0_i32, %c0_i32_0 : i32, i32
  }
  func.func @transform_9(%arg0: i32) -> (i32, i32) {
    %c0_i32 = arith.constant 0 : i32
    %c0_i32_0 = arith.constant 0 : i32
    %c0_i32_1 = arith.constant 0 : i32
    return %c0_i32, %c0_i32_0 : i32, i32
  }
  func.func @transform_10(%arg0: i32) -> (i32, i32) {
    %c0_i32 = arith.constant 0 : i32
    %c0_i32_0 = arith.constant 0 : i32
    %c0_i32_1 = arith.constant 0 : i32
    return %c0_i32, %c0_i32_0 : i32, i32
  }
  func.func @transform_11(%arg0: i32) -> (i32, i32) {
    %c0_i32 = arith.constant 0 : i32
    %c0_i32_0 = arith.constant 0 : i32
    %c0_i32_1 = arith.constant 0 : i32
    return %c0_i32, %c0_i32_0 : i32, i32
  }
  func.func @transform_12(%arg0: i32) -> (i32, i32) {
    %c0_i32 = arith.constant 0 : i32
    %c0_i32_0 = arith.constant 0 : i32
    %c0_i32_1 = arith.constant 0 : i32
    return %c0_i32, %c0_i32_0 : i32, i32
  }
  func.func @transform_13(%arg0: i32) -> (i32, i32) {
    %c0_i32 = arith.constant 0 : i32
    %c0_i32_0 = arith.constant 0 : i32
    %c0_i32_1 = arith.constant 0 : i32
    return %c0_i32, %c0_i32_0 : i32, i32
  }
  func.func @transform_14(%arg0: i32) -> (i32, i32) {
    %c0_i32 = arith.constant 0 : i32
    %c0_i32_0 = arith.constant 0 : i32
    %c0_i32_1 = arith.constant 0 : i32
    return %c0_i32, %c0_i32_0 : i32, i32
  }
  func.func @transform_15(%arg0: i32) -> (i32, i32) {
    %c0_i32 = arith.constant 0 : i32
    %c0_i32_0 = arith.constant 0 : i32
    return %arg0, %c0_i32 : i32, i32
  }
  func.func @transform_16(%arg0: i32) -> (i32, i32) {
    %c0_i32 = arith.constant 0 : i32
    %c0_i32_0 = arith.constant 0 : i32
    return %arg0, %c0_i32 : i32, i32
  }
}

module attributes {stable_mosaic.version = 11 : i64} {
  func.func @_sqdist_kernel(%arg0: i32, %arg1: i32, %arg2: memref<1x16x3xf32, #tpu.memory_space<vmem>>, %arg3: memref<1x3x128xf32, #tpu.memory_space<vmem>>, %arg4: memref<1x16x128xf32, #tpu.memory_space<vmem>>) attributes {dimension_semantics = [#tpu.dimension_semantics<parallel>, #tpu.dimension_semantics<parallel>], iteration_bounds = array<i64: 2, 1>, scalar_prefetch = 0 : i64, scratch_operands = 0 : i64, tpu.core_type = #tpu.core_type<tc>, window_params = [{transform_indices = @transform_0, window_bounds = array<i64: 1, 16, 3>}, {transform_indices = @transform_1, window_bounds = array<i64: 1, 3, 128>}, {transform_indices = @transform_2, window_bounds = array<i64: 1, 16, 128>}]} {
    %c0 = arith.constant 0 : index
    %c0_0 = arith.constant 0 : index
    %c0_1 = arith.constant 0 : index
    %0 = vector.load %arg2[%c0, %c0_0, %c0_1] : memref<1x16x3xf32, #tpu.memory_space<vmem>>, vector<1x16x1xf32>
    %1 = vector.shape_cast %0 : vector<1x16x1xf32> to vector<16x1xf32>
    %c0_2 = arith.constant 0 : index
    %c0_3 = arith.constant 0 : index
    %c0_4 = arith.constant 0 : index
    %2 = vector.load %arg3[%c0_2, %c0_3, %c0_4] : memref<1x3x128xf32, #tpu.memory_space<vmem>>, vector<1x1x128xf32>
    %3 = vector.shape_cast %2 : vector<1x1x128xf32> to vector<1x128xf32>
    %4 = vector.broadcast %1 : vector<16x1xf32> to vector<16x128xf32>
    %5 = vector.broadcast %3 : vector<1x128xf32> to vector<16x128xf32>
    %6 = arith.subf %4, %5 : vector<16x128xf32>
    %7 = arith.mulf %6, %6 : vector<16x128xf32>
    %c0_5 = arith.constant 0 : index
    %c0_6 = arith.constant 0 : index
    %c1 = arith.constant 1 : index
    %8 = vector.load %arg2[%c0_5, %c0_6, %c1] : memref<1x16x3xf32, #tpu.memory_space<vmem>>, vector<1x16x1xf32>
    %9 = vector.shape_cast %8 : vector<1x16x1xf32> to vector<16x1xf32>
    %c0_7 = arith.constant 0 : index
    %c1_8 = arith.constant 1 : index
    %c0_9 = arith.constant 0 : index
    %10 = vector.load %arg3[%c0_7, %c1_8, %c0_9] : memref<1x3x128xf32, #tpu.memory_space<vmem>>, vector<1x1x128xf32>
    %11 = vector.shape_cast %10 : vector<1x1x128xf32> to vector<1x128xf32>
    %12 = vector.broadcast %9 : vector<16x1xf32> to vector<16x128xf32>
    %13 = vector.broadcast %11 : vector<1x128xf32> to vector<16x128xf32>
    %14 = arith.subf %12, %13 : vector<16x128xf32>
    %15 = arith.mulf %14, %14 : vector<16x128xf32>
    %16 = arith.addf %7, %15 : vector<16x128xf32>
    %c0_10 = arith.constant 0 : index
    %c0_11 = arith.constant 0 : index
    %c2 = arith.constant 2 : index
    %17 = vector.load %arg2[%c0_10, %c0_11, %c2] : memref<1x16x3xf32, #tpu.memory_space<vmem>>, vector<1x16x1xf32>
    %18 = vector.shape_cast %17 : vector<1x16x1xf32> to vector<16x1xf32>
    %c0_12 = arith.constant 0 : index
    %c2_13 = arith.constant 2 : index
    %c0_14 = arith.constant 0 : index
    %19 = vector.load %arg3[%c0_12, %c2_13, %c0_14] : memref<1x3x128xf32, #tpu.memory_space<vmem>>, vector<1x1x128xf32>
    %20 = vector.shape_cast %19 : vector<1x1x128xf32> to vector<1x128xf32>
    %21 = vector.broadcast %18 : vector<16x1xf32> to vector<16x128xf32>
    %22 = vector.broadcast %20 : vector<1x128xf32> to vector<16x128xf32>
    %23 = arith.subf %21, %22 : vector<16x128xf32>
    %24 = arith.mulf %23, %23 : vector<16x128xf32>
    %25 = arith.addf %16, %24 : vector<16x128xf32>
    %c0_15 = arith.constant 0 : index
    %c0_16 = arith.constant 0 : index
    %c0_17 = arith.constant 0 : index
    %26 = vector.load %arg4[%c0_15, %c0_16, %c0_17] : memref<1x16x128xf32, #tpu.memory_space<vmem>>, vector<1x16x128xf32>
    %27 = vector.shape_cast %26 : vector<1x16x128xf32> to vector<16x128xf32>
    %28 = vector.shape_cast %25 : vector<16x128xf32> to vector<1x16x128xf32>
    tpu.vector_store %arg4[%c0_15, %c0_16, %c0_17], %28 {strides = array<i32>} : memref<1x16x128xf32, #tpu.memory_space<vmem>>, vector<1x16x128xf32>,
    return
  }
  func.func @transform_0(%arg0: i32, %arg1: i32) -> (i32, i32, i32) {
    %c0_i32 = arith.constant 0 : i32
    %c0_i32_0 = arith.constant 0 : i32
    return %arg0, %arg1, %c0_i32 : i32, i32, i32
  }
  func.func @transform_1(%arg0: i32, %arg1: i32) -> (i32, i32, i32) {
    %c0_i32 = arith.constant 0 : i32
    %c0_i32_0 = arith.constant 0 : i32
    %c0_i32_1 = arith.constant 0 : i32
    return %arg0, %c0_i32, %c0_i32_0 : i32, i32, i32
  }
  func.func @transform_2(%arg0: i32, %arg1: i32) -> (i32, i32, i32) {
    %c0_i32 = arith.constant 0 : i32
    %c0_i32_0 = arith.constant 0 : i32
    return %arg0, %arg1, %c0_i32 : i32, i32, i32
  }
}

module attributes {stable_mosaic.version = 11 : i64} {
  func.func @kernel(%arg0: i32, %arg1: memref<32x5x128xbf16, #tpu.memory_space<vmem>>, %arg2: memref<32x5x10xf32, #tpu.memory_space<vmem>>, %arg3: memref<128x128xbf16, #tpu.memory_space<vmem>>, %arg4: memref<1x128xf32, #tpu.memory_space<vmem>>, %arg5: memref<128x64xbf16, #tpu.memory_space<vmem>>, %arg6: memref<1x64xf32, #tpu.memory_space<vmem>>, %arg7: memref<128x128xbf16, #tpu.memory_space<vmem>>, %arg8: memref<1x128xf32, #tpu.memory_space<vmem>>, %arg9: memref<10x64xf32, #tpu.memory_space<vmem>>, %arg10: memref<64x64xbf16, #tpu.memory_space<vmem>>, %arg11: memref<5x64x8xbf16, #tpu.memory_space<vmem>>, %arg12: memref<8x40xbf16, #tpu.memory_space<vmem>>, %arg13: memref<1x40xf32, #tpu.memory_space<vmem>>, %arg14: memref<8x64xf32, #tpu.memory_space<vmem>>, %arg15: memref<64x128xbf16, #tpu.memory_space<vmem>>, %arg16: memref<1x128xf32, #tpu.memory_space<vmem>>, %arg17: memref<32x128xf32, #tpu.memory_space<vmem>>, %arg18: memref<32x5x64xf32, #tpu.memory_space<vmem>>, %arg19: memref<32x128xf32, #tpu.memory_space<vmem>>) attributes {dimension_semantics = [#tpu.dimension_semantics<parallel>], iteration_bounds = array<i64: 2>, scalar_prefetch = 0 : i64, scratch_operands = 2 : i64, tpu.core_type = #tpu.core_type<tc>, window_params = [{transform_indices = @transform_0, window_bounds = array<i64: 32, 5, 128>}, {transform_indices = @transform_1, window_bounds = array<i64: 32, 5, 10>}, {pipeline_mode = #tpu.pipeline_mode<synchronous>, transform_indices = @transform_2, window_bounds = array<i64: 128, 128>}, {pipeline_mode = #tpu.pipeline_mode<synchronous>, transform_indices = @transform_3, window_bounds = array<i64: 1, 128>}, {pipeline_mode = #tpu.pipeline_mode<synchronous>, transform_indices = @transform_4, window_bounds = array<i64: 128, 64>}, {pipeline_mode = #tpu.pipeline_mode<synchronous>, transform_indices = @transform_5, window_bounds = array<i64: 1, 64>}, {pipeline_mode = #tpu.pipeline_mode<synchronous>, transform_indices = @transform_6, window_bounds = array<i64: 128, 128>}, {pipeline_mode = #tpu.pipeline_mode<synchronous>, transform_indices = @transform_7, window_bounds = array<i64: 1, 128>}, {pipeline_mode = #tpu.pipeline_mode<synchronous>, transform_indices = @transform_8, window_bounds = array<i64: 10, 64>}, {pipeline_mode = #tpu.pipeline_mode<synchronous>, transform_indices = @transform_9, window_bounds = array<i64: 64, 64>}, {pipeline_mode = #tpu.pipeline_mode<synchronous>, transform_indices = @transform_10, window_bounds = array<i64: 5, 64, 8>}, {pipeline_mode = #tpu.pipeline_mode<synchronous>, transform_indices = @transform_11, window_bounds = array<i64: 8, 40>}, {pipeline_mode = #tpu.pipeline_mode<synchronous>, transform_indices = @transform_12, window_bounds = array<i64: 1, 40>}, {pipeline_mode = #tpu.pipeline_mode<synchronous>, transform_indices = @transform_13, window_bounds = array<i64: 8, 64>}, {pipeline_mode = #tpu.pipeline_mode<synchronous>, transform_indices = @transform_14, window_bounds = array<i64: 64, 128>}, {pipeline_mode = #tpu.pipeline_mode<synchronous>, transform_indices = @transform_15, window_bounds = array<i64: 1, 128>}, {transform_indices = @transform_16, window_bounds = array<i64: 32, 128>}]} {
    %c0 = arith.constant 0 : index
    %c0_0 = arith.constant 0 : index
    %c0_1 = arith.constant 0 : index
    %0 = vector.load %arg1[%c0, %c0_0, %c0_1] : memref<32x5x128xbf16, #tpu.memory_space<vmem>>, vector<32x1x128xbf16>
    %1 = vector.shape_cast %0 : vector<32x1x128xbf16> to vector<32x128xbf16>
    %c0_2 = arith.constant 0 : index
    %c0_3 = arith.constant 0 : index
    %2 = vector.load %arg3[%c0_2, %c0_3] : memref<128x128xbf16, #tpu.memory_space<vmem>>, vector<128x128xbf16>
    %cst = arith.constant dense<0.000000e+00> : vector<32x128xf32>
    %3 = tpu.matmul %1, %2, %cst {dimension_numbers = #tpu.dot_dimension_numbers<[1], [0], [0], [1], [0, 0, 1, 1], [], []>} : vector<32x128xbf16>, vector<128x128xbf16>, vector<32x128xf32> -> vector<32x128xf32>
    %c0_4 = arith.constant 0 : index
    %c0_5 = arith.constant 0 : index
    %4 = vector.load %arg4[%c0_4, %c0_5] : memref<1x128xf32, #tpu.memory_space<vmem>>, vector<1x128xf32>
    %5 = vector.broadcast %4 : vector<1x128xf32> to vector<32x128xf32>
    %6 = arith.addf %3, %5 : vector<32x128xf32>
    %cst_6 = arith.constant 0.000000e+00 : f32
    %7 = vector.broadcast %cst_6 : f32 to vector<32x128xf32>
    %8 = arith.maximumf %6, %7 : vector<32x128xf32>
    %c0_7 = arith.constant 0 : index
    %c0_8 = arith.constant 0 : index
    %9 = vector.load %arg19[%c0_7, %c0_8] : memref<32x128xf32, #tpu.memory_space<vmem>>, vector<32x128xf32>
    tpu.vector_store %arg19[%c0_7, %c0_8], %8 {strides = array<i32>} : memref<32x128xf32, #tpu.memory_space<vmem>>, vector<32x128xf32>,
    %10 = arith.truncf %8 : vector<32x128xf32> to vector<32x128xbf16>
    %c0_9 = arith.constant 0 : index
    %c0_10 = arith.constant 0 : index
    %11 = vector.load %arg5[%c0_9, %c0_10] : memref<128x64xbf16, #tpu.memory_space<vmem>>, vector<128x64xbf16>
    %cst_11 = arith.constant dense<0.000000e+00> : vector<32x64xf32>
    %12 = tpu.matmul %10, %11, %cst_11 {dimension_numbers = #tpu.dot_dimension_numbers<[1], [0], [0], [1], [0, 0, 1, 1], [], []>} : vector<32x128xbf16>, vector<128x64xbf16>, vector<32x64xf32> -> vector<32x64xf32>
    %c0_12 = arith.constant 0 : index
    %c0_13 = arith.constant 0 : index
    %13 = vector.load %arg6[%c0_12, %c0_13] : memref<1x64xf32, #tpu.memory_space<vmem>>, vector<1x64xf32>
    %14 = vector.broadcast %13 : vector<1x64xf32> to vector<32x64xf32>
    %15 = arith.addf %12, %14 : vector<32x64xf32>
    %16 = arith.truncf %8 : vector<32x128xf32> to vector<32x128xbf16>
    %c0_14 = arith.constant 0 : index
    %c0_15 = arith.constant 0 : index
    %17 = vector.load %arg7[%c0_14, %c0_15] : memref<128x128xbf16, #tpu.memory_space<vmem>>, vector<128x128xbf16>
    %cst_16 = arith.constant dense<0.000000e+00> : vector<32x128xf32>
    %18 = tpu.matmul %16, %17, %cst_16 {dimension_numbers = #tpu.dot_dimension_numbers<[1], [0], [0], [1], [0, 0, 1, 1], [], []>} : vector<32x128xbf16>, vector<128x128xbf16>, vector<32x128xf32> -> vector<32x128xf32>
    %c0_17 = arith.constant 0 : index
    %c0_18 = arith.constant 0 : index
    %19 = vector.load %arg8[%c0_17, %c0_18] : memref<1x128xf32, #tpu.memory_space<vmem>>, vector<1x128xf32>
    %20 = vector.broadcast %19 : vector<1x128xf32> to vector<32x128xf32>
    %21 = arith.addf %18, %20 : vector<32x128xf32>
    %22 = vector.extract_strided_slice %21 {offsets = [0, 0], sizes = [32, 64], strides = [1, 1]} : vector<32x128xf32> to vector<32x64xf32>
    %23 = vector.extract_strided_slice %21 {offsets = [0, 64], sizes = [32, 64], strides = [1, 1]} : vector<32x128xf32> to vector<32x64xf32>
    %c0_19 = arith.constant 0 : index
    %c0_20 = arith.constant 0 : index
    %c0_21 = arith.constant 0 : index
    %24 = vector.load %arg2[%c0_19, %c0_20, %c0_21] : memref<32x5x10xf32, #tpu.memory_space<vmem>>, vector<32x1x10xf32>
    %25 = vector.shape_cast %24 : vector<32x1x10xf32> to vector<32x10xf32>
    %c0_22 = arith.constant 0 : index
    %c0_23 = arith.constant 0 : index
    %26 = vector.load %arg9[%c0_22, %c0_23] : memref<10x64xf32, #tpu.memory_space<vmem>>, vector<10x64xf32>
    %cst_24 = arith.constant dense<0.000000e+00> : vector<32x64xf32>
    %27 = tpu.matmul %25, %26, %cst_24 {dimension_numbers = #tpu.dot_dimension_numbers<[1], [0], [0], [1], [0, 0, 1, 1], [], []>} : vector<32x10xf32>, vector<10x64xf32>, vector<32x64xf32> -> vector<32x64xf32>
    %cst_25 = arith.constant 0.000000e+00 : f32
    %28 = vector.broadcast %cst_25 : f32 to vector<32x64xf32>
    %29 = arith.maximumf %27, %28 : vector<32x64xf32>
    %30 = arith.truncf %29 : vector<32x64xf32> to vector<32x64xbf16>
    %c0_26 = arith.constant 0 : index
    %c0_27 = arith.constant 0 : index
    %31 = vector.load %arg10[%c0_26, %c0_27] : memref<64x64xbf16, #tpu.memory_space<vmem>>, vector<64x64xbf16>
    %cst_28 = arith.constant dense<0.000000e+00> : vector<32x64xf32>
    %32 = tpu.matmul %30, %31, %cst_28 {dimension_numbers = #tpu.dot_dimension_numbers<[1], [0], [0], [1], [0, 0, 1, 1], [], []>} : vector<32x64xbf16>, vector<64x64xbf16>, vector<32x64xf32> -> vector<32x64xf32>
    %33 = arith.addf %23, %32 : vector<32x64xf32>
    %c0_29 = arith.constant 0 : index
    %c0_30 = arith.constant 0 : index
    %c0_31 = arith.constant 0 : index
    %34 = vector.load %arg18[%c0_29, %c0_30, %c0_31] : memref<32x5x64xf32, #tpu.memory_space<vmem>>, vector<32x1x64xf32>
    %35 = vector.shape_cast %34 : vector<32x1x64xf32> to vector<32x64xf32>
    %36 = vector.shape_cast %33 : vector<32x64xf32> to vector<32x1x64xf32>
    tpu.vector_store %arg18[%c0_29, %c0_30, %c0_31], %36 {strides = array<i32>} : memref<32x5x64xf32, #tpu.memory_space<vmem>>, vector<32x1x64xf32>,
    %37 = arith.subf %15, %22 : vector<32x64xf32>
    %38 = arith.addf %37, %32 : vector<32x64xf32>
    %39 = arith.truncf %38 : vector<32x64xf32> to vector<32x64xbf16>
    %c0_32 = arith.constant 0 : index
    %c0_33 = arith.constant 0 : index
    %c0_34 = arith.constant 0 : index
    %40 = vector.load %arg11[%c0_32, %c0_33, %c0_34] : memref<5x64x8xbf16, #tpu.memory_space<vmem>>, vector<1x64x8xbf16>
    %41 = vector.shape_cast %40 : vector<1x64x8xbf16> to vector<64x8xbf16>
    %cst_35 = arith.constant dense<0.000000e+00> : vector<32x8xf32>
    %42 = tpu.matmul %39, %41, %cst_35 {dimension_numbers = #tpu.dot_dimension_numbers<[1], [0], [0], [1], [0, 0, 1, 1], [], []>} : vector<32x64xbf16>, vector<64x8xbf16>, vector<32x8xf32> -> vector<32x8xf32>
    %c0_36 = arith.constant 0 : index
    %c1 = arith.constant 1 : index
    %c0_37 = arith.constant 0 : index
    %43 = vector.load %arg1[%c0_36, %c1, %c0_37] : memref<32x5x128xbf16, #tpu.memory_space<vmem>>, vector<32x1x128xbf16>
    %44 = vector.shape_cast %43 : vector<32x1x128xbf16> to vector<32x128xbf16>
    %c0_38 = arith.constant 0 : index
    %c0_39 = arith.constant 0 : index
    %45 = vector.load %arg3[%c0_38, %c0_39] : memref<128x128xbf16, #tpu.memory_space<vmem>>, vector<128x128xbf16>
    %cst_40 = arith.constant dense<0.000000e+00> : vector<32x128xf32>
    %46 = tpu.matmul %44, %45, %cst_40 {dimension_numbers = #tpu.dot_dimension_numbers<[1], [0], [0], [1], [0, 0, 1, 1], [], []>} : vector<32x128xbf16>, vector<128x128xbf16>, vector<32x128xf32> -> vector<32x128xf32>
    %c0_41 = arith.constant 0 : index
    %c0_42 = arith.constant 0 : index
    %47 = vector.load %arg4[%c0_41, %c0_42] : memref<1x128xf32, #tpu.memory_space<vmem>>, vector<1x128xf32>
    %48 = vector.broadcast %47 : vector<1x128xf32> to vector<32x128xf32>
    %49 = arith.addf %46, %48 : vector<32x128xf32>
    %cst_43 = arith.constant 0.000000e+00 : f32
    %50 = vector.broadcast %cst_43 : f32 to vector<32x128xf32>
    %51 = arith.maximumf %49, %50 : vector<32x128xf32>
    %52 = arith.truncf %51 : vector<32x128xf32> to vector<32x128xbf16>
    %c0_44 = arith.constant 0 : index
    %c0_45 = arith.constant 0 : index
    %53 = vector.load %arg7[%c0_44, %c0_45] : memref<128x128xbf16, #tpu.memory_space<vmem>>, vector<128x128xbf16>
    %cst_46 = arith.constant dense<0.000000e+00> : vector<32x128xf32>
    %54 = tpu.matmul %52, %53, %cst_46 {dimension_numbers = #tpu.dot_dimension_numbers<[1], [0], [0], [1], [0, 0, 1, 1], [], []>} : vector<32x128xbf16>, vector<128x128xbf16>, vector<32x128xf32> -> vector<32x128xf32>
    %c0_47 = arith.constant 0 : index
    %c0_48 = arith.constant 0 : index
    %55 = vector.load %arg8[%c0_47, %c0_48] : memref<1x128xf32, #tpu.memory_space<vmem>>, vector<1x128xf32>
    %56 = vector.broadcast %55 : vector<1x128xf32> to vector<32x128xf32>
    %57 = arith.addf %54, %56 : vector<32x128xf32>
    %58 = vector.extract_strided_slice %57 {offsets = [0, 0], sizes = [32, 64], strides = [1, 1]} : vector<32x128xf32> to vector<32x64xf32>
    %59 = vector.extract_strided_slice %57 {offsets = [0, 64], sizes = [32, 64], strides = [1, 1]} : vector<32x128xf32> to vector<32x64xf32>
    %c0_49 = arith.constant 0 : index
    %c1_50 = arith.constant 1 : index
    %c0_51 = arith.constant 0 : index
    %60 = vector.load %arg2[%c0_49, %c1_50, %c0_51] : memref<32x5x10xf32, #tpu.memory_space<vmem>>, vector<32x1x10xf32>
    %61 = vector.shape_cast %60 : vector<32x1x10xf32> to vector<32x10xf32>
    %c0_52 = arith.constant 0 : index
    %c0_53 = arith.constant 0 : index
    %62 = vector.load %arg9[%c0_52, %c0_53] : memref<10x64xf32, #tpu.memory_space<vmem>>, vector<10x64xf32>
    %cst_54 = arith.constant dense<0.000000e+00> : vector<32x64xf32>
    %63 = tpu.matmul %61, %62, %cst_54 {dimension_numbers = #tpu.dot_dimension_numbers<[1], [0], [0], [1], [0, 0, 1, 1], [], []>} : vector<32x10xf32>, vector<10x64xf32>, vector<32x64xf32> -> vector<32x64xf32>
    %cst_55 = arith.constant 0.000000e+00 : f32
    %64 = vector.broadcast %cst_55 : f32 to vector<32x64xf32>
    %65 = arith.maximumf %63, %64 : vector<32x64xf32>
    %66 = arith.truncf %65 : vector<32x64xf32> to vector<32x64xbf16>
    %c0_56 = arith.constant 0 : index
    %c0_57 = arith.constant 0 : index
    %67 = vector.load %arg10[%c0_56, %c0_57] : memref<64x64xbf16, #tpu.memory_space<vmem>>, vector<64x64xbf16>
    %cst_58 = arith.constant dense<0.000000e+00> : vector<32x64xf32>
    %68 = tpu.matmul %66, %67, %cst_58 {dimension_numbers = #tpu.dot_dimension_numbers<[1], [0], [0], [1], [0, 0, 1, 1], [], []>} : vector<32x64xbf16>, vector<64x64xbf16>, vector<32x64xf32> -> vector<32x64xf32>
    %69 = arith.addf %59, %68 : vector<32x64xf32>
    %c0_59 = arith.constant 0 : index
    %c1_60 = arith.constant 1 : index
    %c0_61 = arith.constant 0 : index
    %70 = vector.load %arg18[%c0_59, %c1_60, %c0_61] : memref<32x5x64xf32, #tpu.memory_space<vmem>>, vector<32x1x64xf32>
    %71 = vector.shape_cast %70 : vector<32x1x64xf32> to vector<32x64xf32>
    %72 = vector.shape_cast %69 : vector<32x64xf32> to vector<32x1x64xf32>
    tpu.vector_store %arg18[%c0_59, %c1_60, %c0_61], %72 {strides = array<i32>} : memref<32x5x64xf32, #tpu.memory_space<vmem>>, vector<32x1x64xf32>,
    %73 = arith.subf %15, %58 : vector<32x64xf32>
    %74 = arith.addf %73, %68 : vector<32x64xf32>
    %75 = arith.truncf %74 : vector<32x64xf32> to vector<32x64xbf16>
    %c1_62 = arith.constant 1 : index
    %c0_63 = arith.constant 0 : index
    %c0_64 = arith.constant 0 : index
    %76 = vector.load %arg11[%c1_62, %c0_63, %c0_64] : memref<5x64x8xbf16, #tpu.memory_space<vmem>>, vector<1x64x8xbf16>
    %77 = vector.shape_cast %76 : vector<1x64x8xbf16> to vector<64x8xbf16>
    %cst_65 = arith.constant dense<0.000000e+00> : vector<32x8xf32>
    %78 = tpu.matmul %75, %77, %cst_65 {dimension_numbers = #tpu.dot_dimension_numbers<[1], [0], [0], [1], [0, 0, 1, 1], [], []>} : vector<32x64xbf16>, vector<64x8xbf16>, vector<32x8xf32> -> vector<32x8xf32>
    %79 = arith.addf %42, %78 : vector<32x8xf32>
    %c0_66 = arith.constant 0 : index
    %c2 = arith.constant 2 : index
    %c0_67 = arith.constant 0 : index
    %80 = vector.load %arg1[%c0_66, %c2, %c0_67] : memref<32x5x128xbf16, #tpu.memory_space<vmem>>, vector<32x1x128xbf16>
    %81 = vector.shape_cast %80 : vector<32x1x128xbf16> to vector<32x128xbf16>
    %c0_68 = arith.constant 0 : index
    %c0_69 = arith.constant 0 : index
    %82 = vector.load %arg3[%c0_68, %c0_69] : memref<128x128xbf16, #tpu.memory_space<vmem>>, vector<128x128xbf16>
    %cst_70 = arith.constant dense<0.000000e+00> : vector<32x128xf32>
    %83 = tpu.matmul %81, %82, %cst_70 {dimension_numbers = #tpu.dot_dimension_numbers<[1], [0], [0], [1], [0, 0, 1, 1], [], []>} : vector<32x128xbf16>, vector<128x128xbf16>, vector<32x128xf32> -> vector<32x128xf32>
    %c0_71 = arith.constant 0 : index
    %c0_72 = arith.constant 0 : index
    %84 = vector.load %arg4[%c0_71, %c0_72] : memref<1x128xf32, #tpu.memory_space<vmem>>, vector<1x128xf32>
    %85 = vector.broadcast %84 : vector<1x128xf32> to vector<32x128xf32>
    %86 = arith.addf %83, %85 : vector<32x128xf32>
    %cst_73 = arith.constant 0.000000e+00 : f32
    %87 = vector.broadcast %cst_73 : f32 to vector<32x128xf32>
    %88 = arith.maximumf %86, %87 : vector<32x128xf32>
    %89 = arith.truncf %88 : vector<32x128xf32> to vector<32x128xbf16>
    %c0_74 = arith.constant 0 : index
    %c0_75 = arith.constant 0 : index
    %90 = vector.load %arg7[%c0_74, %c0_75] : memref<128x128xbf16, #tpu.memory_space<vmem>>, vector<128x128xbf16>
    %cst_76 = arith.constant dense<0.000000e+00> : vector<32x128xf32>
    %91 = tpu.matmul %89, %90, %cst_76 {dimension_numbers = #tpu.dot_dimension_numbers<[1], [0], [0], [1], [0, 0, 1, 1], [], []>} : vector<32x128xbf16>, vector<128x128xbf16>, vector<32x128xf32> -> vector<32x128xf32>
    %c0_77 = arith.constant 0 : index
    %c0_78 = arith.constant 0 : index
    %92 = vector.load %arg8[%c0_77, %c0_78] : memref<1x128xf32, #tpu.memory_space<vmem>>, vector<1x128xf32>
    %93 = vector.broadcast %92 : vector<1x128xf32> to vector<32x128xf32>
    %94 = arith.addf %91, %93 : vector<32x128xf32>
    %95 = vector.extract_strided_slice %94 {offsets = [0, 0], sizes = [32, 64], strides = [1, 1]} : vector<32x128xf32> to vector<32x64xf32>
    %96 = vector.extract_strided_slice %94 {offsets = [0, 64], sizes = [32, 64], strides = [1, 1]} : vector<32x128xf32> to vector<32x64xf32>
    %c0_79 = arith.constant 0 : index
    %c2_80 = arith.constant 2 : index
    %c0_81 = arith.constant 0 : index
    %97 = vector.load %arg2[%c0_79, %c2_80, %c0_81] : memref<32x5x10xf32, #tpu.memory_space<vmem>>, vector<32x1x10xf32>
    %98 = vector.shape_cast %97 : vector<32x1x10xf32> to vector<32x10xf32>
    %c0_82 = arith.constant 0 : index
    %c0_83 = arith.constant 0 : index
    %99 = vector.load %arg9[%c0_82, %c0_83] : memref<10x64xf32, #tpu.memory_space<vmem>>, vector<10x64xf32>
    %cst_84 = arith.constant dense<0.000000e+00> : vector<32x64xf32>
    %100 = tpu.matmul %98, %99, %cst_84 {dimension_numbers = #tpu.dot_dimension_numbers<[1], [0], [0], [1], [0, 0, 1, 1], [], []>} : vector<32x10xf32>, vector<10x64xf32>, vector<32x64xf32> -> vector<32x64xf32>
    %cst_85 = arith.constant 0.000000e+00 : f32
    %101 = vector.broadcast %cst_85 : f32 to vector<32x64xf32>
    %102 = arith.maximumf %100, %101 : vector<32x64xf32>
    %103 = arith.truncf %102 : vector<32x64xf32> to vector<32x64xbf16>
    %c0_86 = arith.constant 0 : index
    %c0_87 = arith.constant 0 : index
    %104 = vector.load %arg10[%c0_86, %c0_87] : memref<64x64xbf16, #tpu.memory_space<vmem>>, vector<64x64xbf16>
    %cst_88 = arith.constant dense<0.000000e+00> : vector<32x64xf32>
    %105 = tpu.matmul %103, %104, %cst_88 {dimension_numbers = #tpu.dot_dimension_numbers<[1], [0], [0], [1], [0, 0, 1, 1], [], []>} : vector<32x64xbf16>, vector<64x64xbf16>, vector<32x64xf32> -> vector<32x64xf32>
    %106 = arith.addf %96, %105 : vector<32x64xf32>
    %c0_89 = arith.constant 0 : index
    %c2_90 = arith.constant 2 : index
    %c0_91 = arith.constant 0 : index
    %107 = vector.load %arg18[%c0_89, %c2_90, %c0_91] : memref<32x5x64xf32, #tpu.memory_space<vmem>>, vector<32x1x64xf32>
    %108 = vector.shape_cast %107 : vector<32x1x64xf32> to vector<32x64xf32>
    %109 = vector.shape_cast %106 : vector<32x64xf32> to vector<32x1x64xf32>
    tpu.vector_store %arg18[%c0_89, %c2_90, %c0_91], %109 {strides = array<i32>} : memref<32x5x64xf32, #tpu.memory_space<vmem>>, vector<32x1x64xf32>,
    %110 = arith.subf %15, %95 : vector<32x64xf32>
    %111 = arith.addf %110, %105 : vector<32x64xf32>
    %112 = arith.truncf %111 : vector<32x64xf32> to vector<32x64xbf16>
    %c2_92 = arith.constant 2 : index
    %c0_93 = arith.constant 0 : index
    %c0_94 = arith.constant 0 : index
    %113 = vector.load %arg11[%c2_92, %c0_93, %c0_94] : memref<5x64x8xbf16, #tpu.memory_space<vmem>>, vector<1x64x8xbf16>
    %114 = vector.shape_cast %113 : vector<1x64x8xbf16> to vector<64x8xbf16>
    %cst_95 = arith.constant dense<0.000000e+00> : vector<32x8xf32>
    %115 = tpu.matmul %112, %114, %cst_95 {dimension_numbers = #tpu.dot_dimension_numbers<[1], [0], [0], [1], [0, 0, 1, 1], [], []>} : vector<32x64xbf16>, vector<64x8xbf16>, vector<32x8xf32> -> vector<32x8xf32>
    %116 = arith.addf %79, %115 : vector<32x8xf32>
    %c0_96 = arith.constant 0 : index
    %c3 = arith.constant 3 : index
    %c0_97 = arith.constant 0 : index
    %117 = vector.load %arg1[%c0_96, %c3, %c0_97] : memref<32x5x128xbf16, #tpu.memory_space<vmem>>, vector<32x1x128xbf16>
    %118 = vector.shape_cast %117 : vector<32x1x128xbf16> to vector<32x128xbf16>
    %c0_98 = arith.constant 0 : index
    %c0_99 = arith.constant 0 : index
    %119 = vector.load %arg3[%c0_98, %c0_99] : memref<128x128xbf16, #tpu.memory_space<vmem>>, vector<128x128xbf16>
    %cst_100 = arith.constant dense<0.000000e+00> : vector<32x128xf32>
    %120 = tpu.matmul %118, %119, %cst_100 {dimension_numbers = #tpu.dot_dimension_numbers<[1], [0], [0], [1], [0, 0, 1, 1], [], []>} : vector<32x128xbf16>, vector<128x128xbf16>, vector<32x128xf32> -> vector<32x128xf32>
    %c0_101 = arith.constant 0 : index
    %c0_102 = arith.constant 0 : index
    %121 = vector.load %arg4[%c0_101, %c0_102] : memref<1x128xf32, #tpu.memory_space<vmem>>, vector<1x128xf32>
    %122 = vector.broadcast %121 : vector<1x128xf32> to vector<32x128xf32>
    %123 = arith.addf %120, %122 : vector<32x128xf32>
    %cst_103 = arith.constant 0.000000e+00 : f32
    %124 = vector.broadcast %cst_103 : f32 to vector<32x128xf32>
    %125 = arith.maximumf %123, %124 : vector<32x128xf32>
    %126 = arith.truncf %125 : vector<32x128xf32> to vector<32x128xbf16>
    %c0_104 = arith.constant 0 : index
    %c0_105 = arith.constant 0 : index
    %127 = vector.load %arg7[%c0_104, %c0_105] : memref<128x128xbf16, #tpu.memory_space<vmem>>, vector<128x128xbf16>
    %cst_106 = arith.constant dense<0.000000e+00> : vector<32x128xf32>
    %128 = tpu.matmul %126, %127, %cst_106 {dimension_numbers = #tpu.dot_dimension_numbers<[1], [0], [0], [1], [0, 0, 1, 1], [], []>} : vector<32x128xbf16>, vector<128x128xbf16>, vector<32x128xf32> -> vector<32x128xf32>
    %c0_107 = arith.constant 0 : index
    %c0_108 = arith.constant 0 : index
    %129 = vector.load %arg8[%c0_107, %c0_108] : memref<1x128xf32, #tpu.memory_space<vmem>>, vector<1x128xf32>
    %130 = vector.broadcast %129 : vector<1x128xf32> to vector<32x128xf32>
    %131 = arith.addf %128, %130 : vector<32x128xf32>
    %132 = vector.extract_strided_slice %131 {offsets = [0, 0], sizes = [32, 64], strides = [1, 1]} : vector<32x128xf32> to vector<32x64xf32>
    %133 = vector.extract_strided_slice %131 {offsets = [0, 64], sizes = [32, 64], strides = [1, 1]} : vector<32x128xf32> to vector<32x64xf32>
    %c0_109 = arith.constant 0 : index
    %c3_110 = arith.constant 3 : index
    %c0_111 = arith.constant 0 : index
    %134 = vector.load %arg2[%c0_109, %c3_110, %c0_111] : memref<32x5x10xf32, #tpu.memory_space<vmem>>, vector<32x1x10xf32>
    %135 = vector.shape_cast %134 : vector<32x1x10xf32> to vector<32x10xf32>
    %c0_112 = arith.constant 0 : index
    %c0_113 = arith.constant 0 : index
    %136 = vector.load %arg9[%c0_112, %c0_113] : memref<10x64xf32, #tpu.memory_space<vmem>>, vector<10x64xf32>
    %cst_114 = arith.constant dense<0.000000e+00> : vector<32x64xf32>
    %137 = tpu.matmul %135, %136, %cst_114 {dimension_numbers = #tpu.dot_dimension_numbers<[1], [0], [0], [1], [0, 0, 1, 1], [], []>} : vector<32x10xf32>, vector<10x64xf32>, vector<32x64xf32> -> vector<32x64xf32>
    %cst_115 = arith.constant 0.000000e+00 : f32
    %138 = vector.broadcast %cst_115 : f32 to vector<32x64xf32>
    %139 = arith.maximumf %137, %138 : vector<32x64xf32>
    %140 = arith.truncf %139 : vector<32x64xf32> to vector<32x64xbf16>
    %c0_116 = arith.constant 0 : index
    %c0_117 = arith.constant 0 : index
    %141 = vector.load %arg10[%c0_116, %c0_117] : memref<64x64xbf16, #tpu.memory_space<vmem>>, vector<64x64xbf16>
    %cst_118 = arith.constant dense<0.000000e+00> : vector<32x64xf32>
    %142 = tpu.matmul %140, %141, %cst_118 {dimension_numbers = #tpu.dot_dimension_numbers<[1], [0], [0], [1], [0, 0, 1, 1], [], []>} : vector<32x64xbf16>, vector<64x64xbf16>, vector<32x64xf32> -> vector<32x64xf32>
    %143 = arith.addf %133, %142 : vector<32x64xf32>
    %c0_119 = arith.constant 0 : index
    %c3_120 = arith.constant 3 : index
    %c0_121 = arith.constant 0 : index
    %144 = vector.load %arg18[%c0_119, %c3_120, %c0_121] : memref<32x5x64xf32, #tpu.memory_space<vmem>>, vector<32x1x64xf32>
    %145 = vector.shape_cast %144 : vector<32x1x64xf32> to vector<32x64xf32>
    %146 = vector.shape_cast %143 : vector<32x64xf32> to vector<32x1x64xf32>
    tpu.vector_store %arg18[%c0_119, %c3_120, %c0_121], %146 {strides = array<i32>} : memref<32x5x64xf32, #tpu.memory_space<vmem>>, vector<32x1x64xf32>,
    %147 = arith.subf %15, %132 : vector<32x64xf32>
    %148 = arith.addf %147, %142 : vector<32x64xf32>
    %149 = arith.truncf %148 : vector<32x64xf32> to vector<32x64xbf16>
    %c3_122 = arith.constant 3 : index
    %c0_123 = arith.constant 0 : index
    %c0_124 = arith.constant 0 : index
    %150 = vector.load %arg11[%c3_122, %c0_123, %c0_124] : memref<5x64x8xbf16, #tpu.memory_space<vmem>>, vector<1x64x8xbf16>
    %151 = vector.shape_cast %150 : vector<1x64x8xbf16> to vector<64x8xbf16>
    %cst_125 = arith.constant dense<0.000000e+00> : vector<32x8xf32>
    %152 = tpu.matmul %149, %151, %cst_125 {dimension_numbers = #tpu.dot_dimension_numbers<[1], [0], [0], [1], [0, 0, 1, 1], [], []>} : vector<32x64xbf16>, vector<64x8xbf16>, vector<32x8xf32> -> vector<32x8xf32>
    %153 = arith.addf %116, %152 : vector<32x8xf32>
    %c0_126 = arith.constant 0 : index
    %c4 = arith.constant 4 : index
    %c0_127 = arith.constant 0 : index
    %154 = vector.load %arg1[%c0_126, %c4, %c0_127] : memref<32x5x128xbf16, #tpu.memory_space<vmem>>, vector<32x1x128xbf16>
    %155 = vector.shape_cast %154 : vector<32x1x128xbf16> to vector<32x128xbf16>
    %c0_128 = arith.constant 0 : index
    %c0_129 = arith.constant 0 : index
    %156 = vector.load %arg3[%c0_128, %c0_129] : memref<128x128xbf16, #tpu.memory_space<vmem>>, vector<128x128xbf16>
    %cst_130 = arith.constant dense<0.000000e+00> : vector<32x128xf32>
    %157 = tpu.matmul %155, %156, %cst_130 {dimension_numbers = #tpu.dot_dimension_numbers<[1], [0], [0], [1], [0, 0, 1, 1], [], []>} : vector<32x128xbf16>, vector<128x128xbf16>, vector<32x128xf32> -> vector<32x128xf32>
    %c0_131 = arith.constant 0 : index
    %c0_132 = arith.constant 0 : index
    %158 = vector.load %arg4[%c0_131, %c0_132] : memref<1x128xf32, #tpu.memory_space<vmem>>, vector<1x128xf32>
    %159 = vector.broadcast %158 : vector<1x128xf32> to vector<32x128xf32>
    %160 = arith.addf %157, %159 : vector<32x128xf32>
    %cst_133 = arith.constant 0.000000e+00 : f32
    %161 = vector.broadcast %cst_133 : f32 to vector<32x128xf32>
    %162 = arith.maximumf %160, %161 : vector<32x128xf32>
    %163 = arith.truncf %162 : vector<32x128xf32> to vector<32x128xbf16>
    %c0_134 = arith.constant 0 : index
    %c0_135 = arith.constant 0 : index
    %164 = vector.load %arg7[%c0_134, %c0_135] : memref<128x128xbf16, #tpu.memory_space<vmem>>, vector<128x128xbf16>
    %cst_136 = arith.constant dense<0.000000e+00> : vector<32x128xf32>
    %165 = tpu.matmul %163, %164, %cst_136 {dimension_numbers = #tpu.dot_dimension_numbers<[1], [0], [0], [1], [0, 0, 1, 1], [], []>} : vector<32x128xbf16>, vector<128x128xbf16>, vector<32x128xf32> -> vector<32x128xf32>
    %c0_137 = arith.constant 0 : index
    %c0_138 = arith.constant 0 : index
    %166 = vector.load %arg8[%c0_137, %c0_138] : memref<1x128xf32, #tpu.memory_space<vmem>>, vector<1x128xf32>
    %167 = vector.broadcast %166 : vector<1x128xf32> to vector<32x128xf32>
    %168 = arith.addf %165, %167 : vector<32x128xf32>
    %169 = vector.extract_strided_slice %168 {offsets = [0, 0], sizes = [32, 64], strides = [1, 1]} : vector<32x128xf32> to vector<32x64xf32>
    %170 = vector.extract_strided_slice %168 {offsets = [0, 64], sizes = [32, 64], strides = [1, 1]} : vector<32x128xf32> to vector<32x64xf32>
    %c0_139 = arith.constant 0 : index
    %c4_140 = arith.constant 4 : index
    %c0_141 = arith.constant 0 : index
    %171 = vector.load %arg2[%c0_139, %c4_140, %c0_141] : memref<32x5x10xf32, #tpu.memory_space<vmem>>, vector<32x1x10xf32>
    %172 = vector.shape_cast %171 : vector<32x1x10xf32> to vector<32x10xf32>
    %c0_142 = arith.constant 0 : index
    %c0_143 = arith.constant 0 : index
    %173 = vector.load %arg9[%c0_142, %c0_143] : memref<10x64xf32, #tpu.memory_space<vmem>>, vector<10x64xf32>
    %cst_144 = arith.constant dense<0.000000e+00> : vector<32x64xf32>
    %174 = tpu.matmul %172, %173, %cst_144 {dimension_numbers = #tpu.dot_dimension_numbers<[1], [0], [0], [1], [0, 0, 1, 1], [], []>} : vector<32x10xf32>, vector<10x64xf32>, vector<32x64xf32> -> vector<32x64xf32>
    %cst_145 = arith.constant 0.000000e+00 : f32
    %175 = vector.broadcast %cst_145 : f32 to vector<32x64xf32>
    %176 = arith.maximumf %174, %175 : vector<32x64xf32>
    %177 = arith.truncf %176 : vector<32x64xf32> to vector<32x64xbf16>
    %c0_146 = arith.constant 0 : index
    %c0_147 = arith.constant 0 : index
    %178 = vector.load %arg10[%c0_146, %c0_147] : memref<64x64xbf16, #tpu.memory_space<vmem>>, vector<64x64xbf16>
    %cst_148 = arith.constant dense<0.000000e+00> : vector<32x64xf32>
    %179 = tpu.matmul %177, %178, %cst_148 {dimension_numbers = #tpu.dot_dimension_numbers<[1], [0], [0], [1], [0, 0, 1, 1], [], []>} : vector<32x64xbf16>, vector<64x64xbf16>, vector<32x64xf32> -> vector<32x64xf32>
    %180 = arith.addf %170, %179 : vector<32x64xf32>
    %c0_149 = arith.constant 0 : index
    %c4_150 = arith.constant 4 : index
    %c0_151 = arith.constant 0 : index
    %181 = vector.load %arg18[%c0_149, %c4_150, %c0_151] : memref<32x5x64xf32, #tpu.memory_space<vmem>>, vector<32x1x64xf32>
    %182 = vector.shape_cast %181 : vector<32x1x64xf32> to vector<32x64xf32>
    %183 = vector.shape_cast %180 : vector<32x64xf32> to vector<32x1x64xf32>
    tpu.vector_store %arg18[%c0_149, %c4_150, %c0_151], %183 {strides = array<i32>} : memref<32x5x64xf32, #tpu.memory_space<vmem>>, vector<32x1x64xf32>,
    %184 = arith.subf %15, %169 : vector<32x64xf32>
    %185 = arith.addf %184, %179 : vector<32x64xf32>
    %186 = arith.truncf %185 : vector<32x64xf32> to vector<32x64xbf16>
    %c4_152 = arith.constant 4 : index
    %c0_153 = arith.constant 0 : index
    %c0_154 = arith.constant 0 : index
    %187 = vector.load %arg11[%c4_152, %c0_153, %c0_154] : memref<5x64x8xbf16, #tpu.memory_space<vmem>>, vector<1x64x8xbf16>
    %188 = vector.shape_cast %187 : vector<1x64x8xbf16> to vector<64x8xbf16>
    %cst_155 = arith.constant dense<0.000000e+00> : vector<32x8xf32>
    %189 = tpu.matmul %186, %188, %cst_155 {dimension_numbers = #tpu.dot_dimension_numbers<[1], [0], [0], [1], [0, 0, 1, 1], [], []>} : vector<32x64xbf16>, vector<64x8xbf16>, vector<32x8xf32> -> vector<32x8xf32>
    %190 = arith.addf %153, %189 : vector<32x8xf32>
    %cst_156 = arith.constant 0.000000e+00 : f32
    %191 = vector.broadcast %cst_156 : f32 to vector<32x8xf32>
    %192 = arith.maximumf %190, %191 : vector<32x8xf32>
    %193 = arith.truncf %192 : vector<32x8xf32> to vector<32x8xbf16>
    %c0_157 = arith.constant 0 : index
    %c0_158 = arith.constant 0 : index
    %194 = vector.load %arg12[%c0_157, %c0_158] : memref<8x40xbf16, #tpu.memory_space<vmem>>, vector<8x40xbf16>
    %cst_159 = arith.constant dense<0.000000e+00> : vector<32x40xf32>
    %195 = tpu.matmul %193, %194, %cst_159 {dimension_numbers = #tpu.dot_dimension_numbers<[1], [0], [0], [1], [0, 0, 1, 1], [], []>} : vector<32x8xbf16>, vector<8x40xbf16>, vector<32x40xf32> -> vector<32x40xf32>
    %c0_160 = arith.constant 0 : index
    %c0_161 = arith.constant 0 : index
    %196 = vector.load %arg13[%c0_160, %c0_161] : memref<1x40xf32, #tpu.memory_space<vmem>>, vector<1x40xf32>
    %197 = vector.broadcast %196 : vector<1x40xf32> to vector<32x40xf32>
    %198 = arith.addf %195, %197 : vector<32x40xf32>
    %199 = vector.extract_strided_slice %198 {offsets = [0, 0], sizes = [32, 8], strides = [1, 1]} : vector<32x40xf32> to vector<32x8xf32>
    %200 = vector.extract_strided_slice %198 {offsets = [0, 8], sizes = [32, 8], strides = [1, 1]} : vector<32x40xf32> to vector<32x8xf32>
    %201 = arith.maximumf %199, %200 : vector<32x8xf32>
    %202 = vector.extract_strided_slice %198 {offsets = [0, 16], sizes = [32, 8], strides = [1, 1]} : vector<32x40xf32> to vector<32x8xf32>
    %203 = arith.maximumf %201, %202 : vector<32x8xf32>
    %204 = vector.extract_strided_slice %198 {offsets = [0, 24], sizes = [32, 8], strides = [1, 1]} : vector<32x40xf32> to vector<32x8xf32>
    %205 = arith.maximumf %203, %204 : vector<32x8xf32>
    %206 = vector.extract_strided_slice %198 {offsets = [0, 32], sizes = [32, 8], strides = [1, 1]} : vector<32x40xf32> to vector<32x8xf32>
    %207 = arith.maximumf %205, %206 : vector<32x8xf32>
    %c0_162 = arith.constant 0 : index
    %c0_163 = arith.constant 0 : index
    %208 = vector.load %arg14[%c0_162, %c0_163] : memref<8x64xf32, #tpu.memory_space<vmem>>, vector<8x64xf32>
    %209 = vector.extract_strided_slice %198 {offsets = [0, 0], sizes = [32, 8], strides = [1, 1]} : vector<32x40xf32> to vector<32x8xf32>
    %210 = arith.subf %209, %207 : vector<32x8xf32>
    %211 = math.exp %210 : vector<32x8xf32>
    %cst_164 = arith.constant dense<0.000000e+00> : vector<32x64xf32>
    %212 = tpu.matmul %211, %208, %cst_164 {dimension_numbers = #tpu.dot_dimension_numbers<[1], [0], [0], [1], [0, 0, 1, 1], [], []>} : vector<32x8xf32>, vector<8x64xf32>, vector<32x64xf32> -> vector<32x64xf32>
    %c0_165 = arith.constant 0 : index
    %c0_166 = arith.constant 0 : index
    %c0_167 = arith.constant 0 : index
    %213 = vector.load %arg18[%c0_165, %c0_166, %c0_167] : memref<32x5x64xf32, #tpu.memory_space<vmem>>, vector<32x1x64xf32>
    %214 = vector.shape_cast %213 : vector<32x1x64xf32> to vector<32x64xf32>
    %215 = arith.mulf %212, %214 : vector<32x64xf32>
    %216 = vector.extract_strided_slice %198 {offsets = [0, 8], sizes = [32, 8], strides = [1, 1]} : vector<32x40xf32> to vector<32x8xf32>
    %217 = arith.subf %216, %207 : vector<32x8xf32>
    %218 = math.exp %217 : vector<32x8xf32>
    %219 = arith.addf %211, %218 : vector<32x8xf32>
    %cst_168 = arith.constant dense<0.000000e+00> : vector<32x64xf32>
    %220 = tpu.matmul %218, %208, %cst_168 {dimension_numbers = #tpu.dot_dimension_numbers<[1], [0], [0], [1], [0, 0, 1, 1], [], []>} : vector<32x8xf32>, vector<8x64xf32>, vector<32x64xf32> -> vector<32x64xf32>
    %c0_169 = arith.constant 0 : index
    %c1_170 = arith.constant 1 : index
    %c0_171 = arith.constant 0 : index
    %221 = vector.load %arg18[%c0_169, %c1_170, %c0_171] : memref<32x5x64xf32, #tpu.memory_space<vmem>>, vector<32x1x64xf32>
    %222 = vector.shape_cast %221 : vector<32x1x64xf32> to vector<32x64xf32>
    %223 = arith.mulf %220, %222 : vector<32x64xf32>
    %224 = arith.addf %215, %223 : vector<32x64xf32>
    %225 = vector.extract_strided_slice %198 {offsets = [0, 16], sizes = [32, 8], strides = [1, 1]} : vector<32x40xf32> to vector<32x8xf32>
    %226 = arith.subf %225, %207 : vector<32x8xf32>
    %227 = math.exp %226 : vector<32x8xf32>
    %228 = arith.addf %219, %227 : vector<32x8xf32>
    %cst_172 = arith.constant dense<0.000000e+00> : vector<32x64xf32>
    %229 = tpu.matmul %227, %208, %cst_172 {dimension_numbers = #tpu.dot_dimension_numbers<[1], [0], [0], [1], [0, 0, 1, 1], [], []>} : vector<32x8xf32>, vector<8x64xf32>, vector<32x64xf32> -> vector<32x64xf32>
    %c0_173 = arith.constant 0 : index
    %c2_174 = arith.constant 2 : index
    %c0_175 = arith.constant 0 : index
    %230 = vector.load %arg18[%c0_173, %c2_174, %c0_175] : memref<32x5x64xf32, #tpu.memory_space<vmem>>, vector<32x1x64xf32>
    %231 = vector.shape_cast %230 : vector<32x1x64xf32> to vector<32x64xf32>
    %232 = arith.mulf %229, %231 : vector<32x64xf32>
    %233 = arith.addf %224, %232 : vector<32x64xf32>
    %234 = vector.extract_strided_slice %198 {offsets = [0, 24], sizes = [32, 8], strides = [1, 1]} : vector<32x40xf32> to vector<32x8xf32>
    %235 = arith.subf %234, %207 : vector<32x8xf32>
    %236 = math.exp %235 : vector<32x8xf32>
    %237 = arith.addf %228, %236 : vector<32x8xf32>
    %cst_176 = arith.constant dense<0.000000e+00> : vector<32x64xf32>
    %238 = tpu.matmul %236, %208, %cst_176 {dimension_numbers = #tpu.dot_dimension_numbers<[1], [0], [0], [1], [0, 0, 1, 1], [], []>} : vector<32x8xf32>, vector<8x64xf32>, vector<32x64xf32> -> vector<32x64xf32>
    %c0_177 = arith.constant 0 : index
    %c3_178 = arith.constant 3 : index
    %c0_179 = arith.constant 0 : index
    %239 = vector.load %arg18[%c0_177, %c3_178, %c0_179] : memref<32x5x64xf32, #tpu.memory_space<vmem>>, vector<32x1x64xf32>
    %240 = vector.shape_cast %239 : vector<32x1x64xf32> to vector<32x64xf32>
    %241 = arith.mulf %238, %240 : vector<32x64xf32>
    %242 = arith.addf %233, %241 : vector<32x64xf32>
    %243 = vector.extract_strided_slice %198 {offsets = [0, 32], sizes = [32, 8], strides = [1, 1]} : vector<32x40xf32> to vector<32x8xf32>
    %244 = arith.subf %243, %207 : vector<32x8xf32>
    %245 = math.exp %244 : vector<32x8xf32>
    %246 = arith.addf %237, %245 : vector<32x8xf32>
    %cst_180 = arith.constant dense<0.000000e+00> : vector<32x64xf32>
    %247 = tpu.matmul %245, %208, %cst_180 {dimension_numbers = #tpu.dot_dimension_numbers<[1], [0], [0], [1], [0, 0, 1, 1], [], []>} : vector<32x8xf32>, vector<8x64xf32>, vector<32x64xf32> -> vector<32x64xf32>
    %c0_181 = arith.constant 0 : index
    %c4_182 = arith.constant 4 : index
    %c0_183 = arith.constant 0 : index
    %248 = vector.load %arg18[%c0_181, %c4_182, %c0_183] : memref<32x5x64xf32, #tpu.memory_space<vmem>>, vector<32x1x64xf32>
    %249 = vector.shape_cast %248 : vector<32x1x64xf32> to vector<32x64xf32>
    %250 = arith.mulf %247, %249 : vector<32x64xf32>
    %251 = arith.addf %242, %250 : vector<32x64xf32>
    %cst_184 = arith.constant dense<0.000000e+00> : vector<32x64xf32>
    %252 = tpu.matmul %246, %208, %cst_184 {dimension_numbers = #tpu.dot_dimension_numbers<[1], [0], [0], [1], [0, 0, 1, 1], [], []>} : vector<32x8xf32>, vector<8x64xf32>, vector<32x64xf32> -> vector<32x64xf32>
    %253 = tpu.reciprocal %252 {approx = true} : vector<32x64xf32> -> vector<32x64xf32>
    %254 = arith.mulf %251, %253 : vector<32x64xf32>
    %cst_185 = arith.constant 0.000000e+00 : f32
    %255 = vector.broadcast %cst_185 : f32 to vector<32x64xf32>
    %256 = arith.maximumf %254, %255 : vector<32x64xf32>
    %257 = arith.truncf %256 : vector<32x64xf32> to vector<32x64xbf16>
    %c0_186 = arith.constant 0 : index
    %c0_187 = arith.constant 0 : index
    %258 = vector.load %arg15[%c0_186, %c0_187] : memref<64x128xbf16, #tpu.memory_space<vmem>>, vector<64x128xbf16>
    %cst_188 = arith.constant dense<0.000000e+00> : vector<32x128xf32>
    %259 = tpu.matmul %257, %258, %cst_188 {dimension_numbers = #tpu.dot_dimension_numbers<[1], [0], [0], [1], [0, 0, 1, 1], [], []>} : vector<32x64xbf16>, vector<64x128xbf16>, vector<32x128xf32> -> vector<32x128xf32>
    %c0_189 = arith.constant 0 : index
    %c0_190 = arith.constant 0 : index
    %260 = vector.load %arg16[%c0_189, %c0_190] : memref<1x128xf32, #tpu.memory_space<vmem>>, vector<1x128xf32>
    %261 = vector.broadcast %260 : vector<1x128xf32> to vector<32x128xf32>
    %262 = arith.addf %259, %261 : vector<32x128xf32>
    %c0_191 = arith.constant 0 : index
    %c0_192 = arith.constant 0 : index
    %263 = vector.load %arg19[%c0_191, %c0_192] : memref<32x128xf32, #tpu.memory_space<vmem>>, vector<32x128xf32>
    %264 = arith.addf %262, %263 : vector<32x128xf32>
    %c0_193 = arith.constant 0 : index
    %c0_194 = arith.constant 0 : index
    %265 = vector.load %arg17[%c0_193, %c0_194] : memref<32x128xf32, #tpu.memory_space<vmem>>, vector<32x128xf32>
    tpu.vector_store %arg17[%c0_193, %c0_194], %264 {strides = array<i32>} : memref<32x128xf32, #tpu.memory_space<vmem>>, vector<32x128xf32>,
    return
  }
  func.func @transform_0(%arg0: i32) -> (i32, i32, i32) {
    %c0_i32 = arith.constant 0 : i32
    %c0_i32_0 = arith.constant 0 : i32
    %c0_i32_1 = arith.constant 0 : i32
    return %arg0, %c0_i32, %c0_i32_0 : i32, i32, i32
  }
  func.func @transform_1(%arg0: i32) -> (i32, i32, i32) {
    %c0_i32 = arith.constant 0 : i32
    %c0_i32_0 = arith.constant 0 : i32
    %c0_i32_1 = arith.constant 0 : i32
    return %arg0, %c0_i32, %c0_i32_0 : i32, i32, i32
  }
  func.func @transform_2(%arg0: i32) -> (i32, i32) {
    %c0_i32 = arith.constant 0 : i32
    %c0_i32_0 = arith.constant 0 : i32
    %c0_i32_1 = arith.constant 0 : i32
    return %c0_i32, %c0_i32_0 : i32, i32
  }
  func.func @transform_3(%arg0: i32) -> (i32, i32) {
    %c0_i32 = arith.constant 0 : i32
    %c0_i32_0 = arith.constant 0 : i32
    %c0_i32_1 = arith.constant 0 : i32
    return %c0_i32, %c0_i32_0 : i32, i32
  }
  func.func @transform_4(%arg0: i32) -> (i32, i32) {
    %c0_i32 = arith.constant 0 : i32
    %c0_i32_0 = arith.constant 0 : i32
    %c0_i32_1 = arith.constant 0 : i32
    return %c0_i32, %c0_i32_0 : i32, i32
  }
  func.func @transform_5(%arg0: i32) -> (i32, i32) {
    %c0_i32 = arith.constant 0 : i32
    %c0_i32_0 = arith.constant 0 : i32
    %c0_i32_1 = arith.constant 0 : i32
    return %c0_i32, %c0_i32_0 : i32, i32
  }
  func.func @transform_6(%arg0: i32) -> (i32, i32) {
    %c0_i32 = arith.constant 0 : i32
    %c0_i32_0 = arith.constant 0 : i32
    %c0_i32_1 = arith.constant 0 : i32
    return %c0_i32, %c0_i32_0 : i32, i32
  }
  func.func @transform_7(%arg0: i32) -> (i32, i32) {
    %c0_i32 = arith.constant 0 : i32
    %c0_i32_0 = arith.constant 0 : i32
    %c0_i32_1 = arith.constant 0 : i32
    return %c0_i32, %c0_i32_0 : i32, i32
  }
  func.func @transform_8(%arg0: i32) -> (i32, i32) {
    %c0_i32 = arith.constant 0 : i32
    %c0_i32_0 = arith.constant 0 : i32
    %c0_i32_1 = arith.constant 0 : i32
    return %c0_i32, %c0_i32_0 : i32, i32
  }
  func.func @transform_9(%arg0: i32) -> (i32, i32) {
    %c0_i32 = arith.constant 0 : i32
    %c0_i32_0 = arith.constant 0 : i32
    %c0_i32_1 = arith.constant 0 : i32
    return %c0_i32, %c0_i32_0 : i32, i32
  }
  func.func @transform_10(%arg0: i32) -> (i32, i32, i32) {
    %c0_i32 = arith.constant 0 : i32
    %c0_i32_0 = arith.constant 0 : i32
    %c0_i32_1 = arith.constant 0 : i32
    %c0_i32_2 = arith.constant 0 : i32
    return %c0_i32, %c0_i32_0, %c0_i32_1 : i32, i32, i32
  }
  func.func @transform_11(%arg0: i32) -> (i32, i32) {
    %c0_i32 = arith.constant 0 : i32
    %c0_i32_0 = arith.constant 0 : i32
    %c0_i32_1 = arith.constant 0 : i32
    return %c0_i32, %c0_i32_0 : i32, i32
  }
  func.func @transform_12(%arg0: i32) -> (i32, i32) {
    %c0_i32 = arith.constant 0 : i32
    %c0_i32_0 = arith.constant 0 : i32
    %c0_i32_1 = arith.constant 0 : i32
    return %c0_i32, %c0_i32_0 : i32, i32
  }
  func.func @transform_13(%arg0: i32) -> (i32, i32) {
    %c0_i32 = arith.constant 0 : i32
    %c0_i32_0 = arith.constant 0 : i32
    %c0_i32_1 = arith.constant 0 : i32
    return %c0_i32, %c0_i32_0 : i32, i32
  }
  func.func @transform_14(%arg0: i32) -> (i32, i32) {
    %c0_i32 = arith.constant 0 : i32
    %c0_i32_0 = arith.constant 0 : i32
    %c0_i32_1 = arith.constant 0 : i32
    return %c0_i32, %c0_i32_0 : i32, i32
  }
  func.func @transform_15(%arg0: i32) -> (i32, i32) {
    %c0_i32 = arith.constant 0 : i32
    %c0_i32_0 = arith.constant 0 : i32
    %c0_i32_1 = arith.constant 0 : i32
    return %c0_i32, %c0_i32_0 : i32, i32
  }
  func.func @transform_16(%arg0: i32) -> (i32, i32) {
    %c0_i32 = arith.constant 0 : i32
    %c0_i32_0 = arith.constant 0 : i32
    return %arg0, %c0_i32 : i32, i32
  }
}

module attributes {stable_mosaic.version = 11 : i64} {
  func.func @kernel(%arg0: i32, %arg1: memref<16x5x256xbf16, #tpu.memory_space<vmem>>, %arg2: memref<16x5x10xf32, #tpu.memory_space<vmem>>, %arg3: memref<256x128xbf16, #tpu.memory_space<vmem>>, %arg4: memref<1x128xf32, #tpu.memory_space<vmem>>, %arg5: memref<128x128xbf16, #tpu.memory_space<vmem>>, %arg6: memref<1x128xf32, #tpu.memory_space<vmem>>, %arg7: memref<128x256xbf16, #tpu.memory_space<vmem>>, %arg8: memref<1x256xf32, #tpu.memory_space<vmem>>, %arg9: memref<10x128xf32, #tpu.memory_space<vmem>>, %arg10: memref<128x128xbf16, #tpu.memory_space<vmem>>, %arg11: memref<5x128x16xbf16, #tpu.memory_space<vmem>>, %arg12: memref<16x80xbf16, #tpu.memory_space<vmem>>, %arg13: memref<1x80xf32, #tpu.memory_space<vmem>>, %arg14: memref<16x128xf32, #tpu.memory_space<vmem>>, %arg15: memref<128x128xbf16, #tpu.memory_space<vmem>>, %arg16: memref<1x128xf32, #tpu.memory_space<vmem>>, %arg17: memref<128x64xbf16, #tpu.memory_space<vmem>>, %arg18: memref<1x64xf32, #tpu.memory_space<vmem>>, %arg19: memref<64x32xbf16, #tpu.memory_space<vmem>>, %arg20: memref<1x32xf32, #tpu.memory_space<vmem>>, %arg21: memref<16x32xf32, #tpu.memory_space<vmem>>, %arg22: memref<16x5x128xf32, #tpu.memory_space<vmem>>, %arg23: memref<16x128xf32, #tpu.memory_space<vmem>>) attributes {dimension_semantics = [#tpu.dimension_semantics<parallel>], iteration_bounds = array<i64: 2>, scalar_prefetch = 0 : i64, scratch_operands = 2 : i64, tpu.core_type = #tpu.core_type<tc>, window_params = [{transform_indices = @transform_0, window_bounds = array<i64: 16, 5, 256>}, {transform_indices = @transform_1, window_bounds = array<i64: 16, 5, 10>}, {pipeline_mode = #tpu.pipeline_mode<synchronous>, transform_indices = @transform_2, window_bounds = array<i64: 256, 128>}, {pipeline_mode = #tpu.pipeline_mode<synchronous>, transform_indices = @transform_3, window_bounds = array<i64: 1, 128>}, {pipeline_mode = #tpu.pipeline_mode<synchronous>, transform_indices = @transform_4, window_bounds = array<i64: 128, 128>}, {pipeline_mode = #tpu.pipeline_mode<synchronous>, transform_indices = @transform_5, window_bounds = array<i64: 1, 128>}, {pipeline_mode = #tpu.pipeline_mode<synchronous>, transform_indices = @transform_6, window_bounds = array<i64: 128, 256>}, {pipeline_mode = #tpu.pipeline_mode<synchronous>, transform_indices = @transform_7, window_bounds = array<i64: 1, 256>}, {pipeline_mode = #tpu.pipeline_mode<synchronous>, transform_indices = @transform_8, window_bounds = array<i64: 10, 128>}, {pipeline_mode = #tpu.pipeline_mode<synchronous>, transform_indices = @transform_9, window_bounds = array<i64: 128, 128>}, {pipeline_mode = #tpu.pipeline_mode<synchronous>, transform_indices = @transform_10, window_bounds = array<i64: 5, 128, 16>}, {pipeline_mode = #tpu.pipeline_mode<synchronous>, transform_indices = @transform_11, window_bounds = array<i64: 16, 80>}, {pipeline_mode = #tpu.pipeline_mode<synchronous>, transform_indices = @transform_12, window_bounds = array<i64: 1, 80>}, {pipeline_mode = #tpu.pipeline_mode<synchronous>, transform_indices = @transform_13, window_bounds = array<i64: 16, 128>}, {pipeline_mode = #tpu.pipeline_mode<synchronous>, transform_indices = @transform_14, window_bounds = array<i64: 128, 128>}, {pipeline_mode = #tpu.pipeline_mode<synchronous>, transform_indices = @transform_15, window_bounds = array<i64: 1, 128>}, {pipeline_mode = #tpu.pipeline_mode<synchronous>, transform_indices = @transform_16, window_bounds = array<i64: 128, 64>}, {pipeline_mode = #tpu.pipeline_mode<synchronous>, transform_indices = @transform_17, window_bounds = array<i64: 1, 64>}, {pipeline_mode = #tpu.pipeline_mode<synchronous>, transform_indices = @transform_18, window_bounds = array<i64: 64, 32>}, {pipeline_mode = #tpu.pipeline_mode<synchronous>, transform_indices = @transform_19, window_bounds = array<i64: 1, 32>}, {transform_indices = @transform_20, window_bounds = array<i64: 16, 32>}]} {
    %c0 = arith.constant 0 : index
    %c0_0 = arith.constant 0 : index
    %c0_1 = arith.constant 0 : index
    %0 = vector.load %arg1[%c0, %c0_0, %c0_1] : memref<16x5x256xbf16, #tpu.memory_space<vmem>>, vector<16x1x256xbf16>
    %1 = vector.shape_cast %0 : vector<16x1x256xbf16> to vector<16x256xbf16>
    %c0_2 = arith.constant 0 : index
    %c0_3 = arith.constant 0 : index
    %2 = vector.load %arg3[%c0_2, %c0_3] : memref<256x128xbf16, #tpu.memory_space<vmem>>, vector<256x128xbf16>
    %cst = arith.constant dense<0.000000e+00> : vector<16x128xf32>
    %3 = tpu.matmul %1, %2, %cst {dimension_numbers = #tpu.dot_dimension_numbers<[1], [0], [0], [1], [0, 0, 1, 1], [], []>} : vector<16x256xbf16>, vector<256x128xbf16>, vector<16x128xf32> -> vector<16x128xf32>
    %c0_4 = arith.constant 0 : index
    %c0_5 = arith.constant 0 : index
    %4 = vector.load %arg4[%c0_4, %c0_5] : memref<1x128xf32, #tpu.memory_space<vmem>>, vector<1x128xf32>
    %5 = vector.broadcast %4 : vector<1x128xf32> to vector<16x128xf32>
    %6 = arith.addf %3, %5 : vector<16x128xf32>
    %cst_6 = arith.constant 0.000000e+00 : f32
    %7 = vector.broadcast %cst_6 : f32 to vector<16x128xf32>
    %8 = arith.maximumf %6, %7 : vector<16x128xf32>
    %c0_7 = arith.constant 0 : index
    %c0_8 = arith.constant 0 : index
    %9 = vector.load %arg23[%c0_7, %c0_8] : memref<16x128xf32, #tpu.memory_space<vmem>>, vector<16x128xf32>
    tpu.vector_store %arg23[%c0_7, %c0_8], %8 {strides = array<i32>} : memref<16x128xf32, #tpu.memory_space<vmem>>, vector<16x128xf32>,
    %10 = arith.truncf %8 : vector<16x128xf32> to vector<16x128xbf16>
    %c0_9 = arith.constant 0 : index
    %c0_10 = arith.constant 0 : index
    %11 = vector.load %arg5[%c0_9, %c0_10] : memref<128x128xbf16, #tpu.memory_space<vmem>>, vector<128x128xbf16>
    %cst_11 = arith.constant dense<0.000000e+00> : vector<16x128xf32>
    %12 = tpu.matmul %10, %11, %cst_11 {dimension_numbers = #tpu.dot_dimension_numbers<[1], [0], [0], [1], [0, 0, 1, 1], [], []>} : vector<16x128xbf16>, vector<128x128xbf16>, vector<16x128xf32> -> vector<16x128xf32>
    %c0_12 = arith.constant 0 : index
    %c0_13 = arith.constant 0 : index
    %13 = vector.load %arg6[%c0_12, %c0_13] : memref<1x128xf32, #tpu.memory_space<vmem>>, vector<1x128xf32>
    %14 = vector.broadcast %13 : vector<1x128xf32> to vector<16x128xf32>
    %15 = arith.addf %12, %14 : vector<16x128xf32>
    %16 = arith.truncf %8 : vector<16x128xf32> to vector<16x128xbf16>
    %c0_14 = arith.constant 0 : index
    %c0_15 = arith.constant 0 : index
    %17 = vector.load %arg7[%c0_14, %c0_15] : memref<128x256xbf16, #tpu.memory_space<vmem>>, vector<128x256xbf16>
    %cst_16 = arith.constant dense<0.000000e+00> : vector<16x256xf32>
    %18 = tpu.matmul %16, %17, %cst_16 {dimension_numbers = #tpu.dot_dimension_numbers<[1], [0], [0], [1], [0, 0, 1, 1], [], []>} : vector<16x128xbf16>, vector<128x256xbf16>, vector<16x256xf32> -> vector<16x256xf32>
    %c0_17 = arith.constant 0 : index
    %c0_18 = arith.constant 0 : index
    %19 = vector.load %arg8[%c0_17, %c0_18] : memref<1x256xf32, #tpu.memory_space<vmem>>, vector<1x256xf32>
    %20 = vector.broadcast %19 : vector<1x256xf32> to vector<16x256xf32>
    %21 = arith.addf %18, %20 : vector<16x256xf32>
    %22 = vector.extract_strided_slice %21 {offsets = [0, 0], sizes = [16, 128], strides = [1, 1]} : vector<16x256xf32> to vector<16x128xf32>
    %23 = vector.extract_strided_slice %21 {offsets = [0, 128], sizes = [16, 128], strides = [1, 1]} : vector<16x256xf32> to vector<16x128xf32>
    %c0_19 = arith.constant 0 : index
    %c0_20 = arith.constant 0 : index
    %c0_21 = arith.constant 0 : index
    %24 = vector.load %arg2[%c0_19, %c0_20, %c0_21] : memref<16x5x10xf32, #tpu.memory_space<vmem>>, vector<16x1x10xf32>
    %25 = vector.shape_cast %24 : vector<16x1x10xf32> to vector<16x10xf32>
    %c0_22 = arith.constant 0 : index
    %c0_23 = arith.constant 0 : index
    %26 = vector.load %arg9[%c0_22, %c0_23] : memref<10x128xf32, #tpu.memory_space<vmem>>, vector<10x128xf32>
    %cst_24 = arith.constant dense<0.000000e+00> : vector<16x128xf32>
    %27 = tpu.matmul %25, %26, %cst_24 {dimension_numbers = #tpu.dot_dimension_numbers<[1], [0], [0], [1], [0, 0, 1, 1], [], []>} : vector<16x10xf32>, vector<10x128xf32>, vector<16x128xf32> -> vector<16x128xf32>
    %cst_25 = arith.constant 0.000000e+00 : f32
    %28 = vector.broadcast %cst_25 : f32 to vector<16x128xf32>
    %29 = arith.maximumf %27, %28 : vector<16x128xf32>
    %30 = arith.truncf %29 : vector<16x128xf32> to vector<16x128xbf16>
    %c0_26 = arith.constant 0 : index
    %c0_27 = arith.constant 0 : index
    %31 = vector.load %arg10[%c0_26, %c0_27] : memref<128x128xbf16, #tpu.memory_space<vmem>>, vector<128x128xbf16>
    %cst_28 = arith.constant dense<0.000000e+00> : vector<16x128xf32>
    %32 = tpu.matmul %30, %31, %cst_28 {dimension_numbers = #tpu.dot_dimension_numbers<[1], [0], [0], [1], [0, 0, 1, 1], [], []>} : vector<16x128xbf16>, vector<128x128xbf16>, vector<16x128xf32> -> vector<16x128xf32>
    %33 = arith.addf %23, %32 : vector<16x128xf32>
    %c0_29 = arith.constant 0 : index
    %c0_30 = arith.constant 0 : index
    %c0_31 = arith.constant 0 : index
    %34 = vector.load %arg22[%c0_29, %c0_30, %c0_31] : memref<16x5x128xf32, #tpu.memory_space<vmem>>, vector<16x1x128xf32>
    %35 = vector.shape_cast %34 : vector<16x1x128xf32> to vector<16x128xf32>
    %36 = vector.shape_cast %33 : vector<16x128xf32> to vector<16x1x128xf32>
    tpu.vector_store %arg22[%c0_29, %c0_30, %c0_31], %36 {strides = array<i32>} : memref<16x5x128xf32, #tpu.memory_space<vmem>>, vector<16x1x128xf32>,
    %37 = arith.subf %15, %22 : vector<16x128xf32>
    %38 = arith.addf %37, %32 : vector<16x128xf32>
    %39 = arith.truncf %38 : vector<16x128xf32> to vector<16x128xbf16>
    %c0_32 = arith.constant 0 : index
    %c0_33 = arith.constant 0 : index
    %c0_34 = arith.constant 0 : index
    %40 = vector.load %arg11[%c0_32, %c0_33, %c0_34] : memref<5x128x16xbf16, #tpu.memory_space<vmem>>, vector<1x128x16xbf16>
    %41 = vector.shape_cast %40 : vector<1x128x16xbf16> to vector<128x16xbf16>
    %cst_35 = arith.constant dense<0.000000e+00> : vector<16x16xf32>
    %42 = tpu.matmul %39, %41, %cst_35 {dimension_numbers = #tpu.dot_dimension_numbers<[1], [0], [0], [1], [0, 0, 1, 1], [], []>} : vector<16x128xbf16>, vector<128x16xbf16>, vector<16x16xf32> -> vector<16x16xf32>
    %c0_36 = arith.constant 0 : index
    %c1 = arith.constant 1 : index
    %c0_37 = arith.constant 0 : index
    %43 = vector.load %arg1[%c0_36, %c1, %c0_37] : memref<16x5x256xbf16, #tpu.memory_space<vmem>>, vector<16x1x256xbf16>
    %44 = vector.shape_cast %43 : vector<16x1x256xbf16> to vector<16x256xbf16>
    %c0_38 = arith.constant 0 : index
    %c0_39 = arith.constant 0 : index
    %45 = vector.load %arg3[%c0_38, %c0_39] : memref<256x128xbf16, #tpu.memory_space<vmem>>, vector<256x128xbf16>
    %cst_40 = arith.constant dense<0.000000e+00> : vector<16x128xf32>
    %46 = tpu.matmul %44, %45, %cst_40 {dimension_numbers = #tpu.dot_dimension_numbers<[1], [0], [0], [1], [0, 0, 1, 1], [], []>} : vector<16x256xbf16>, vector<256x128xbf16>, vector<16x128xf32> -> vector<16x128xf32>
    %c0_41 = arith.constant 0 : index
    %c0_42 = arith.constant 0 : index
    %47 = vector.load %arg4[%c0_41, %c0_42] : memref<1x128xf32, #tpu.memory_space<vmem>>, vector<1x128xf32>
    %48 = vector.broadcast %47 : vector<1x128xf32> to vector<16x128xf32>
    %49 = arith.addf %46, %48 : vector<16x128xf32>
    %cst_43 = arith.constant 0.000000e+00 : f32
    %50 = vector.broadcast %cst_43 : f32 to vector<16x128xf32>
    %51 = arith.maximumf %49, %50 : vector<16x128xf32>
    %52 = arith.truncf %51 : vector<16x128xf32> to vector<16x128xbf16>
    %c0_44 = arith.constant 0 : index
    %c0_45 = arith.constant 0 : index
    %53 = vector.load %arg7[%c0_44, %c0_45] : memref<128x256xbf16, #tpu.memory_space<vmem>>, vector<128x256xbf16>
    %cst_46 = arith.constant dense<0.000000e+00> : vector<16x256xf32>
    %54 = tpu.matmul %52, %53, %cst_46 {dimension_numbers = #tpu.dot_dimension_numbers<[1], [0], [0], [1], [0, 0, 1, 1], [], []>} : vector<16x128xbf16>, vector<128x256xbf16>, vector<16x256xf32> -> vector<16x256xf32>
    %c0_47 = arith.constant 0 : index
    %c0_48 = arith.constant 0 : index
    %55 = vector.load %arg8[%c0_47, %c0_48] : memref<1x256xf32, #tpu.memory_space<vmem>>, vector<1x256xf32>
    %56 = vector.broadcast %55 : vector<1x256xf32> to vector<16x256xf32>
    %57 = arith.addf %54, %56 : vector<16x256xf32>
    %58 = vector.extract_strided_slice %57 {offsets = [0, 0], sizes = [16, 128], strides = [1, 1]} : vector<16x256xf32> to vector<16x128xf32>
    %59 = vector.extract_strided_slice %57 {offsets = [0, 128], sizes = [16, 128], strides = [1, 1]} : vector<16x256xf32> to vector<16x128xf32>
    %c0_49 = arith.constant 0 : index
    %c1_50 = arith.constant 1 : index
    %c0_51 = arith.constant 0 : index
    %60 = vector.load %arg2[%c0_49, %c1_50, %c0_51] : memref<16x5x10xf32, #tpu.memory_space<vmem>>, vector<16x1x10xf32>
    %61 = vector.shape_cast %60 : vector<16x1x10xf32> to vector<16x10xf32>
    %c0_52 = arith.constant 0 : index
    %c0_53 = arith.constant 0 : index
    %62 = vector.load %arg9[%c0_52, %c0_53] : memref<10x128xf32, #tpu.memory_space<vmem>>, vector<10x128xf32>
    %cst_54 = arith.constant dense<0.000000e+00> : vector<16x128xf32>
    %63 = tpu.matmul %61, %62, %cst_54 {dimension_numbers = #tpu.dot_dimension_numbers<[1], [0], [0], [1], [0, 0, 1, 1], [], []>} : vector<16x10xf32>, vector<10x128xf32>, vector<16x128xf32> -> vector<16x128xf32>
    %cst_55 = arith.constant 0.000000e+00 : f32
    %64 = vector.broadcast %cst_55 : f32 to vector<16x128xf32>
    %65 = arith.maximumf %63, %64 : vector<16x128xf32>
    %66 = arith.truncf %65 : vector<16x128xf32> to vector<16x128xbf16>
    %c0_56 = arith.constant 0 : index
    %c0_57 = arith.constant 0 : index
    %67 = vector.load %arg10[%c0_56, %c0_57] : memref<128x128xbf16, #tpu.memory_space<vmem>>, vector<128x128xbf16>
    %cst_58 = arith.constant dense<0.000000e+00> : vector<16x128xf32>
    %68 = tpu.matmul %66, %67, %cst_58 {dimension_numbers = #tpu.dot_dimension_numbers<[1], [0], [0], [1], [0, 0, 1, 1], [], []>} : vector<16x128xbf16>, vector<128x128xbf16>, vector<16x128xf32> -> vector<16x128xf32>
    %69 = arith.addf %59, %68 : vector<16x128xf32>
    %c0_59 = arith.constant 0 : index
    %c1_60 = arith.constant 1 : index
    %c0_61 = arith.constant 0 : index
    %70 = vector.load %arg22[%c0_59, %c1_60, %c0_61] : memref<16x5x128xf32, #tpu.memory_space<vmem>>, vector<16x1x128xf32>
    %71 = vector.shape_cast %70 : vector<16x1x128xf32> to vector<16x128xf32>
    %72 = vector.shape_cast %69 : vector<16x128xf32> to vector<16x1x128xf32>
    tpu.vector_store %arg22[%c0_59, %c1_60, %c0_61], %72 {strides = array<i32>} : memref<16x5x128xf32, #tpu.memory_space<vmem>>, vector<16x1x128xf32>,
    %73 = arith.subf %15, %58 : vector<16x128xf32>
    %74 = arith.addf %73, %68 : vector<16x128xf32>
    %75 = arith.truncf %74 : vector<16x128xf32> to vector<16x128xbf16>
    %c1_62 = arith.constant 1 : index
    %c0_63 = arith.constant 0 : index
    %c0_64 = arith.constant 0 : index
    %76 = vector.load %arg11[%c1_62, %c0_63, %c0_64] : memref<5x128x16xbf16, #tpu.memory_space<vmem>>, vector<1x128x16xbf16>
    %77 = vector.shape_cast %76 : vector<1x128x16xbf16> to vector<128x16xbf16>
    %cst_65 = arith.constant dense<0.000000e+00> : vector<16x16xf32>
    %78 = tpu.matmul %75, %77, %cst_65 {dimension_numbers = #tpu.dot_dimension_numbers<[1], [0], [0], [1], [0, 0, 1, 1], [], []>} : vector<16x128xbf16>, vector<128x16xbf16>, vector<16x16xf32> -> vector<16x16xf32>
    %79 = arith.addf %42, %78 : vector<16x16xf32>
    %c0_66 = arith.constant 0 : index
    %c2 = arith.constant 2 : index
    %c0_67 = arith.constant 0 : index
    %80 = vector.load %arg1[%c0_66, %c2, %c0_67] : memref<16x5x256xbf16, #tpu.memory_space<vmem>>, vector<16x1x256xbf16>
    %81 = vector.shape_cast %80 : vector<16x1x256xbf16> to vector<16x256xbf16>
    %c0_68 = arith.constant 0 : index
    %c0_69 = arith.constant 0 : index
    %82 = vector.load %arg3[%c0_68, %c0_69] : memref<256x128xbf16, #tpu.memory_space<vmem>>, vector<256x128xbf16>
    %cst_70 = arith.constant dense<0.000000e+00> : vector<16x128xf32>
    %83 = tpu.matmul %81, %82, %cst_70 {dimension_numbers = #tpu.dot_dimension_numbers<[1], [0], [0], [1], [0, 0, 1, 1], [], []>} : vector<16x256xbf16>, vector<256x128xbf16>, vector<16x128xf32> -> vector<16x128xf32>
    %c0_71 = arith.constant 0 : index
    %c0_72 = arith.constant 0 : index
    %84 = vector.load %arg4[%c0_71, %c0_72] : memref<1x128xf32, #tpu.memory_space<vmem>>, vector<1x128xf32>
    %85 = vector.broadcast %84 : vector<1x128xf32> to vector<16x128xf32>
    %86 = arith.addf %83, %85 : vector<16x128xf32>
    %cst_73 = arith.constant 0.000000e+00 : f32
    %87 = vector.broadcast %cst_73 : f32 to vector<16x128xf32>
    %88 = arith.maximumf %86, %87 : vector<16x128xf32>
    %89 = arith.truncf %88 : vector<16x128xf32> to vector<16x128xbf16>
    %c0_74 = arith.constant 0 : index
    %c0_75 = arith.constant 0 : index
    %90 = vector.load %arg7[%c0_74, %c0_75] : memref<128x256xbf16, #tpu.memory_space<vmem>>, vector<128x256xbf16>
    %cst_76 = arith.constant dense<0.000000e+00> : vector<16x256xf32>
    %91 = tpu.matmul %89, %90, %cst_76 {dimension_numbers = #tpu.dot_dimension_numbers<[1], [0], [0], [1], [0, 0, 1, 1], [], []>} : vector<16x128xbf16>, vector<128x256xbf16>, vector<16x256xf32> -> vector<16x256xf32>
    %c0_77 = arith.constant 0 : index
    %c0_78 = arith.constant 0 : index
    %92 = vector.load %arg8[%c0_77, %c0_78] : memref<1x256xf32, #tpu.memory_space<vmem>>, vector<1x256xf32>
    %93 = vector.broadcast %92 : vector<1x256xf32> to vector<16x256xf32>
    %94 = arith.addf %91, %93 : vector<16x256xf32>
    %95 = vector.extract_strided_slice %94 {offsets = [0, 0], sizes = [16, 128], strides = [1, 1]} : vector<16x256xf32> to vector<16x128xf32>
    %96 = vector.extract_strided_slice %94 {offsets = [0, 128], sizes = [16, 128], strides = [1, 1]} : vector<16x256xf32> to vector<16x128xf32>
    %c0_79 = arith.constant 0 : index
    %c2_80 = arith.constant 2 : index
    %c0_81 = arith.constant 0 : index
    %97 = vector.load %arg2[%c0_79, %c2_80, %c0_81] : memref<16x5x10xf32, #tpu.memory_space<vmem>>, vector<16x1x10xf32>
    %98 = vector.shape_cast %97 : vector<16x1x10xf32> to vector<16x10xf32>
    %c0_82 = arith.constant 0 : index
    %c0_83 = arith.constant 0 : index
    %99 = vector.load %arg9[%c0_82, %c0_83] : memref<10x128xf32, #tpu.memory_space<vmem>>, vector<10x128xf32>
    %cst_84 = arith.constant dense<0.000000e+00> : vector<16x128xf32>
    %100 = tpu.matmul %98, %99, %cst_84 {dimension_numbers = #tpu.dot_dimension_numbers<[1], [0], [0], [1], [0, 0, 1, 1], [], []>} : vector<16x10xf32>, vector<10x128xf32>, vector<16x128xf32> -> vector<16x128xf32>
    %cst_85 = arith.constant 0.000000e+00 : f32
    %101 = vector.broadcast %cst_85 : f32 to vector<16x128xf32>
    %102 = arith.maximumf %100, %101 : vector<16x128xf32>
    %103 = arith.truncf %102 : vector<16x128xf32> to vector<16x128xbf16>
    %c0_86 = arith.constant 0 : index
    %c0_87 = arith.constant 0 : index
    %104 = vector.load %arg10[%c0_86, %c0_87] : memref<128x128xbf16, #tpu.memory_space<vmem>>, vector<128x128xbf16>
    %cst_88 = arith.constant dense<0.000000e+00> : vector<16x128xf32>
    %105 = tpu.matmul %103, %104, %cst_88 {dimension_numbers = #tpu.dot_dimension_numbers<[1], [0], [0], [1], [0, 0, 1, 1], [], []>} : vector<16x128xbf16>, vector<128x128xbf16>, vector<16x128xf32> -> vector<16x128xf32>
    %106 = arith.addf %96, %105 : vector<16x128xf32>
    %c0_89 = arith.constant 0 : index
    %c2_90 = arith.constant 2 : index
    %c0_91 = arith.constant 0 : index
    %107 = vector.load %arg22[%c0_89, %c2_90, %c0_91] : memref<16x5x128xf32, #tpu.memory_space<vmem>>, vector<16x1x128xf32>
    %108 = vector.shape_cast %107 : vector<16x1x128xf32> to vector<16x128xf32>
    %109 = vector.shape_cast %106 : vector<16x128xf32> to vector<16x1x128xf32>
    tpu.vector_store %arg22[%c0_89, %c2_90, %c0_91], %109 {strides = array<i32>} : memref<16x5x128xf32, #tpu.memory_space<vmem>>, vector<16x1x128xf32>,
    %110 = arith.subf %15, %95 : vector<16x128xf32>
    %111 = arith.addf %110, %105 : vector<16x128xf32>
    %112 = arith.truncf %111 : vector<16x128xf32> to vector<16x128xbf16>
    %c2_92 = arith.constant 2 : index
    %c0_93 = arith.constant 0 : index
    %c0_94 = arith.constant 0 : index
    %113 = vector.load %arg11[%c2_92, %c0_93, %c0_94] : memref<5x128x16xbf16, #tpu.memory_space<vmem>>, vector<1x128x16xbf16>
    %114 = vector.shape_cast %113 : vector<1x128x16xbf16> to vector<128x16xbf16>
    %cst_95 = arith.constant dense<0.000000e+00> : vector<16x16xf32>
    %115 = tpu.matmul %112, %114, %cst_95 {dimension_numbers = #tpu.dot_dimension_numbers<[1], [0], [0], [1], [0, 0, 1, 1], [], []>} : vector<16x128xbf16>, vector<128x16xbf16>, vector<16x16xf32> -> vector<16x16xf32>
    %116 = arith.addf %79, %115 : vector<16x16xf32>
    %c0_96 = arith.constant 0 : index
    %c3 = arith.constant 3 : index
    %c0_97 = arith.constant 0 : index
    %117 = vector.load %arg1[%c0_96, %c3, %c0_97] : memref<16x5x256xbf16, #tpu.memory_space<vmem>>, vector<16x1x256xbf16>
    %118 = vector.shape_cast %117 : vector<16x1x256xbf16> to vector<16x256xbf16>
    %c0_98 = arith.constant 0 : index
    %c0_99 = arith.constant 0 : index
    %119 = vector.load %arg3[%c0_98, %c0_99] : memref<256x128xbf16, #tpu.memory_space<vmem>>, vector<256x128xbf16>
    %cst_100 = arith.constant dense<0.000000e+00> : vector<16x128xf32>
    %120 = tpu.matmul %118, %119, %cst_100 {dimension_numbers = #tpu.dot_dimension_numbers<[1], [0], [0], [1], [0, 0, 1, 1], [], []>} : vector<16x256xbf16>, vector<256x128xbf16>, vector<16x128xf32> -> vector<16x128xf32>
    %c0_101 = arith.constant 0 : index
    %c0_102 = arith.constant 0 : index
    %121 = vector.load %arg4[%c0_101, %c0_102] : memref<1x128xf32, #tpu.memory_space<vmem>>, vector<1x128xf32>
    %122 = vector.broadcast %121 : vector<1x128xf32> to vector<16x128xf32>
    %123 = arith.addf %120, %122 : vector<16x128xf32>
    %cst_103 = arith.constant 0.000000e+00 : f32
    %124 = vector.broadcast %cst_103 : f32 to vector<16x128xf32>
    %125 = arith.maximumf %123, %124 : vector<16x128xf32>
    %126 = arith.truncf %125 : vector<16x128xf32> to vector<16x128xbf16>
    %c0_104 = arith.constant 0 : index
    %c0_105 = arith.constant 0 : index
    %127 = vector.load %arg7[%c0_104, %c0_105] : memref<128x256xbf16, #tpu.memory_space<vmem>>, vector<128x256xbf16>
    %cst_106 = arith.constant dense<0.000000e+00> : vector<16x256xf32>
    %128 = tpu.matmul %126, %127, %cst_106 {dimension_numbers = #tpu.dot_dimension_numbers<[1], [0], [0], [1], [0, 0, 1, 1], [], []>} : vector<16x128xbf16>, vector<128x256xbf16>, vector<16x256xf32> -> vector<16x256xf32>
    %c0_107 = arith.constant 0 : index
    %c0_108 = arith.constant 0 : index
    %129 = vector.load %arg8[%c0_107, %c0_108] : memref<1x256xf32, #tpu.memory_space<vmem>>, vector<1x256xf32>
    %130 = vector.broadcast %129 : vector<1x256xf32> to vector<16x256xf32>
    %131 = arith.addf %128, %130 : vector<16x256xf32>
    %132 = vector.extract_strided_slice %131 {offsets = [0, 0], sizes = [16, 128], strides = [1, 1]} : vector<16x256xf32> to vector<16x128xf32>
    %133 = vector.extract_strided_slice %131 {offsets = [0, 128], sizes = [16, 128], strides = [1, 1]} : vector<16x256xf32> to vector<16x128xf32>
    %c0_109 = arith.constant 0 : index
    %c3_110 = arith.constant 3 : index
    %c0_111 = arith.constant 0 : index
    %134 = vector.load %arg2[%c0_109, %c3_110, %c0_111] : memref<16x5x10xf32, #tpu.memory_space<vmem>>, vector<16x1x10xf32>
    %135 = vector.shape_cast %134 : vector<16x1x10xf32> to vector<16x10xf32>
    %c0_112 = arith.constant 0 : index
    %c0_113 = arith.constant 0 : index
    %136 = vector.load %arg9[%c0_112, %c0_113] : memref<10x128xf32, #tpu.memory_space<vmem>>, vector<10x128xf32>
    %cst_114 = arith.constant dense<0.000000e+00> : vector<16x128xf32>
    %137 = tpu.matmul %135, %136, %cst_114 {dimension_numbers = #tpu.dot_dimension_numbers<[1], [0], [0], [1], [0, 0, 1, 1], [], []>} : vector<16x10xf32>, vector<10x128xf32>, vector<16x128xf32> -> vector<16x128xf32>
    %cst_115 = arith.constant 0.000000e+00 : f32
    %138 = vector.broadcast %cst_115 : f32 to vector<16x128xf32>
    %139 = arith.maximumf %137, %138 : vector<16x128xf32>
    %140 = arith.truncf %139 : vector<16x128xf32> to vector<16x128xbf16>
    %c0_116 = arith.constant 0 : index
    %c0_117 = arith.constant 0 : index
    %141 = vector.load %arg10[%c0_116, %c0_117] : memref<128x128xbf16, #tpu.memory_space<vmem>>, vector<128x128xbf16>
    %cst_118 = arith.constant dense<0.000000e+00> : vector<16x128xf32>
    %142 = tpu.matmul %140, %141, %cst_118 {dimension_numbers = #tpu.dot_dimension_numbers<[1], [0], [0], [1], [0, 0, 1, 1], [], []>} : vector<16x128xbf16>, vector<128x128xbf16>, vector<16x128xf32> -> vector<16x128xf32>
    %143 = arith.addf %133, %142 : vector<16x128xf32>
    %c0_119 = arith.constant 0 : index
    %c3_120 = arith.constant 3 : index
    %c0_121 = arith.constant 0 : index
    %144 = vector.load %arg22[%c0_119, %c3_120, %c0_121] : memref<16x5x128xf32, #tpu.memory_space<vmem>>, vector<16x1x128xf32>
    %145 = vector.shape_cast %144 : vector<16x1x128xf32> to vector<16x128xf32>
    %146 = vector.shape_cast %143 : vector<16x128xf32> to vector<16x1x128xf32>
    tpu.vector_store %arg22[%c0_119, %c3_120, %c0_121], %146 {strides = array<i32>} : memref<16x5x128xf32, #tpu.memory_space<vmem>>, vector<16x1x128xf32>,
    %147 = arith.subf %15, %132 : vector<16x128xf32>
    %148 = arith.addf %147, %142 : vector<16x128xf32>
    %149 = arith.truncf %148 : vector<16x128xf32> to vector<16x128xbf16>
    %c3_122 = arith.constant 3 : index
    %c0_123 = arith.constant 0 : index
    %c0_124 = arith.constant 0 : index
    %150 = vector.load %arg11[%c3_122, %c0_123, %c0_124] : memref<5x128x16xbf16, #tpu.memory_space<vmem>>, vector<1x128x16xbf16>
    %151 = vector.shape_cast %150 : vector<1x128x16xbf16> to vector<128x16xbf16>
    %cst_125 = arith.constant dense<0.000000e+00> : vector<16x16xf32>
    %152 = tpu.matmul %149, %151, %cst_125 {dimension_numbers = #tpu.dot_dimension_numbers<[1], [0], [0], [1], [0, 0, 1, 1], [], []>} : vector<16x128xbf16>, vector<128x16xbf16>, vector<16x16xf32> -> vector<16x16xf32>
    %153 = arith.addf %116, %152 : vector<16x16xf32>
    %c0_126 = arith.constant 0 : index
    %c4 = arith.constant 4 : index
    %c0_127 = arith.constant 0 : index
    %154 = vector.load %arg1[%c0_126, %c4, %c0_127] : memref<16x5x256xbf16, #tpu.memory_space<vmem>>, vector<16x1x256xbf16>
    %155 = vector.shape_cast %154 : vector<16x1x256xbf16> to vector<16x256xbf16>
    %c0_128 = arith.constant 0 : index
    %c0_129 = arith.constant 0 : index
    %156 = vector.load %arg3[%c0_128, %c0_129] : memref<256x128xbf16, #tpu.memory_space<vmem>>, vector<256x128xbf16>
    %cst_130 = arith.constant dense<0.000000e+00> : vector<16x128xf32>
    %157 = tpu.matmul %155, %156, %cst_130 {dimension_numbers = #tpu.dot_dimension_numbers<[1], [0], [0], [1], [0, 0, 1, 1], [], []>} : vector<16x256xbf16>, vector<256x128xbf16>, vector<16x128xf32> -> vector<16x128xf32>
    %c0_131 = arith.constant 0 : index
    %c0_132 = arith.constant 0 : index
    %158 = vector.load %arg4[%c0_131, %c0_132] : memref<1x128xf32, #tpu.memory_space<vmem>>, vector<1x128xf32>
    %159 = vector.broadcast %158 : vector<1x128xf32> to vector<16x128xf32>
    %160 = arith.addf %157, %159 : vector<16x128xf32>
    %cst_133 = arith.constant 0.000000e+00 : f32
    %161 = vector.broadcast %cst_133 : f32 to vector<16x128xf32>
    %162 = arith.maximumf %160, %161 : vector<16x128xf32>
    %163 = arith.truncf %162 : vector<16x128xf32> to vector<16x128xbf16>
    %c0_134 = arith.constant 0 : index
    %c0_135 = arith.constant 0 : index
    %164 = vector.load %arg7[%c0_134, %c0_135] : memref<128x256xbf16, #tpu.memory_space<vmem>>, vector<128x256xbf16>
    %cst_136 = arith.constant dense<0.000000e+00> : vector<16x256xf32>
    %165 = tpu.matmul %163, %164, %cst_136 {dimension_numbers = #tpu.dot_dimension_numbers<[1], [0], [0], [1], [0, 0, 1, 1], [], []>} : vector<16x128xbf16>, vector<128x256xbf16>, vector<16x256xf32> -> vector<16x256xf32>
    %c0_137 = arith.constant 0 : index
    %c0_138 = arith.constant 0 : index
    %166 = vector.load %arg8[%c0_137, %c0_138] : memref<1x256xf32, #tpu.memory_space<vmem>>, vector<1x256xf32>
    %167 = vector.broadcast %166 : vector<1x256xf32> to vector<16x256xf32>
    %168 = arith.addf %165, %167 : vector<16x256xf32>
    %169 = vector.extract_strided_slice %168 {offsets = [0, 0], sizes = [16, 128], strides = [1, 1]} : vector<16x256xf32> to vector<16x128xf32>
    %170 = vector.extract_strided_slice %168 {offsets = [0, 128], sizes = [16, 128], strides = [1, 1]} : vector<16x256xf32> to vector<16x128xf32>
    %c0_139 = arith.constant 0 : index
    %c4_140 = arith.constant 4 : index
    %c0_141 = arith.constant 0 : index
    %171 = vector.load %arg2[%c0_139, %c4_140, %c0_141] : memref<16x5x10xf32, #tpu.memory_space<vmem>>, vector<16x1x10xf32>
    %172 = vector.shape_cast %171 : vector<16x1x10xf32> to vector<16x10xf32>
    %c0_142 = arith.constant 0 : index
    %c0_143 = arith.constant 0 : index
    %173 = vector.load %arg9[%c0_142, %c0_143] : memref<10x128xf32, #tpu.memory_space<vmem>>, vector<10x128xf32>
    %cst_144 = arith.constant dense<0.000000e+00> : vector<16x128xf32>
    %174 = tpu.matmul %172, %173, %cst_144 {dimension_numbers = #tpu.dot_dimension_numbers<[1], [0], [0], [1], [0, 0, 1, 1], [], []>} : vector<16x10xf32>, vector<10x128xf32>, vector<16x128xf32> -> vector<16x128xf32>
    %cst_145 = arith.constant 0.000000e+00 : f32
    %175 = vector.broadcast %cst_145 : f32 to vector<16x128xf32>
    %176 = arith.maximumf %174, %175 : vector<16x128xf32>
    %177 = arith.truncf %176 : vector<16x128xf32> to vector<16x128xbf16>
    %c0_146 = arith.constant 0 : index
    %c0_147 = arith.constant 0 : index
    %178 = vector.load %arg10[%c0_146, %c0_147] : memref<128x128xbf16, #tpu.memory_space<vmem>>, vector<128x128xbf16>
    %cst_148 = arith.constant dense<0.000000e+00> : vector<16x128xf32>
    %179 = tpu.matmul %177, %178, %cst_148 {dimension_numbers = #tpu.dot_dimension_numbers<[1], [0], [0], [1], [0, 0, 1, 1], [], []>} : vector<16x128xbf16>, vector<128x128xbf16>, vector<16x128xf32> -> vector<16x128xf32>
    %180 = arith.addf %170, %179 : vector<16x128xf32>
    %c0_149 = arith.constant 0 : index
    %c4_150 = arith.constant 4 : index
    %c0_151 = arith.constant 0 : index
    %181 = vector.load %arg22[%c0_149, %c4_150, %c0_151] : memref<16x5x128xf32, #tpu.memory_space<vmem>>, vector<16x1x128xf32>
    %182 = vector.shape_cast %181 : vector<16x1x128xf32> to vector<16x128xf32>
    %183 = vector.shape_cast %180 : vector<16x128xf32> to vector<16x1x128xf32>
    tpu.vector_store %arg22[%c0_149, %c4_150, %c0_151], %183 {strides = array<i32>} : memref<16x5x128xf32, #tpu.memory_space<vmem>>, vector<16x1x128xf32>,
    %184 = arith.subf %15, %169 : vector<16x128xf32>
    %185 = arith.addf %184, %179 : vector<16x128xf32>
    %186 = arith.truncf %185 : vector<16x128xf32> to vector<16x128xbf16>
    %c4_152 = arith.constant 4 : index
    %c0_153 = arith.constant 0 : index
    %c0_154 = arith.constant 0 : index
    %187 = vector.load %arg11[%c4_152, %c0_153, %c0_154] : memref<5x128x16xbf16, #tpu.memory_space<vmem>>, vector<1x128x16xbf16>
    %188 = vector.shape_cast %187 : vector<1x128x16xbf16> to vector<128x16xbf16>
    %cst_155 = arith.constant dense<0.000000e+00> : vector<16x16xf32>
    %189 = tpu.matmul %186, %188, %cst_155 {dimension_numbers = #tpu.dot_dimension_numbers<[1], [0], [0], [1], [0, 0, 1, 1], [], []>} : vector<16x128xbf16>, vector<128x16xbf16>, vector<16x16xf32> -> vector<16x16xf32>
    %190 = arith.addf %153, %189 : vector<16x16xf32>
    %cst_156 = arith.constant 0.000000e+00 : f32
    %191 = vector.broadcast %cst_156 : f32 to vector<16x16xf32>
    %192 = arith.maximumf %190, %191 : vector<16x16xf32>
    %193 = arith.truncf %192 : vector<16x16xf32> to vector<16x16xbf16>
    %c0_157 = arith.constant 0 : index
    %c0_158 = arith.constant 0 : index
    %194 = vector.load %arg12[%c0_157, %c0_158] : memref<16x80xbf16, #tpu.memory_space<vmem>>, vector<16x80xbf16>
    %cst_159 = arith.constant dense<0.000000e+00> : vector<16x80xf32>
    %195 = tpu.matmul %193, %194, %cst_159 {dimension_numbers = #tpu.dot_dimension_numbers<[1], [0], [0], [1], [0, 0, 1, 1], [], []>} : vector<16x16xbf16>, vector<16x80xbf16>, vector<16x80xf32> -> vector<16x80xf32>
    %c0_160 = arith.constant 0 : index
    %c0_161 = arith.constant 0 : index
    %196 = vector.load %arg13[%c0_160, %c0_161] : memref<1x80xf32, #tpu.memory_space<vmem>>, vector<1x80xf32>
    %197 = vector.broadcast %196 : vector<1x80xf32> to vector<16x80xf32>
    %198 = arith.addf %195, %197 : vector<16x80xf32>
    %199 = vector.extract_strided_slice %198 {offsets = [0, 0], sizes = [16, 16], strides = [1, 1]} : vector<16x80xf32> to vector<16x16xf32>
    %200 = vector.extract_strided_slice %198 {offsets = [0, 16], sizes = [16, 16], strides = [1, 1]} : vector<16x80xf32> to vector<16x16xf32>
    %201 = arith.maximumf %199, %200 : vector<16x16xf32>
    %202 = vector.extract_strided_slice %198 {offsets = [0, 32], sizes = [16, 16], strides = [1, 1]} : vector<16x80xf32> to vector<16x16xf32>
    %203 = arith.maximumf %201, %202 : vector<16x16xf32>
    %204 = vector.extract_strided_slice %198 {offsets = [0, 48], sizes = [16, 16], strides = [1, 1]} : vector<16x80xf32> to vector<16x16xf32>
    %205 = arith.maximumf %203, %204 : vector<16x16xf32>
    %206 = vector.extract_strided_slice %198 {offsets = [0, 64], sizes = [16, 16], strides = [1, 1]} : vector<16x80xf32> to vector<16x16xf32>
    %207 = arith.maximumf %205, %206 : vector<16x16xf32>
    %c0_162 = arith.constant 0 : index
    %c0_163 = arith.constant 0 : index
    %208 = vector.load %arg14[%c0_162, %c0_163] : memref<16x128xf32, #tpu.memory_space<vmem>>, vector<16x128xf32>
    %209 = vector.extract_strided_slice %198 {offsets = [0, 0], sizes = [16, 16], strides = [1, 1]} : vector<16x80xf32> to vector<16x16xf32>
    %210 = arith.subf %209, %207 : vector<16x16xf32>
    %211 = math.exp %210 : vector<16x16xf32>
    %cst_164 = arith.constant dense<0.000000e+00> : vector<16x128xf32>
    %212 = tpu.matmul %211, %208, %cst_164 {dimension_numbers = #tpu.dot_dimension_numbers<[1], [0], [0], [1], [0, 0, 1, 1], [], []>} : vector<16x16xf32>, vector<16x128xf32>, vector<16x128xf32> -> vector<16x128xf32>
    %c0_165 = arith.constant 0 : index
    %c0_166 = arith.constant 0 : index
    %c0_167 = arith.constant 0 : index
    %213 = vector.load %arg22[%c0_165, %c0_166, %c0_167] : memref<16x5x128xf32, #tpu.memory_space<vmem>>, vector<16x1x128xf32>
    %214 = vector.shape_cast %213 : vector<16x1x128xf32> to vector<16x128xf32>
    %215 = arith.mulf %212, %214 : vector<16x128xf32>
    %216 = vector.extract_strided_slice %198 {offsets = [0, 16], sizes = [16, 16], strides = [1, 1]} : vector<16x80xf32> to vector<16x16xf32>
    %217 = arith.subf %216, %207 : vector<16x16xf32>
    %218 = math.exp %217 : vector<16x16xf32>
    %219 = arith.addf %211, %218 : vector<16x16xf32>
    %cst_168 = arith.constant dense<0.000000e+00> : vector<16x128xf32>
    %220 = tpu.matmul %218, %208, %cst_168 {dimension_numbers = #tpu.dot_dimension_numbers<[1], [0], [0], [1], [0, 0, 1, 1], [], []>} : vector<16x16xf32>, vector<16x128xf32>, vector<16x128xf32> -> vector<16x128xf32>
    %c0_169 = arith.constant 0 : index
    %c1_170 = arith.constant 1 : index
    %c0_171 = arith.constant 0 : index
    %221 = vector.load %arg22[%c0_169, %c1_170, %c0_171] : memref<16x5x128xf32, #tpu.memory_space<vmem>>, vector<16x1x128xf32>
    %222 = vector.shape_cast %221 : vector<16x1x128xf32> to vector<16x128xf32>
    %223 = arith.mulf %220, %222 : vector<16x128xf32>
    %224 = arith.addf %215, %223 : vector<16x128xf32>
    %225 = vector.extract_strided_slice %198 {offsets = [0, 32], sizes = [16, 16], strides = [1, 1]} : vector<16x80xf32> to vector<16x16xf32>
    %226 = arith.subf %225, %207 : vector<16x16xf32>
    %227 = math.exp %226 : vector<16x16xf32>
    %228 = arith.addf %219, %227 : vector<16x16xf32>
    %cst_172 = arith.constant dense<0.000000e+00> : vector<16x128xf32>
    %229 = tpu.matmul %227, %208, %cst_172 {dimension_numbers = #tpu.dot_dimension_numbers<[1], [0], [0], [1], [0, 0, 1, 1], [], []>} : vector<16x16xf32>, vector<16x128xf32>, vector<16x128xf32> -> vector<16x128xf32>
    %c0_173 = arith.constant 0 : index
    %c2_174 = arith.constant 2 : index
    %c0_175 = arith.constant 0 : index
    %230 = vector.load %arg22[%c0_173, %c2_174, %c0_175] : memref<16x5x128xf32, #tpu.memory_space<vmem>>, vector<16x1x128xf32>
    %231 = vector.shape_cast %230 : vector<16x1x128xf32> to vector<16x128xf32>
    %232 = arith.mulf %229, %231 : vector<16x128xf32>
    %233 = arith.addf %224, %232 : vector<16x128xf32>
    %234 = vector.extract_strided_slice %198 {offsets = [0, 48], sizes = [16, 16], strides = [1, 1]} : vector<16x80xf32> to vector<16x16xf32>
    %235 = arith.subf %234, %207 : vector<16x16xf32>
    %236 = math.exp %235 : vector<16x16xf32>
    %237 = arith.addf %228, %236 : vector<16x16xf32>
    %cst_176 = arith.constant dense<0.000000e+00> : vector<16x128xf32>
    %238 = tpu.matmul %236, %208, %cst_176 {dimension_numbers = #tpu.dot_dimension_numbers<[1], [0], [0], [1], [0, 0, 1, 1], [], []>} : vector<16x16xf32>, vector<16x128xf32>, vector<16x128xf32> -> vector<16x128xf32>
    %c0_177 = arith.constant 0 : index
    %c3_178 = arith.constant 3 : index
    %c0_179 = arith.constant 0 : index
    %239 = vector.load %arg22[%c0_177, %c3_178, %c0_179] : memref<16x5x128xf32, #tpu.memory_space<vmem>>, vector<16x1x128xf32>
    %240 = vector.shape_cast %239 : vector<16x1x128xf32> to vector<16x128xf32>
    %241 = arith.mulf %238, %240 : vector<16x128xf32>
    %242 = arith.addf %233, %241 : vector<16x128xf32>
    %243 = vector.extract_strided_slice %198 {offsets = [0, 64], sizes = [16, 16], strides = [1, 1]} : vector<16x80xf32> to vector<16x16xf32>
    %244 = arith.subf %243, %207 : vector<16x16xf32>
    %245 = math.exp %244 : vector<16x16xf32>
    %246 = arith.addf %237, %245 : vector<16x16xf32>
    %cst_180 = arith.constant dense<0.000000e+00> : vector<16x128xf32>
    %247 = tpu.matmul %245, %208, %cst_180 {dimension_numbers = #tpu.dot_dimension_numbers<[1], [0], [0], [1], [0, 0, 1, 1], [], []>} : vector<16x16xf32>, vector<16x128xf32>, vector<16x128xf32> -> vector<16x128xf32>
    %c0_181 = arith.constant 0 : index
    %c4_182 = arith.constant 4 : index
    %c0_183 = arith.constant 0 : index
    %248 = vector.load %arg22[%c0_181, %c4_182, %c0_183] : memref<16x5x128xf32, #tpu.memory_space<vmem>>, vector<16x1x128xf32>
    %249 = vector.shape_cast %248 : vector<16x1x128xf32> to vector<16x128xf32>
    %250 = arith.mulf %247, %249 : vector<16x128xf32>
    %251 = arith.addf %242, %250 : vector<16x128xf32>
    %cst_184 = arith.constant dense<0.000000e+00> : vector<16x128xf32>
    %252 = tpu.matmul %246, %208, %cst_184 {dimension_numbers = #tpu.dot_dimension_numbers<[1], [0], [0], [1], [0, 0, 1, 1], [], []>} : vector<16x16xf32>, vector<16x128xf32>, vector<16x128xf32> -> vector<16x128xf32>
    %253 = tpu.reciprocal %252 {approx = true} : vector<16x128xf32> -> vector<16x128xf32>
    %254 = arith.mulf %251, %253 : vector<16x128xf32>
    %cst_185 = arith.constant 0.000000e+00 : f32
    %255 = vector.broadcast %cst_185 : f32 to vector<16x128xf32>
    %256 = arith.maximumf %254, %255 : vector<16x128xf32>
    %257 = arith.truncf %256 : vector<16x128xf32> to vector<16x128xbf16>
    %c0_186 = arith.constant 0 : index
    %c0_187 = arith.constant 0 : index
    %258 = vector.load %arg15[%c0_186, %c0_187] : memref<128x128xbf16, #tpu.memory_space<vmem>>, vector<128x128xbf16>
    %cst_188 = arith.constant dense<0.000000e+00> : vector<16x128xf32>
    %259 = tpu.matmul %257, %258, %cst_188 {dimension_numbers = #tpu.dot_dimension_numbers<[1], [0], [0], [1], [0, 0, 1, 1], [], []>} : vector<16x128xbf16>, vector<128x128xbf16>, vector<16x128xf32> -> vector<16x128xf32>
    %c0_189 = arith.constant 0 : index
    %c0_190 = arith.constant 0 : index
    %260 = vector.load %arg16[%c0_189, %c0_190] : memref<1x128xf32, #tpu.memory_space<vmem>>, vector<1x128xf32>
    %261 = vector.broadcast %260 : vector<1x128xf32> to vector<16x128xf32>
    %262 = arith.addf %259, %261 : vector<16x128xf32>
    %c0_191 = arith.constant 0 : index
    %c0_192 = arith.constant 0 : index
    %263 = vector.load %arg23[%c0_191, %c0_192] : memref<16x128xf32, #tpu.memory_space<vmem>>, vector<16x128xf32>
    %264 = arith.addf %262, %263 : vector<16x128xf32>
    %265 = arith.truncf %264 : vector<16x128xf32> to vector<16x128xbf16>
    %c0_193 = arith.constant 0 : index
    %c0_194 = arith.constant 0 : index
    %266 = vector.load %arg17[%c0_193, %c0_194] : memref<128x64xbf16, #tpu.memory_space<vmem>>, vector<128x64xbf16>
    %cst_195 = arith.constant dense<0.000000e+00> : vector<16x64xf32>
    %267 = tpu.matmul %265, %266, %cst_195 {dimension_numbers = #tpu.dot_dimension_numbers<[1], [0], [0], [1], [0, 0, 1, 1], [], []>} : vector<16x128xbf16>, vector<128x64xbf16>, vector<16x64xf32> -> vector<16x64xf32>
    %c0_196 = arith.constant 0 : index
    %c0_197 = arith.constant 0 : index
    %268 = vector.load %arg18[%c0_196, %c0_197] : memref<1x64xf32, #tpu.memory_space<vmem>>, vector<1x64xf32>
    %269 = vector.broadcast %268 : vector<1x64xf32> to vector<16x64xf32>
    %270 = arith.addf %267, %269 : vector<16x64xf32>
    %cst_198 = arith.constant 0.000000e+00 : f32
    %271 = vector.broadcast %cst_198 : f32 to vector<16x64xf32>
    %272 = arith.maximumf %270, %271 : vector<16x64xf32>
    %273 = arith.truncf %272 : vector<16x64xf32> to vector<16x64xbf16>
    %c0_199 = arith.constant 0 : index
    %c0_200 = arith.constant 0 : index
    %274 = vector.load %arg19[%c0_199, %c0_200] : memref<64x32xbf16, #tpu.memory_space<vmem>>, vector<64x32xbf16>
    %cst_201 = arith.constant dense<0.000000e+00> : vector<16x32xf32>
    %275 = tpu.matmul %273, %274, %cst_201 {dimension_numbers = #tpu.dot_dimension_numbers<[1], [0], [0], [1], [0, 0, 1, 1], [], []>} : vector<16x64xbf16>, vector<64x32xbf16>, vector<16x32xf32> -> vector<16x32xf32>
    %c0_202 = arith.constant 0 : index
    %c0_203 = arith.constant 0 : index
    %276 = vector.load %arg20[%c0_202, %c0_203] : memref<1x32xf32, #tpu.memory_space<vmem>>, vector<1x32xf32>
    %277 = vector.broadcast %276 : vector<1x32xf32> to vector<16x32xf32>
    %278 = arith.addf %275, %277 : vector<16x32xf32>
    %cst_204 = arith.constant 0.000000e+00 : f32
    %279 = vector.broadcast %cst_204 : f32 to vector<16x32xf32>
    %280 = arith.maximumf %278, %279 : vector<16x32xf32>
    %c0_205 = arith.constant 0 : index
    %c0_206 = arith.constant 0 : index
    %281 = vector.load %arg21[%c0_205, %c0_206] : memref<16x32xf32, #tpu.memory_space<vmem>>, vector<16x32xf32>
    tpu.vector_store %arg21[%c0_205, %c0_206], %280 {strides = array<i32>} : memref<16x32xf32, #tpu.memory_space<vmem>>, vector<16x32xf32>,
    return
  }
  func.func @transform_0(%arg0: i32) -> (i32, i32, i32) {
    %c0_i32 = arith.constant 0 : i32
    %c0_i32_0 = arith.constant 0 : i32
    %c0_i32_1 = arith.constant 0 : i32
    return %arg0, %c0_i32, %c0_i32_0 : i32, i32, i32
  }
  func.func @transform_1(%arg0: i32) -> (i32, i32, i32) {
    %c0_i32 = arith.constant 0 : i32
    %c0_i32_0 = arith.constant 0 : i32
    %c0_i32_1 = arith.constant 0 : i32
    return %arg0, %c0_i32, %c0_i32_0 : i32, i32, i32
  }
  func.func @transform_2(%arg0: i32) -> (i32, i32) {
    %c0_i32 = arith.constant 0 : i32
    %c0_i32_0 = arith.constant 0 : i32
    %c0_i32_1 = arith.constant 0 : i32
    return %c0_i32, %c0_i32_0 : i32, i32
  }
  func.func @transform_3(%arg0: i32) -> (i32, i32) {
    %c0_i32 = arith.constant 0 : i32
    %c0_i32_0 = arith.constant 0 : i32
    %c0_i32_1 = arith.constant 0 : i32
    return %c0_i32, %c0_i32_0 : i32, i32
  }
  func.func @transform_4(%arg0: i32) -> (i32, i32) {
    %c0_i32 = arith.constant 0 : i32
    %c0_i32_0 = arith.constant 0 : i32
    %c0_i32_1 = arith.constant 0 : i32
    return %c0_i32, %c0_i32_0 : i32, i32
  }
  func.func @transform_5(%arg0: i32) -> (i32, i32) {
    %c0_i32 = arith.constant 0 : i32
    %c0_i32_0 = arith.constant 0 : i32
    %c0_i32_1 = arith.constant 0 : i32
    return %c0_i32, %c0_i32_0 : i32, i32
  }
  func.func @transform_6(%arg0: i32) -> (i32, i32) {
    %c0_i32 = arith.constant 0 : i32
    %c0_i32_0 = arith.constant 0 : i32
    %c0_i32_1 = arith.constant 0 : i32
    return %c0_i32, %c0_i32_0 : i32, i32
  }
  func.func @transform_7(%arg0: i32) -> (i32, i32) {
    %c0_i32 = arith.constant 0 : i32
    %c0_i32_0 = arith.constant 0 : i32
    %c0_i32_1 = arith.constant 0 : i32
    return %c0_i32, %c0_i32_0 : i32, i32
  }
  func.func @transform_8(%arg0: i32) -> (i32, i32) {
    %c0_i32 = arith.constant 0 : i32
    %c0_i32_0 = arith.constant 0 : i32
    %c0_i32_1 = arith.constant 0 : i32
    return %c0_i32, %c0_i32_0 : i32, i32
  }
  func.func @transform_9(%arg0: i32) -> (i32, i32) {
    %c0_i32 = arith.constant 0 : i32
    %c0_i32_0 = arith.constant 0 : i32
    %c0_i32_1 = arith.constant 0 : i32
    return %c0_i32, %c0_i32_0 : i32, i32
  }
  func.func @transform_10(%arg0: i32) -> (i32, i32, i32) {
    %c0_i32 = arith.constant 0 : i32
    %c0_i32_0 = arith.constant 0 : i32
    %c0_i32_1 = arith.constant 0 : i32
    %c0_i32_2 = arith.constant 0 : i32
    return %c0_i32, %c0_i32_0, %c0_i32_1 : i32, i32, i32
  }
  func.func @transform_11(%arg0: i32) -> (i32, i32) {
    %c0_i32 = arith.constant 0 : i32
    %c0_i32_0 = arith.constant 0 : i32
    %c0_i32_1 = arith.constant 0 : i32
    return %c0_i32, %c0_i32_0 : i32, i32
  }
  func.func @transform_12(%arg0: i32) -> (i32, i32) {
    %c0_i32 = arith.constant 0 : i32
    %c0_i32_0 = arith.constant 0 : i32
    %c0_i32_1 = arith.constant 0 : i32
    return %c0_i32, %c0_i32_0 : i32, i32
  }
  func.func @transform_13(%arg0: i32) -> (i32, i32) {
    %c0_i32 = arith.constant 0 : i32
    %c0_i32_0 = arith.constant 0 : i32
    %c0_i32_1 = arith.constant 0 : i32
    return %c0_i32, %c0_i32_0 : i32, i32
  }
  func.func @transform_14(%arg0: i32) -> (i32, i32) {
    %c0_i32 = arith.constant 0 : i32
    %c0_i32_0 = arith.constant 0 : i32
    %c0_i32_1 = arith.constant 0 : i32
    return %c0_i32, %c0_i32_0 : i32, i32
  }
  func.func @transform_15(%arg0: i32) -> (i32, i32) {
    %c0_i32 = arith.constant 0 : i32
    %c0_i32_0 = arith.constant 0 : i32
    %c0_i32_1 = arith.constant 0 : i32
    return %c0_i32, %c0_i32_0 : i32, i32
  }
  func.func @transform_16(%arg0: i32) -> (i32, i32) {
    %c0_i32 = arith.constant 0 : i32
    %c0_i32_0 = arith.constant 0 : i32
    %c0_i32_1 = arith.constant 0 : i32
    return %c0_i32, %c0_i32_0 : i32, i32
  }
  func.func @transform_17(%arg0: i32) -> (i32, i32) {
    %c0_i32 = arith.constant 0 : i32
    %c0_i32_0 = arith.constant 0 : i32
    %c0_i32_1 = arith.constant 0 : i32
    return %c0_i32, %c0_i32_0 : i32, i32
  }
  func.func @transform_18(%arg0: i32) -> (i32, i32) {
    %c0_i32 = arith.constant 0 : i32
    %c0_i32_0 = arith.constant 0 : i32
    %c0_i32_1 = arith.constant 0 : i32
    return %c0_i32, %c0_i32_0 : i32, i32
  }
  func.func @transform_19(%arg0: i32) -> (i32, i32) {
    %c0_i32 = arith.constant 0 : i32
    %c0_i32_0 = arith.constant 0 : i32
    %c0_i32_1 = arith.constant 0 : i32
    return %c0_i32, %c0_i32_0 : i32, i32
  }
  func.func @transform_20(%arg0: i32) -> (i32, i32) {
    %c0_i32 = arith.constant 0 : i32
    %c0_i32_0 = arith.constant 0 : i32
    return %arg0, %c0_i32 : i32, i32
  }
}

module attributes {stable_mosaic.version = 11 : i64} {
  func.func @_interp3_kernel(%arg0: i32, %arg1: memref<32x3xf32, #tpu.memory_space<vmem>>, %arg2: memref<32x3x32xf32, #tpu.memory_space<vmem>>, %arg3: memref<32x32xf32, #tpu.memory_space<vmem>>) attributes {dimension_semantics = [#tpu.dimension_semantics<parallel>], iteration_bounds = array<i64: 2>, scalar_prefetch = 0 : i64, scratch_operands = 0 : i64, tpu.core_type = #tpu.core_type<tc>, window_params = [{transform_indices = @transform_0, window_bounds = array<i64: 32, 3>}, {transform_indices = @transform_1, window_bounds = array<i64: 32, 3, 32>}, {transform_indices = @transform_2, window_bounds = array<i64: 32, 32>}]} {
    %c0 = arith.constant 0 : index
    %c0_0 = arith.constant 0 : index
    %0 = vector.load %arg1[%c0, %c0_0] : memref<32x3xf32, #tpu.memory_space<vmem>>, vector<32x3xf32>
    %1 = vector.extract_strided_slice %0 {offsets = [0, 0], sizes = [32, 1], strides = [1, 1]} : vector<32x3xf32> to vector<32x1xf32>
    %c0_1 = arith.constant 0 : index
    %c0_2 = arith.constant 0 : index
    %c0_3 = arith.constant 0 : index
    %2 = vector.load %arg2[%c0_1, %c0_2, %c0_3] : memref<32x3x32xf32, #tpu.memory_space<vmem>>, vector<32x1x32xf32>
    %3 = vector.shape_cast %2 : vector<32x1x32xf32> to vector<32x32xf32>
    %4 = vector.broadcast %1 : vector<32x1xf32> to vector<32x32xf32>
    %5 = arith.mulf %4, %3 : vector<32x32xf32>
    %6 = vector.extract_strided_slice %0 {offsets = [0, 1], sizes = [32, 1], strides = [1, 1]} : vector<32x3xf32> to vector<32x1xf32>
    %c0_4 = arith.constant 0 : index
    %c1 = arith.constant 1 : index
    %c0_5 = arith.constant 0 : index
    %7 = vector.load %arg2[%c0_4, %c1, %c0_5] : memref<32x3x32xf32, #tpu.memory_space<vmem>>, vector<32x1x32xf32>
    %8 = vector.shape_cast %7 : vector<32x1x32xf32> to vector<32x32xf32>
    %9 = vector.broadcast %6 : vector<32x1xf32> to vector<32x32xf32>
    %10 = arith.mulf %9, %8 : vector<32x32xf32>
    %11 = arith.addf %5, %10 : vector<32x32xf32>
    %12 = vector.extract_strided_slice %0 {offsets = [0, 2], sizes = [32, 1], strides = [1, 1]} : vector<32x3xf32> to vector<32x1xf32>
    %c0_6 = arith.constant 0 : index
    %c2 = arith.constant 2 : index
    %c0_7 = arith.constant 0 : index
    %13 = vector.load %arg2[%c0_6, %c2, %c0_7] : memref<32x3x32xf32, #tpu.memory_space<vmem>>, vector<32x1x32xf32>
    %14 = vector.shape_cast %13 : vector<32x1x32xf32> to vector<32x32xf32>
    %15 = vector.broadcast %12 : vector<32x1xf32> to vector<32x32xf32>
    %16 = arith.mulf %15, %14 : vector<32x32xf32>
    %17 = arith.addf %11, %16 : vector<32x32xf32>
    %c0_8 = arith.constant 0 : index
    %c0_9 = arith.constant 0 : index
    %18 = vector.load %arg3[%c0_8, %c0_9] : memref<32x32xf32, #tpu.memory_space<vmem>>, vector<32x32xf32>
    tpu.vector_store %arg3[%c0_8, %c0_9], %17 {strides = array<i32>} : memref<32x32xf32, #tpu.memory_space<vmem>>, vector<32x32xf32>,
    return
  }
  func.func @transform_0(%arg0: i32) -> (i32, i32) {
    %c0_i32 = arith.constant 0 : i32
    %c0_i32_0 = arith.constant 0 : i32
    return %arg0, %c0_i32 : i32, i32
  }
  func.func @transform_1(%arg0: i32) -> (i32, i32, i32) {
    %c0_i32 = arith.constant 0 : i32
    %c0_i32_0 = arith.constant 0 : i32
    %c0_i32_1 = arith.constant 0 : i32
    return %arg0, %c0_i32, %c0_i32_0 : i32, i32, i32
  }
  func.func @transform_2(%arg0: i32) -> (i32, i32) {
    %c0_i32 = arith.constant 0 : i32
    %c0_i32_0 = arith.constant 0 : i32
    return %arg0, %c0_i32 : i32, i32
  }
}

module attributes {stable_mosaic.version = 11 : i64} {
  func.func @_sqdist_kernel(%arg0: i32, %arg1: i32, %arg2: memref<1x8x3xf32, #tpu.memory_space<vmem>>, %arg3: memref<1x3x128xf32, #tpu.memory_space<vmem>>, %arg4: memref<1x8x128xf32, #tpu.memory_space<vmem>>) attributes {dimension_semantics = [#tpu.dimension_semantics<parallel>, #tpu.dimension_semantics<parallel>], iteration_bounds = array<i64: 2, 1>, scalar_prefetch = 0 : i64, scratch_operands = 0 : i64, tpu.core_type = #tpu.core_type<tc>, window_params = [{transform_indices = @transform_0, window_bounds = array<i64: 1, 8, 3>}, {transform_indices = @transform_1, window_bounds = array<i64: 1, 3, 128>}, {transform_indices = @transform_2, window_bounds = array<i64: 1, 8, 128>}]} {
    %c0 = arith.constant 0 : index
    %c0_0 = arith.constant 0 : index
    %c0_1 = arith.constant 0 : index
    %0 = vector.load %arg2[%c0, %c0_0, %c0_1] : memref<1x8x3xf32, #tpu.memory_space<vmem>>, vector<1x8x1xf32>
    %1 = vector.shape_cast %0 : vector<1x8x1xf32> to vector<8x1xf32>
    %c0_2 = arith.constant 0 : index
    %c0_3 = arith.constant 0 : index
    %c0_4 = arith.constant 0 : index
    %2 = vector.load %arg3[%c0_2, %c0_3, %c0_4] : memref<1x3x128xf32, #tpu.memory_space<vmem>>, vector<1x1x128xf32>
    %3 = vector.shape_cast %2 : vector<1x1x128xf32> to vector<1x128xf32>
    %4 = vector.broadcast %1 : vector<8x1xf32> to vector<8x128xf32>
    %5 = vector.broadcast %3 : vector<1x128xf32> to vector<8x128xf32>
    %6 = arith.subf %4, %5 : vector<8x128xf32>
    %7 = arith.mulf %6, %6 : vector<8x128xf32>
    %c0_5 = arith.constant 0 : index
    %c0_6 = arith.constant 0 : index
    %c1 = arith.constant 1 : index
    %8 = vector.load %arg2[%c0_5, %c0_6, %c1] : memref<1x8x3xf32, #tpu.memory_space<vmem>>, vector<1x8x1xf32>
    %9 = vector.shape_cast %8 : vector<1x8x1xf32> to vector<8x1xf32>
    %c0_7 = arith.constant 0 : index
    %c1_8 = arith.constant 1 : index
    %c0_9 = arith.constant 0 : index
    %10 = vector.load %arg3[%c0_7, %c1_8, %c0_9] : memref<1x3x128xf32, #tpu.memory_space<vmem>>, vector<1x1x128xf32>
    %11 = vector.shape_cast %10 : vector<1x1x128xf32> to vector<1x128xf32>
    %12 = vector.broadcast %9 : vector<8x1xf32> to vector<8x128xf32>
    %13 = vector.broadcast %11 : vector<1x128xf32> to vector<8x128xf32>
    %14 = arith.subf %12, %13 : vector<8x128xf32>
    %15 = arith.mulf %14, %14 : vector<8x128xf32>
    %16 = arith.addf %7, %15 : vector<8x128xf32>
    %c0_10 = arith.constant 0 : index
    %c0_11 = arith.constant 0 : index
    %c2 = arith.constant 2 : index
    %17 = vector.load %arg2[%c0_10, %c0_11, %c2] : memref<1x8x3xf32, #tpu.memory_space<vmem>>, vector<1x8x1xf32>
    %18 = vector.shape_cast %17 : vector<1x8x1xf32> to vector<8x1xf32>
    %c0_12 = arith.constant 0 : index
    %c2_13 = arith.constant 2 : index
    %c0_14 = arith.constant 0 : index
    %19 = vector.load %arg3[%c0_12, %c2_13, %c0_14] : memref<1x3x128xf32, #tpu.memory_space<vmem>>, vector<1x1x128xf32>
    %20 = vector.shape_cast %19 : vector<1x1x128xf32> to vector<1x128xf32>
    %21 = vector.broadcast %18 : vector<8x1xf32> to vector<8x128xf32>
    %22 = vector.broadcast %20 : vector<1x128xf32> to vector<8x128xf32>
    %23 = arith.subf %21, %22 : vector<8x128xf32>
    %24 = arith.mulf %23, %23 : vector<8x128xf32>
    %25 = arith.addf %16, %24 : vector<8x128xf32>
    %c0_15 = arith.constant 0 : index
    %c0_16 = arith.constant 0 : index
    %c0_17 = arith.constant 0 : index
    %26 = vector.load %arg4[%c0_15, %c0_16, %c0_17] : memref<1x8x128xf32, #tpu.memory_space<vmem>>, vector<1x8x128xf32>
    %27 = vector.shape_cast %26 : vector<1x8x128xf32> to vector<8x128xf32>
    %28 = vector.shape_cast %25 : vector<8x128xf32> to vector<1x8x128xf32>
    tpu.vector_store %arg4[%c0_15, %c0_16, %c0_17], %28 {strides = array<i32>} : memref<1x8x128xf32, #tpu.memory_space<vmem>>, vector<1x8x128xf32>,
    return
  }
  func.func @transform_0(%arg0: i32, %arg1: i32) -> (i32, i32, i32) {
    %c0_i32 = arith.constant 0 : i32
    %c0_i32_0 = arith.constant 0 : i32
    return %arg0, %arg1, %c0_i32 : i32, i32, i32
  }
  func.func @transform_1(%arg0: i32, %arg1: i32) -> (i32, i32, i32) {
    %c0_i32 = arith.constant 0 : i32
    %c0_i32_0 = arith.constant 0 : i32
    %c0_i32_1 = arith.constant 0 : i32
    return %arg0, %c0_i32, %c0_i32_0 : i32, i32, i32
  }
  func.func @transform_2(%arg0: i32, %arg1: i32) -> (i32, i32, i32) {
    %c0_i32 = arith.constant 0 : i32
    %c0_i32_0 = arith.constant 0 : i32
    return %arg0, %arg1, %c0_i32 : i32, i32, i32
  }
}

module attributes {stable_mosaic.version = 11 : i64} {
  func.func @kernel(%arg0: i32, %arg1: memref<16x5x32xbf16, #tpu.memory_space<vmem>>, %arg2: memref<16x5x10xf32, #tpu.memory_space<vmem>>, %arg3: memref<32x32xbf16, #tpu.memory_space<vmem>>, %arg4: memref<1x32xf32, #tpu.memory_space<vmem>>, %arg5: memref<32x16xbf16, #tpu.memory_space<vmem>>, %arg6: memref<1x16xf32, #tpu.memory_space<vmem>>, %arg7: memref<32x32xbf16, #tpu.memory_space<vmem>>, %arg8: memref<1x32xf32, #tpu.memory_space<vmem>>, %arg9: memref<10x16xf32, #tpu.memory_space<vmem>>, %arg10: memref<16x16xbf16, #tpu.memory_space<vmem>>, %arg11: memref<5x16x2xbf16, #tpu.memory_space<vmem>>, %arg12: memref<2x10xbf16, #tpu.memory_space<vmem>>, %arg13: memref<1x10xf32, #tpu.memory_space<vmem>>, %arg14: memref<2x16xf32, #tpu.memory_space<vmem>>, %arg15: memref<16x32xbf16, #tpu.memory_space<vmem>>, %arg16: memref<1x32xf32, #tpu.memory_space<vmem>>, %arg17: memref<32x16xbf16, #tpu.memory_space<vmem>>, %arg18: memref<1x16xf32, #tpu.memory_space<vmem>>, %arg19: memref<16x8xbf16, #tpu.memory_space<vmem>>, %arg20: memref<1x8xf32, #tpu.memory_space<vmem>>, %arg21: memref<16x8xf32, #tpu.memory_space<vmem>>, %arg22: memref<16x5x16xf32, #tpu.memory_space<vmem>>, %arg23: memref<16x32xf32, #tpu.memory_space<vmem>>) attributes {dimension_semantics = [#tpu.dimension_semantics<parallel>], iteration_bounds = array<i64: 1>, scalar_prefetch = 0 : i64, scratch_operands = 2 : i64, tpu.core_type = #tpu.core_type<tc>, window_params = [{transform_indices = @transform_0, window_bounds = array<i64: 16, 5, 32>}, {transform_indices = @transform_1, window_bounds = array<i64: 16, 5, 10>}, {pipeline_mode = #tpu.pipeline_mode<synchronous>, transform_indices = @transform_2, window_bounds = array<i64: 32, 32>}, {pipeline_mode = #tpu.pipeline_mode<synchronous>, transform_indices = @transform_3, window_bounds = array<i64: 1, 32>}, {pipeline_mode = #tpu.pipeline_mode<synchronous>, transform_indices = @transform_4, window_bounds = array<i64: 32, 16>}, {pipeline_mode = #tpu.pipeline_mode<synchronous>, transform_indices = @transform_5, window_bounds = array<i64: 1, 16>}, {pipeline_mode = #tpu.pipeline_mode<synchronous>, transform_indices = @transform_6, window_bounds = array<i64: 32, 32>}, {pipeline_mode = #tpu.pipeline_mode<synchronous>, transform_indices = @transform_7, window_bounds = array<i64: 1, 32>}, {pipeline_mode = #tpu.pipeline_mode<synchronous>, transform_indices = @transform_8, window_bounds = array<i64: 10, 16>}, {pipeline_mode = #tpu.pipeline_mode<synchronous>, transform_indices = @transform_9, window_bounds = array<i64: 16, 16>}, {pipeline_mode = #tpu.pipeline_mode<synchronous>, transform_indices = @transform_10, window_bounds = array<i64: 5, 16, 2>}, {pipeline_mode = #tpu.pipeline_mode<synchronous>, transform_indices = @transform_11, window_bounds = array<i64: 2, 10>}, {pipeline_mode = #tpu.pipeline_mode<synchronous>, transform_indices = @transform_12, window_bounds = array<i64: 1, 10>}, {pipeline_mode = #tpu.pipeline_mode<synchronous>, transform_indices = @transform_13, window_bounds = array<i64: 2, 16>}, {pipeline_mode = #tpu.pipeline_mode<synchronous>, transform_indices = @transform_14, window_bounds = array<i64: 16, 32>}, {pipeline_mode = #tpu.pipeline_mode<synchronous>, transform_indices = @transform_15, window_bounds = array<i64: 1, 32>}, {pipeline_mode = #tpu.pipeline_mode<synchronous>, transform_indices = @transform_16, window_bounds = array<i64: 32, 16>}, {pipeline_mode = #tpu.pipeline_mode<synchronous>, transform_indices = @transform_17, window_bounds = array<i64: 1, 16>}, {pipeline_mode = #tpu.pipeline_mode<synchronous>, transform_indices = @transform_18, window_bounds = array<i64: 16, 8>}, {pipeline_mode = #tpu.pipeline_mode<synchronous>, transform_indices = @transform_19, window_bounds = array<i64: 1, 8>}, {transform_indices = @transform_20, window_bounds = array<i64: 16, 8>}]} {
    %c0 = arith.constant 0 : index
    %c0_0 = arith.constant 0 : index
    %c0_1 = arith.constant 0 : index
    %0 = vector.load %arg1[%c0, %c0_0, %c0_1] : memref<16x5x32xbf16, #tpu.memory_space<vmem>>, vector<16x1x32xbf16>
    %1 = vector.shape_cast %0 : vector<16x1x32xbf16> to vector<16x32xbf16>
    %c0_2 = arith.constant 0 : index
    %c0_3 = arith.constant 0 : index
    %2 = vector.load %arg3[%c0_2, %c0_3] : memref<32x32xbf16, #tpu.memory_space<vmem>>, vector<32x32xbf16>
    %cst = arith.constant dense<0.000000e+00> : vector<16x32xf32>
    %3 = tpu.matmul %1, %2, %cst {dimension_numbers = #tpu.dot_dimension_numbers<[1], [0], [0], [1], [0, 0, 1, 1], [], []>} : vector<16x32xbf16>, vector<32x32xbf16>, vector<16x32xf32> -> vector<16x32xf32>
    %c0_4 = arith.constant 0 : index
    %c0_5 = arith.constant 0 : index
    %4 = vector.load %arg4[%c0_4, %c0_5] : memref<1x32xf32, #tpu.memory_space<vmem>>, vector<1x32xf32>
    %5 = vector.broadcast %4 : vector<1x32xf32> to vector<16x32xf32>
    %6 = arith.addf %3, %5 : vector<16x32xf32>
    %cst_6 = arith.constant 0.000000e+00 : f32
    %7 = vector.broadcast %cst_6 : f32 to vector<16x32xf32>
    %8 = arith.maximumf %6, %7 : vector<16x32xf32>
    %c0_7 = arith.constant 0 : index
    %c0_8 = arith.constant 0 : index
    %9 = vector.load %arg23[%c0_7, %c0_8] : memref<16x32xf32, #tpu.memory_space<vmem>>, vector<16x32xf32>
    tpu.vector_store %arg23[%c0_7, %c0_8], %8 {strides = array<i32>} : memref<16x32xf32, #tpu.memory_space<vmem>>, vector<16x32xf32>,
    %10 = arith.truncf %8 : vector<16x32xf32> to vector<16x32xbf16>
    %c0_9 = arith.constant 0 : index
    %c0_10 = arith.constant 0 : index
    %11 = vector.load %arg5[%c0_9, %c0_10] : memref<32x16xbf16, #tpu.memory_space<vmem>>, vector<32x16xbf16>
    %cst_11 = arith.constant dense<0.000000e+00> : vector<16x16xf32>
    %12 = tpu.matmul %10, %11, %cst_11 {dimension_numbers = #tpu.dot_dimension_numbers<[1], [0], [0], [1], [0, 0, 1, 1], [], []>} : vector<16x32xbf16>, vector<32x16xbf16>, vector<16x16xf32> -> vector<16x16xf32>
    %c0_12 = arith.constant 0 : index
    %c0_13 = arith.constant 0 : index
    %13 = vector.load %arg6[%c0_12, %c0_13] : memref<1x16xf32, #tpu.memory_space<vmem>>, vector<1x16xf32>
    %14 = vector.broadcast %13 : vector<1x16xf32> to vector<16x16xf32>
    %15 = arith.addf %12, %14 : vector<16x16xf32>
    %16 = arith.truncf %8 : vector<16x32xf32> to vector<16x32xbf16>
    %c0_14 = arith.constant 0 : index
    %c0_15 = arith.constant 0 : index
    %17 = vector.load %arg7[%c0_14, %c0_15] : memref<32x32xbf16, #tpu.memory_space<vmem>>, vector<32x32xbf16>
    %cst_16 = arith.constant dense<0.000000e+00> : vector<16x32xf32>
    %18 = tpu.matmul %16, %17, %cst_16 {dimension_numbers = #tpu.dot_dimension_numbers<[1], [0], [0], [1], [0, 0, 1, 1], [], []>} : vector<16x32xbf16>, vector<32x32xbf16>, vector<16x32xf32> -> vector<16x32xf32>
    %c0_17 = arith.constant 0 : index
    %c0_18 = arith.constant 0 : index
    %19 = vector.load %arg8[%c0_17, %c0_18] : memref<1x32xf32, #tpu.memory_space<vmem>>, vector<1x32xf32>
    %20 = vector.broadcast %19 : vector<1x32xf32> to vector<16x32xf32>
    %21 = arith.addf %18, %20 : vector<16x32xf32>
    %22 = vector.extract_strided_slice %21 {offsets = [0, 0], sizes = [16, 16], strides = [1, 1]} : vector<16x32xf32> to vector<16x16xf32>
    %23 = vector.extract_strided_slice %21 {offsets = [0, 16], sizes = [16, 16], strides = [1, 1]} : vector<16x32xf32> to vector<16x16xf32>
    %c0_19 = arith.constant 0 : index
    %c0_20 = arith.constant 0 : index
    %c0_21 = arith.constant 0 : index
    %24 = vector.load %arg2[%c0_19, %c0_20, %c0_21] : memref<16x5x10xf32, #tpu.memory_space<vmem>>, vector<16x1x10xf32>
    %25 = vector.shape_cast %24 : vector<16x1x10xf32> to vector<16x10xf32>
    %c0_22 = arith.constant 0 : index
    %c0_23 = arith.constant 0 : index
    %26 = vector.load %arg9[%c0_22, %c0_23] : memref<10x16xf32, #tpu.memory_space<vmem>>, vector<10x16xf32>
    %cst_24 = arith.constant dense<0.000000e+00> : vector<16x16xf32>
    %27 = tpu.matmul %25, %26, %cst_24 {dimension_numbers = #tpu.dot_dimension_numbers<[1], [0], [0], [1], [0, 0, 1, 1], [], []>} : vector<16x10xf32>, vector<10x16xf32>, vector<16x16xf32> -> vector<16x16xf32>
    %cst_25 = arith.constant 0.000000e+00 : f32
    %28 = vector.broadcast %cst_25 : f32 to vector<16x16xf32>
    %29 = arith.maximumf %27, %28 : vector<16x16xf32>
    %30 = arith.truncf %29 : vector<16x16xf32> to vector<16x16xbf16>
    %c0_26 = arith.constant 0 : index
    %c0_27 = arith.constant 0 : index
    %31 = vector.load %arg10[%c0_26, %c0_27] : memref<16x16xbf16, #tpu.memory_space<vmem>>, vector<16x16xbf16>
    %cst_28 = arith.constant dense<0.000000e+00> : vector<16x16xf32>
    %32 = tpu.matmul %30, %31, %cst_28 {dimension_numbers = #tpu.dot_dimension_numbers<[1], [0], [0], [1], [0, 0, 1, 1], [], []>} : vector<16x16xbf16>, vector<16x16xbf16>, vector<16x16xf32> -> vector<16x16xf32>
    %33 = arith.addf %23, %32 : vector<16x16xf32>
    %c0_29 = arith.constant 0 : index
    %c0_30 = arith.constant 0 : index
    %c0_31 = arith.constant 0 : index
    %34 = vector.load %arg22[%c0_29, %c0_30, %c0_31] : memref<16x5x16xf32, #tpu.memory_space<vmem>>, vector<16x1x16xf32>
    %35 = vector.shape_cast %34 : vector<16x1x16xf32> to vector<16x16xf32>
    %36 = vector.shape_cast %33 : vector<16x16xf32> to vector<16x1x16xf32>
    tpu.vector_store %arg22[%c0_29, %c0_30, %c0_31], %36 {strides = array<i32>} : memref<16x5x16xf32, #tpu.memory_space<vmem>>, vector<16x1x16xf32>,
    %37 = arith.subf %15, %22 : vector<16x16xf32>
    %38 = arith.addf %37, %32 : vector<16x16xf32>
    %39 = arith.truncf %38 : vector<16x16xf32> to vector<16x16xbf16>
    %c0_32 = arith.constant 0 : index
    %c0_33 = arith.constant 0 : index
    %c0_34 = arith.constant 0 : index
    %40 = vector.load %arg11[%c0_32, %c0_33, %c0_34] : memref<5x16x2xbf16, #tpu.memory_space<vmem>>, vector<1x16x2xbf16>
    %41 = vector.shape_cast %40 : vector<1x16x2xbf16> to vector<16x2xbf16>
    %cst_35 = arith.constant dense<0.000000e+00> : vector<16x2xf32>
    %42 = tpu.matmul %39, %41, %cst_35 {dimension_numbers = #tpu.dot_dimension_numbers<[1], [0], [0], [1], [0, 0, 1, 1], [], []>} : vector<16x16xbf16>, vector<16x2xbf16>, vector<16x2xf32> -> vector<16x2xf32>
    %c0_36 = arith.constant 0 : index
    %c1 = arith.constant 1 : index
    %c0_37 = arith.constant 0 : index
    %43 = vector.load %arg1[%c0_36, %c1, %c0_37] : memref<16x5x32xbf16, #tpu.memory_space<vmem>>, vector<16x1x32xbf16>
    %44 = vector.shape_cast %43 : vector<16x1x32xbf16> to vector<16x32xbf16>
    %c0_38 = arith.constant 0 : index
    %c0_39 = arith.constant 0 : index
    %45 = vector.load %arg3[%c0_38, %c0_39] : memref<32x32xbf16, #tpu.memory_space<vmem>>, vector<32x32xbf16>
    %cst_40 = arith.constant dense<0.000000e+00> : vector<16x32xf32>
    %46 = tpu.matmul %44, %45, %cst_40 {dimension_numbers = #tpu.dot_dimension_numbers<[1], [0], [0], [1], [0, 0, 1, 1], [], []>} : vector<16x32xbf16>, vector<32x32xbf16>, vector<16x32xf32> -> vector<16x32xf32>
    %c0_41 = arith.constant 0 : index
    %c0_42 = arith.constant 0 : index
    %47 = vector.load %arg4[%c0_41, %c0_42] : memref<1x32xf32, #tpu.memory_space<vmem>>, vector<1x32xf32>
    %48 = vector.broadcast %47 : vector<1x32xf32> to vector<16x32xf32>
    %49 = arith.addf %46, %48 : vector<16x32xf32>
    %cst_43 = arith.constant 0.000000e+00 : f32
    %50 = vector.broadcast %cst_43 : f32 to vector<16x32xf32>
    %51 = arith.maximumf %49, %50 : vector<16x32xf32>
    %52 = arith.truncf %51 : vector<16x32xf32> to vector<16x32xbf16>
    %c0_44 = arith.constant 0 : index
    %c0_45 = arith.constant 0 : index
    %53 = vector.load %arg7[%c0_44, %c0_45] : memref<32x32xbf16, #tpu.memory_space<vmem>>, vector<32x32xbf16>
    %cst_46 = arith.constant dense<0.000000e+00> : vector<16x32xf32>
    %54 = tpu.matmul %52, %53, %cst_46 {dimension_numbers = #tpu.dot_dimension_numbers<[1], [0], [0], [1], [0, 0, 1, 1], [], []>} : vector<16x32xbf16>, vector<32x32xbf16>, vector<16x32xf32> -> vector<16x32xf32>
    %c0_47 = arith.constant 0 : index
    %c0_48 = arith.constant 0 : index
    %55 = vector.load %arg8[%c0_47, %c0_48] : memref<1x32xf32, #tpu.memory_space<vmem>>, vector<1x32xf32>
    %56 = vector.broadcast %55 : vector<1x32xf32> to vector<16x32xf32>
    %57 = arith.addf %54, %56 : vector<16x32xf32>
    %58 = vector.extract_strided_slice %57 {offsets = [0, 0], sizes = [16, 16], strides = [1, 1]} : vector<16x32xf32> to vector<16x16xf32>
    %59 = vector.extract_strided_slice %57 {offsets = [0, 16], sizes = [16, 16], strides = [1, 1]} : vector<16x32xf32> to vector<16x16xf32>
    %c0_49 = arith.constant 0 : index
    %c1_50 = arith.constant 1 : index
    %c0_51 = arith.constant 0 : index
    %60 = vector.load %arg2[%c0_49, %c1_50, %c0_51] : memref<16x5x10xf32, #tpu.memory_space<vmem>>, vector<16x1x10xf32>
    %61 = vector.shape_cast %60 : vector<16x1x10xf32> to vector<16x10xf32>
    %c0_52 = arith.constant 0 : index
    %c0_53 = arith.constant 0 : index
    %62 = vector.load %arg9[%c0_52, %c0_53] : memref<10x16xf32, #tpu.memory_space<vmem>>, vector<10x16xf32>
    %cst_54 = arith.constant dense<0.000000e+00> : vector<16x16xf32>
    %63 = tpu.matmul %61, %62, %cst_54 {dimension_numbers = #tpu.dot_dimension_numbers<[1], [0], [0], [1], [0, 0, 1, 1], [], []>} : vector<16x10xf32>, vector<10x16xf32>, vector<16x16xf32> -> vector<16x16xf32>
    %cst_55 = arith.constant 0.000000e+00 : f32
    %64 = vector.broadcast %cst_55 : f32 to vector<16x16xf32>
    %65 = arith.maximumf %63, %64 : vector<16x16xf32>
    %66 = arith.truncf %65 : vector<16x16xf32> to vector<16x16xbf16>
    %c0_56 = arith.constant 0 : index
    %c0_57 = arith.constant 0 : index
    %67 = vector.load %arg10[%c0_56, %c0_57] : memref<16x16xbf16, #tpu.memory_space<vmem>>, vector<16x16xbf16>
    %cst_58 = arith.constant dense<0.000000e+00> : vector<16x16xf32>
    %68 = tpu.matmul %66, %67, %cst_58 {dimension_numbers = #tpu.dot_dimension_numbers<[1], [0], [0], [1], [0, 0, 1, 1], [], []>} : vector<16x16xbf16>, vector<16x16xbf16>, vector<16x16xf32> -> vector<16x16xf32>
    %69 = arith.addf %59, %68 : vector<16x16xf32>
    %c0_59 = arith.constant 0 : index
    %c1_60 = arith.constant 1 : index
    %c0_61 = arith.constant 0 : index
    %70 = vector.load %arg22[%c0_59, %c1_60, %c0_61] : memref<16x5x16xf32, #tpu.memory_space<vmem>>, vector<16x1x16xf32>
    %71 = vector.shape_cast %70 : vector<16x1x16xf32> to vector<16x16xf32>
    %72 = vector.shape_cast %69 : vector<16x16xf32> to vector<16x1x16xf32>
    tpu.vector_store %arg22[%c0_59, %c1_60, %c0_61], %72 {strides = array<i32>} : memref<16x5x16xf32, #tpu.memory_space<vmem>>, vector<16x1x16xf32>,
    %73 = arith.subf %15, %58 : vector<16x16xf32>
    %74 = arith.addf %73, %68 : vector<16x16xf32>
    %75 = arith.truncf %74 : vector<16x16xf32> to vector<16x16xbf16>
    %c1_62 = arith.constant 1 : index
    %c0_63 = arith.constant 0 : index
    %c0_64 = arith.constant 0 : index
    %76 = vector.load %arg11[%c1_62, %c0_63, %c0_64] : memref<5x16x2xbf16, #tpu.memory_space<vmem>>, vector<1x16x2xbf16>
    %77 = vector.shape_cast %76 : vector<1x16x2xbf16> to vector<16x2xbf16>
    %cst_65 = arith.constant dense<0.000000e+00> : vector<16x2xf32>
    %78 = tpu.matmul %75, %77, %cst_65 {dimension_numbers = #tpu.dot_dimension_numbers<[1], [0], [0], [1], [0, 0, 1, 1], [], []>} : vector<16x16xbf16>, vector<16x2xbf16>, vector<16x2xf32> -> vector<16x2xf32>
    %79 = arith.addf %42, %78 : vector<16x2xf32>
    %c0_66 = arith.constant 0 : index
    %c2 = arith.constant 2 : index
    %c0_67 = arith.constant 0 : index
    %80 = vector.load %arg1[%c0_66, %c2, %c0_67] : memref<16x5x32xbf16, #tpu.memory_space<vmem>>, vector<16x1x32xbf16>
    %81 = vector.shape_cast %80 : vector<16x1x32xbf16> to vector<16x32xbf16>
    %c0_68 = arith.constant 0 : index
    %c0_69 = arith.constant 0 : index
    %82 = vector.load %arg3[%c0_68, %c0_69] : memref<32x32xbf16, #tpu.memory_space<vmem>>, vector<32x32xbf16>
    %cst_70 = arith.constant dense<0.000000e+00> : vector<16x32xf32>
    %83 = tpu.matmul %81, %82, %cst_70 {dimension_numbers = #tpu.dot_dimension_numbers<[1], [0], [0], [1], [0, 0, 1, 1], [], []>} : vector<16x32xbf16>, vector<32x32xbf16>, vector<16x32xf32> -> vector<16x32xf32>
    %c0_71 = arith.constant 0 : index
    %c0_72 = arith.constant 0 : index
    %84 = vector.load %arg4[%c0_71, %c0_72] : memref<1x32xf32, #tpu.memory_space<vmem>>, vector<1x32xf32>
    %85 = vector.broadcast %84 : vector<1x32xf32> to vector<16x32xf32>
    %86 = arith.addf %83, %85 : vector<16x32xf32>
    %cst_73 = arith.constant 0.000000e+00 : f32
    %87 = vector.broadcast %cst_73 : f32 to vector<16x32xf32>
    %88 = arith.maximumf %86, %87 : vector<16x32xf32>
    %89 = arith.truncf %88 : vector<16x32xf32> to vector<16x32xbf16>
    %c0_74 = arith.constant 0 : index
    %c0_75 = arith.constant 0 : index
    %90 = vector.load %arg7[%c0_74, %c0_75] : memref<32x32xbf16, #tpu.memory_space<vmem>>, vector<32x32xbf16>
    %cst_76 = arith.constant dense<0.000000e+00> : vector<16x32xf32>
    %91 = tpu.matmul %89, %90, %cst_76 {dimension_numbers = #tpu.dot_dimension_numbers<[1], [0], [0], [1], [0, 0, 1, 1], [], []>} : vector<16x32xbf16>, vector<32x32xbf16>, vector<16x32xf32> -> vector<16x32xf32>
    %c0_77 = arith.constant 0 : index
    %c0_78 = arith.constant 0 : index
    %92 = vector.load %arg8[%c0_77, %c0_78] : memref<1x32xf32, #tpu.memory_space<vmem>>, vector<1x32xf32>
    %93 = vector.broadcast %92 : vector<1x32xf32> to vector<16x32xf32>
    %94 = arith.addf %91, %93 : vector<16x32xf32>
    %95 = vector.extract_strided_slice %94 {offsets = [0, 0], sizes = [16, 16], strides = [1, 1]} : vector<16x32xf32> to vector<16x16xf32>
    %96 = vector.extract_strided_slice %94 {offsets = [0, 16], sizes = [16, 16], strides = [1, 1]} : vector<16x32xf32> to vector<16x16xf32>
    %c0_79 = arith.constant 0 : index
    %c2_80 = arith.constant 2 : index
    %c0_81 = arith.constant 0 : index
    %97 = vector.load %arg2[%c0_79, %c2_80, %c0_81] : memref<16x5x10xf32, #tpu.memory_space<vmem>>, vector<16x1x10xf32>
    %98 = vector.shape_cast %97 : vector<16x1x10xf32> to vector<16x10xf32>
    %c0_82 = arith.constant 0 : index
    %c0_83 = arith.constant 0 : index
    %99 = vector.load %arg9[%c0_82, %c0_83] : memref<10x16xf32, #tpu.memory_space<vmem>>, vector<10x16xf32>
    %cst_84 = arith.constant dense<0.000000e+00> : vector<16x16xf32>
    %100 = tpu.matmul %98, %99, %cst_84 {dimension_numbers = #tpu.dot_dimension_numbers<[1], [0], [0], [1], [0, 0, 1, 1], [], []>} : vector<16x10xf32>, vector<10x16xf32>, vector<16x16xf32> -> vector<16x16xf32>
    %cst_85 = arith.constant 0.000000e+00 : f32
    %101 = vector.broadcast %cst_85 : f32 to vector<16x16xf32>
    %102 = arith.maximumf %100, %101 : vector<16x16xf32>
    %103 = arith.truncf %102 : vector<16x16xf32> to vector<16x16xbf16>
    %c0_86 = arith.constant 0 : index
    %c0_87 = arith.constant 0 : index
    %104 = vector.load %arg10[%c0_86, %c0_87] : memref<16x16xbf16, #tpu.memory_space<vmem>>, vector<16x16xbf16>
    %cst_88 = arith.constant dense<0.000000e+00> : vector<16x16xf32>
    %105 = tpu.matmul %103, %104, %cst_88 {dimension_numbers = #tpu.dot_dimension_numbers<[1], [0], [0], [1], [0, 0, 1, 1], [], []>} : vector<16x16xbf16>, vector<16x16xbf16>, vector<16x16xf32> -> vector<16x16xf32>
    %106 = arith.addf %96, %105 : vector<16x16xf32>
    %c0_89 = arith.constant 0 : index
    %c2_90 = arith.constant 2 : index
    %c0_91 = arith.constant 0 : index
    %107 = vector.load %arg22[%c0_89, %c2_90, %c0_91] : memref<16x5x16xf32, #tpu.memory_space<vmem>>, vector<16x1x16xf32>
    %108 = vector.shape_cast %107 : vector<16x1x16xf32> to vector<16x16xf32>
    %109 = vector.shape_cast %106 : vector<16x16xf32> to vector<16x1x16xf32>
    tpu.vector_store %arg22[%c0_89, %c2_90, %c0_91], %109 {strides = array<i32>} : memref<16x5x16xf32, #tpu.memory_space<vmem>>, vector<16x1x16xf32>,
    %110 = arith.subf %15, %95 : vector<16x16xf32>
    %111 = arith.addf %110, %105 : vector<16x16xf32>
    %112 = arith.truncf %111 : vector<16x16xf32> to vector<16x16xbf16>
    %c2_92 = arith.constant 2 : index
    %c0_93 = arith.constant 0 : index
    %c0_94 = arith.constant 0 : index
    %113 = vector.load %arg11[%c2_92, %c0_93, %c0_94] : memref<5x16x2xbf16, #tpu.memory_space<vmem>>, vector<1x16x2xbf16>
    %114 = vector.shape_cast %113 : vector<1x16x2xbf16> to vector<16x2xbf16>
    %cst_95 = arith.constant dense<0.000000e+00> : vector<16x2xf32>
    %115 = tpu.matmul %112, %114, %cst_95 {dimension_numbers = #tpu.dot_dimension_numbers<[1], [0], [0], [1], [0, 0, 1, 1], [], []>} : vector<16x16xbf16>, vector<16x2xbf16>, vector<16x2xf32> -> vector<16x2xf32>
    %116 = arith.addf %79, %115 : vector<16x2xf32>
    %c0_96 = arith.constant 0 : index
    %c3 = arith.constant 3 : index
    %c0_97 = arith.constant 0 : index
    %117 = vector.load %arg1[%c0_96, %c3, %c0_97] : memref<16x5x32xbf16, #tpu.memory_space<vmem>>, vector<16x1x32xbf16>
    %118 = vector.shape_cast %117 : vector<16x1x32xbf16> to vector<16x32xbf16>
    %c0_98 = arith.constant 0 : index
    %c0_99 = arith.constant 0 : index
    %119 = vector.load %arg3[%c0_98, %c0_99] : memref<32x32xbf16, #tpu.memory_space<vmem>>, vector<32x32xbf16>
    %cst_100 = arith.constant dense<0.000000e+00> : vector<16x32xf32>
    %120 = tpu.matmul %118, %119, %cst_100 {dimension_numbers = #tpu.dot_dimension_numbers<[1], [0], [0], [1], [0, 0, 1, 1], [], []>} : vector<16x32xbf16>, vector<32x32xbf16>, vector<16x32xf32> -> vector<16x32xf32>
    %c0_101 = arith.constant 0 : index
    %c0_102 = arith.constant 0 : index
    %121 = vector.load %arg4[%c0_101, %c0_102] : memref<1x32xf32, #tpu.memory_space<vmem>>, vector<1x32xf32>
    %122 = vector.broadcast %121 : vector<1x32xf32> to vector<16x32xf32>
    %123 = arith.addf %120, %122 : vector<16x32xf32>
    %cst_103 = arith.constant 0.000000e+00 : f32
    %124 = vector.broadcast %cst_103 : f32 to vector<16x32xf32>
    %125 = arith.maximumf %123, %124 : vector<16x32xf32>
    %126 = arith.truncf %125 : vector<16x32xf32> to vector<16x32xbf16>
    %c0_104 = arith.constant 0 : index
    %c0_105 = arith.constant 0 : index
    %127 = vector.load %arg7[%c0_104, %c0_105] : memref<32x32xbf16, #tpu.memory_space<vmem>>, vector<32x32xbf16>
    %cst_106 = arith.constant dense<0.000000e+00> : vector<16x32xf32>
    %128 = tpu.matmul %126, %127, %cst_106 {dimension_numbers = #tpu.dot_dimension_numbers<[1], [0], [0], [1], [0, 0, 1, 1], [], []>} : vector<16x32xbf16>, vector<32x32xbf16>, vector<16x32xf32> -> vector<16x32xf32>
    %c0_107 = arith.constant 0 : index
    %c0_108 = arith.constant 0 : index
    %129 = vector.load %arg8[%c0_107, %c0_108] : memref<1x32xf32, #tpu.memory_space<vmem>>, vector<1x32xf32>
    %130 = vector.broadcast %129 : vector<1x32xf32> to vector<16x32xf32>
    %131 = arith.addf %128, %130 : vector<16x32xf32>
    %132 = vector.extract_strided_slice %131 {offsets = [0, 0], sizes = [16, 16], strides = [1, 1]} : vector<16x32xf32> to vector<16x16xf32>
    %133 = vector.extract_strided_slice %131 {offsets = [0, 16], sizes = [16, 16], strides = [1, 1]} : vector<16x32xf32> to vector<16x16xf32>
    %c0_109 = arith.constant 0 : index
    %c3_110 = arith.constant 3 : index
    %c0_111 = arith.constant 0 : index
    %134 = vector.load %arg2[%c0_109, %c3_110, %c0_111] : memref<16x5x10xf32, #tpu.memory_space<vmem>>, vector<16x1x10xf32>
    %135 = vector.shape_cast %134 : vector<16x1x10xf32> to vector<16x10xf32>
    %c0_112 = arith.constant 0 : index
    %c0_113 = arith.constant 0 : index
    %136 = vector.load %arg9[%c0_112, %c0_113] : memref<10x16xf32, #tpu.memory_space<vmem>>, vector<10x16xf32>
    %cst_114 = arith.constant dense<0.000000e+00> : vector<16x16xf32>
    %137 = tpu.matmul %135, %136, %cst_114 {dimension_numbers = #tpu.dot_dimension_numbers<[1], [0], [0], [1], [0, 0, 1, 1], [], []>} : vector<16x10xf32>, vector<10x16xf32>, vector<16x16xf32> -> vector<16x16xf32>
    %cst_115 = arith.constant 0.000000e+00 : f32
    %138 = vector.broadcast %cst_115 : f32 to vector<16x16xf32>
    %139 = arith.maximumf %137, %138 : vector<16x16xf32>
    %140 = arith.truncf %139 : vector<16x16xf32> to vector<16x16xbf16>
    %c0_116 = arith.constant 0 : index
    %c0_117 = arith.constant 0 : index
    %141 = vector.load %arg10[%c0_116, %c0_117] : memref<16x16xbf16, #tpu.memory_space<vmem>>, vector<16x16xbf16>
    %cst_118 = arith.constant dense<0.000000e+00> : vector<16x16xf32>
    %142 = tpu.matmul %140, %141, %cst_118 {dimension_numbers = #tpu.dot_dimension_numbers<[1], [0], [0], [1], [0, 0, 1, 1], [], []>} : vector<16x16xbf16>, vector<16x16xbf16>, vector<16x16xf32> -> vector<16x16xf32>
    %143 = arith.addf %133, %142 : vector<16x16xf32>
    %c0_119 = arith.constant 0 : index
    %c3_120 = arith.constant 3 : index
    %c0_121 = arith.constant 0 : index
    %144 = vector.load %arg22[%c0_119, %c3_120, %c0_121] : memref<16x5x16xf32, #tpu.memory_space<vmem>>, vector<16x1x16xf32>
    %145 = vector.shape_cast %144 : vector<16x1x16xf32> to vector<16x16xf32>
    %146 = vector.shape_cast %143 : vector<16x16xf32> to vector<16x1x16xf32>
    tpu.vector_store %arg22[%c0_119, %c3_120, %c0_121], %146 {strides = array<i32>} : memref<16x5x16xf32, #tpu.memory_space<vmem>>, vector<16x1x16xf32>,
    %147 = arith.subf %15, %132 : vector<16x16xf32>
    %148 = arith.addf %147, %142 : vector<16x16xf32>
    %149 = arith.truncf %148 : vector<16x16xf32> to vector<16x16xbf16>
    %c3_122 = arith.constant 3 : index
    %c0_123 = arith.constant 0 : index
    %c0_124 = arith.constant 0 : index
    %150 = vector.load %arg11[%c3_122, %c0_123, %c0_124] : memref<5x16x2xbf16, #tpu.memory_space<vmem>>, vector<1x16x2xbf16>
    %151 = vector.shape_cast %150 : vector<1x16x2xbf16> to vector<16x2xbf16>
    %cst_125 = arith.constant dense<0.000000e+00> : vector<16x2xf32>
    %152 = tpu.matmul %149, %151, %cst_125 {dimension_numbers = #tpu.dot_dimension_numbers<[1], [0], [0], [1], [0, 0, 1, 1], [], []>} : vector<16x16xbf16>, vector<16x2xbf16>, vector<16x2xf32> -> vector<16x2xf32>
    %153 = arith.addf %116, %152 : vector<16x2xf32>
    %c0_126 = arith.constant 0 : index
    %c4 = arith.constant 4 : index
    %c0_127 = arith.constant 0 : index
    %154 = vector.load %arg1[%c0_126, %c4, %c0_127] : memref<16x5x32xbf16, #tpu.memory_space<vmem>>, vector<16x1x32xbf16>
    %155 = vector.shape_cast %154 : vector<16x1x32xbf16> to vector<16x32xbf16>
    %c0_128 = arith.constant 0 : index
    %c0_129 = arith.constant 0 : index
    %156 = vector.load %arg3[%c0_128, %c0_129] : memref<32x32xbf16, #tpu.memory_space<vmem>>, vector<32x32xbf16>
    %cst_130 = arith.constant dense<0.000000e+00> : vector<16x32xf32>
    %157 = tpu.matmul %155, %156, %cst_130 {dimension_numbers = #tpu.dot_dimension_numbers<[1], [0], [0], [1], [0, 0, 1, 1], [], []>} : vector<16x32xbf16>, vector<32x32xbf16>, vector<16x32xf32> -> vector<16x32xf32>
    %c0_131 = arith.constant 0 : index
    %c0_132 = arith.constant 0 : index
    %158 = vector.load %arg4[%c0_131, %c0_132] : memref<1x32xf32, #tpu.memory_space<vmem>>, vector<1x32xf32>
    %159 = vector.broadcast %158 : vector<1x32xf32> to vector<16x32xf32>
    %160 = arith.addf %157, %159 : vector<16x32xf32>
    %cst_133 = arith.constant 0.000000e+00 : f32
    %161 = vector.broadcast %cst_133 : f32 to vector<16x32xf32>
    %162 = arith.maximumf %160, %161 : vector<16x32xf32>
    %163 = arith.truncf %162 : vector<16x32xf32> to vector<16x32xbf16>
    %c0_134 = arith.constant 0 : index
    %c0_135 = arith.constant 0 : index
    %164 = vector.load %arg7[%c0_134, %c0_135] : memref<32x32xbf16, #tpu.memory_space<vmem>>, vector<32x32xbf16>
    %cst_136 = arith.constant dense<0.000000e+00> : vector<16x32xf32>
    %165 = tpu.matmul %163, %164, %cst_136 {dimension_numbers = #tpu.dot_dimension_numbers<[1], [0], [0], [1], [0, 0, 1, 1], [], []>} : vector<16x32xbf16>, vector<32x32xbf16>, vector<16x32xf32> -> vector<16x32xf32>
    %c0_137 = arith.constant 0 : index
    %c0_138 = arith.constant 0 : index
    %166 = vector.load %arg8[%c0_137, %c0_138] : memref<1x32xf32, #tpu.memory_space<vmem>>, vector<1x32xf32>
    %167 = vector.broadcast %166 : vector<1x32xf32> to vector<16x32xf32>
    %168 = arith.addf %165, %167 : vector<16x32xf32>
    %169 = vector.extract_strided_slice %168 {offsets = [0, 0], sizes = [16, 16], strides = [1, 1]} : vector<16x32xf32> to vector<16x16xf32>
    %170 = vector.extract_strided_slice %168 {offsets = [0, 16], sizes = [16, 16], strides = [1, 1]} : vector<16x32xf32> to vector<16x16xf32>
    %c0_139 = arith.constant 0 : index
    %c4_140 = arith.constant 4 : index
    %c0_141 = arith.constant 0 : index
    %171 = vector.load %arg2[%c0_139, %c4_140, %c0_141] : memref<16x5x10xf32, #tpu.memory_space<vmem>>, vector<16x1x10xf32>
    %172 = vector.shape_cast %171 : vector<16x1x10xf32> to vector<16x10xf32>
    %c0_142 = arith.constant 0 : index
    %c0_143 = arith.constant 0 : index
    %173 = vector.load %arg9[%c0_142, %c0_143] : memref<10x16xf32, #tpu.memory_space<vmem>>, vector<10x16xf32>
    %cst_144 = arith.constant dense<0.000000e+00> : vector<16x16xf32>
    %174 = tpu.matmul %172, %173, %cst_144 {dimension_numbers = #tpu.dot_dimension_numbers<[1], [0], [0], [1], [0, 0, 1, 1], [], []>} : vector<16x10xf32>, vector<10x16xf32>, vector<16x16xf32> -> vector<16x16xf32>
    %cst_145 = arith.constant 0.000000e+00 : f32
    %175 = vector.broadcast %cst_145 : f32 to vector<16x16xf32>
    %176 = arith.maximumf %174, %175 : vector<16x16xf32>
    %177 = arith.truncf %176 : vector<16x16xf32> to vector<16x16xbf16>
    %c0_146 = arith.constant 0 : index
    %c0_147 = arith.constant 0 : index
    %178 = vector.load %arg10[%c0_146, %c0_147] : memref<16x16xbf16, #tpu.memory_space<vmem>>, vector<16x16xbf16>
    %cst_148 = arith.constant dense<0.000000e+00> : vector<16x16xf32>
    %179 = tpu.matmul %177, %178, %cst_148 {dimension_numbers = #tpu.dot_dimension_numbers<[1], [0], [0], [1], [0, 0, 1, 1], [], []>} : vector<16x16xbf16>, vector<16x16xbf16>, vector<16x16xf32> -> vector<16x16xf32>
    %180 = arith.addf %170, %179 : vector<16x16xf32>
    %c0_149 = arith.constant 0 : index
    %c4_150 = arith.constant 4 : index
    %c0_151 = arith.constant 0 : index
    %181 = vector.load %arg22[%c0_149, %c4_150, %c0_151] : memref<16x5x16xf32, #tpu.memory_space<vmem>>, vector<16x1x16xf32>
    %182 = vector.shape_cast %181 : vector<16x1x16xf32> to vector<16x16xf32>
    %183 = vector.shape_cast %180 : vector<16x16xf32> to vector<16x1x16xf32>
    tpu.vector_store %arg22[%c0_149, %c4_150, %c0_151], %183 {strides = array<i32>} : memref<16x5x16xf32, #tpu.memory_space<vmem>>, vector<16x1x16xf32>,
    %184 = arith.subf %15, %169 : vector<16x16xf32>
    %185 = arith.addf %184, %179 : vector<16x16xf32>
    %186 = arith.truncf %185 : vector<16x16xf32> to vector<16x16xbf16>
    %c4_152 = arith.constant 4 : index
    %c0_153 = arith.constant 0 : index
    %c0_154 = arith.constant 0 : index
    %187 = vector.load %arg11[%c4_152, %c0_153, %c0_154] : memref<5x16x2xbf16, #tpu.memory_space<vmem>>, vector<1x16x2xbf16>
    %188 = vector.shape_cast %187 : vector<1x16x2xbf16> to vector<16x2xbf16>
    %cst_155 = arith.constant dense<0.000000e+00> : vector<16x2xf32>
    %189 = tpu.matmul %186, %188, %cst_155 {dimension_numbers = #tpu.dot_dimension_numbers<[1], [0], [0], [1], [0, 0, 1, 1], [], []>} : vector<16x16xbf16>, vector<16x2xbf16>, vector<16x2xf32> -> vector<16x2xf32>
    %190 = arith.addf %153, %189 : vector<16x2xf32>
    %cst_156 = arith.constant 0.000000e+00 : f32
    %191 = vector.broadcast %cst_156 : f32 to vector<16x2xf32>
    %192 = arith.maximumf %190, %191 : vector<16x2xf32>
    %193 = arith.truncf %192 : vector<16x2xf32> to vector<16x2xbf16>
    %c0_157 = arith.constant 0 : index
    %c0_158 = arith.constant 0 : index
    %194 = vector.load %arg12[%c0_157, %c0_158] : memref<2x10xbf16, #tpu.memory_space<vmem>>, vector<2x10xbf16>
    %cst_159 = arith.constant dense<0.000000e+00> : vector<16x10xf32>
    %195 = tpu.matmul %193, %194, %cst_159 {dimension_numbers = #tpu.dot_dimension_numbers<[1], [0], [0], [1], [0, 0, 1, 1], [], []>} : vector<16x2xbf16>, vector<2x10xbf16>, vector<16x10xf32> -> vector<16x10xf32>
    %c0_160 = arith.constant 0 : index
    %c0_161 = arith.constant 0 : index
    %196 = vector.load %arg13[%c0_160, %c0_161] : memref<1x10xf32, #tpu.memory_space<vmem>>, vector<1x10xf32>
    %197 = vector.broadcast %196 : vector<1x10xf32> to vector<16x10xf32>
    %198 = arith.addf %195, %197 : vector<16x10xf32>
    %199 = vector.extract_strided_slice %198 {offsets = [0, 0], sizes = [16, 2], strides = [1, 1]} : vector<16x10xf32> to vector<16x2xf32>
    %200 = vector.extract_strided_slice %198 {offsets = [0, 2], sizes = [16, 2], strides = [1, 1]} : vector<16x10xf32> to vector<16x2xf32>
    %201 = arith.maximumf %199, %200 : vector<16x2xf32>
    %202 = vector.extract_strided_slice %198 {offsets = [0, 4], sizes = [16, 2], strides = [1, 1]} : vector<16x10xf32> to vector<16x2xf32>
    %203 = arith.maximumf %201, %202 : vector<16x2xf32>
    %204 = vector.extract_strided_slice %198 {offsets = [0, 6], sizes = [16, 2], strides = [1, 1]} : vector<16x10xf32> to vector<16x2xf32>
    %205 = arith.maximumf %203, %204 : vector<16x2xf32>
    %206 = vector.extract_strided_slice %198 {offsets = [0, 8], sizes = [16, 2], strides = [1, 1]} : vector<16x10xf32> to vector<16x2xf32>
    %207 = arith.maximumf %205, %206 : vector<16x2xf32>
    %c0_162 = arith.constant 0 : index
    %c0_163 = arith.constant 0 : index
    %208 = vector.load %arg14[%c0_162, %c0_163] : memref<2x16xf32, #tpu.memory_space<vmem>>, vector<2x16xf32>
    %209 = vector.extract_strided_slice %198 {offsets = [0, 0], sizes = [16, 2], strides = [1, 1]} : vector<16x10xf32> to vector<16x2xf32>
    %210 = arith.subf %209, %207 : vector<16x2xf32>
    %211 = math.exp %210 : vector<16x2xf32>
    %cst_164 = arith.constant dense<0.000000e+00> : vector<16x16xf32>
    %212 = tpu.matmul %211, %208, %cst_164 {dimension_numbers = #tpu.dot_dimension_numbers<[1], [0], [0], [1], [0, 0, 1, 1], [], []>} : vector<16x2xf32>, vector<2x16xf32>, vector<16x16xf32> -> vector<16x16xf32>
    %c0_165 = arith.constant 0 : index
    %c0_166 = arith.constant 0 : index
    %c0_167 = arith.constant 0 : index
    %213 = vector.load %arg22[%c0_165, %c0_166, %c0_167] : memref<16x5x16xf32, #tpu.memory_space<vmem>>, vector<16x1x16xf32>
    %214 = vector.shape_cast %213 : vector<16x1x16xf32> to vector<16x16xf32>
    %215 = arith.mulf %212, %214 : vector<16x16xf32>
    %216 = vector.extract_strided_slice %198 {offsets = [0, 2], sizes = [16, 2], strides = [1, 1]} : vector<16x10xf32> to vector<16x2xf32>
    %217 = arith.subf %216, %207 : vector<16x2xf32>
    %218 = math.exp %217 : vector<16x2xf32>
    %219 = arith.addf %211, %218 : vector<16x2xf32>
    %cst_168 = arith.constant dense<0.000000e+00> : vector<16x16xf32>
    %220 = tpu.matmul %218, %208, %cst_168 {dimension_numbers = #tpu.dot_dimension_numbers<[1], [0], [0], [1], [0, 0, 1, 1], [], []>} : vector<16x2xf32>, vector<2x16xf32>, vector<16x16xf32> -> vector<16x16xf32>
    %c0_169 = arith.constant 0 : index
    %c1_170 = arith.constant 1 : index
    %c0_171 = arith.constant 0 : index
    %221 = vector.load %arg22[%c0_169, %c1_170, %c0_171] : memref<16x5x16xf32, #tpu.memory_space<vmem>>, vector<16x1x16xf32>
    %222 = vector.shape_cast %221 : vector<16x1x16xf32> to vector<16x16xf32>
    %223 = arith.mulf %220, %222 : vector<16x16xf32>
    %224 = arith.addf %215, %223 : vector<16x16xf32>
    %225 = vector.extract_strided_slice %198 {offsets = [0, 4], sizes = [16, 2], strides = [1, 1]} : vector<16x10xf32> to vector<16x2xf32>
    %226 = arith.subf %225, %207 : vector<16x2xf32>
    %227 = math.exp %226 : vector<16x2xf32>
    %228 = arith.addf %219, %227 : vector<16x2xf32>
    %cst_172 = arith.constant dense<0.000000e+00> : vector<16x16xf32>
    %229 = tpu.matmul %227, %208, %cst_172 {dimension_numbers = #tpu.dot_dimension_numbers<[1], [0], [0], [1], [0, 0, 1, 1], [], []>} : vector<16x2xf32>, vector<2x16xf32>, vector<16x16xf32> -> vector<16x16xf32>
    %c0_173 = arith.constant 0 : index
    %c2_174 = arith.constant 2 : index
    %c0_175 = arith.constant 0 : index
    %230 = vector.load %arg22[%c0_173, %c2_174, %c0_175] : memref<16x5x16xf32, #tpu.memory_space<vmem>>, vector<16x1x16xf32>
    %231 = vector.shape_cast %230 : vector<16x1x16xf32> to vector<16x16xf32>
    %232 = arith.mulf %229, %231 : vector<16x16xf32>
    %233 = arith.addf %224, %232 : vector<16x16xf32>
    %234 = vector.extract_strided_slice %198 {offsets = [0, 6], sizes = [16, 2], strides = [1, 1]} : vector<16x10xf32> to vector<16x2xf32>
    %235 = arith.subf %234, %207 : vector<16x2xf32>
    %236 = math.exp %235 : vector<16x2xf32>
    %237 = arith.addf %228, %236 : vector<16x2xf32>
    %cst_176 = arith.constant dense<0.000000e+00> : vector<16x16xf32>
    %238 = tpu.matmul %236, %208, %cst_176 {dimension_numbers = #tpu.dot_dimension_numbers<[1], [0], [0], [1], [0, 0, 1, 1], [], []>} : vector<16x2xf32>, vector<2x16xf32>, vector<16x16xf32> -> vector<16x16xf32>
    %c0_177 = arith.constant 0 : index
    %c3_178 = arith.constant 3 : index
    %c0_179 = arith.constant 0 : index
    %239 = vector.load %arg22[%c0_177, %c3_178, %c0_179] : memref<16x5x16xf32, #tpu.memory_space<vmem>>, vector<16x1x16xf32>
    %240 = vector.shape_cast %239 : vector<16x1x16xf32> to vector<16x16xf32>
    %241 = arith.mulf %238, %240 : vector<16x16xf32>
    %242 = arith.addf %233, %241 : vector<16x16xf32>
    %243 = vector.extract_strided_slice %198 {offsets = [0, 8], sizes = [16, 2], strides = [1, 1]} : vector<16x10xf32> to vector<16x2xf32>
    %244 = arith.subf %243, %207 : vector<16x2xf32>
    %245 = math.exp %244 : vector<16x2xf32>
    %246 = arith.addf %237, %245 : vector<16x2xf32>
    %cst_180 = arith.constant dense<0.000000e+00> : vector<16x16xf32>
    %247 = tpu.matmul %245, %208, %cst_180 {dimension_numbers = #tpu.dot_dimension_numbers<[1], [0], [0], [1], [0, 0, 1, 1], [], []>} : vector<16x2xf32>, vector<2x16xf32>, vector<16x16xf32> -> vector<16x16xf32>
    %c0_181 = arith.constant 0 : index
    %c4_182 = arith.constant 4 : index
    %c0_183 = arith.constant 0 : index
    %248 = vector.load %arg22[%c0_181, %c4_182, %c0_183] : memref<16x5x16xf32, #tpu.memory_space<vmem>>, vector<16x1x16xf32>
    %249 = vector.shape_cast %248 : vector<16x1x16xf32> to vector<16x16xf32>
    %250 = arith.mulf %247, %249 : vector<16x16xf32>
    %251 = arith.addf %242, %250 : vector<16x16xf32>
    %cst_184 = arith.constant dense<0.000000e+00> : vector<16x16xf32>
    %252 = tpu.matmul %246, %208, %cst_184 {dimension_numbers = #tpu.dot_dimension_numbers<[1], [0], [0], [1], [0, 0, 1, 1], [], []>} : vector<16x2xf32>, vector<2x16xf32>, vector<16x16xf32> -> vector<16x16xf32>
    %253 = tpu.reciprocal %252 {approx = true} : vector<16x16xf32> -> vector<16x16xf32>
    %254 = arith.mulf %251, %253 : vector<16x16xf32>
    %cst_185 = arith.constant 0.000000e+00 : f32
    %255 = vector.broadcast %cst_185 : f32 to vector<16x16xf32>
    %256 = arith.maximumf %254, %255 : vector<16x16xf32>
    %257 = arith.truncf %256 : vector<16x16xf32> to vector<16x16xbf16>
    %c0_186 = arith.constant 0 : index
    %c0_187 = arith.constant 0 : index
    %258 = vector.load %arg15[%c0_186, %c0_187] : memref<16x32xbf16, #tpu.memory_space<vmem>>, vector<16x32xbf16>
    %cst_188 = arith.constant dense<0.000000e+00> : vector<16x32xf32>
    %259 = tpu.matmul %257, %258, %cst_188 {dimension_numbers = #tpu.dot_dimension_numbers<[1], [0], [0], [1], [0, 0, 1, 1], [], []>} : vector<16x16xbf16>, vector<16x32xbf16>, vector<16x32xf32> -> vector<16x32xf32>
    %c0_189 = arith.constant 0 : index
    %c0_190 = arith.constant 0 : index
    %260 = vector.load %arg16[%c0_189, %c0_190] : memref<1x32xf32, #tpu.memory_space<vmem>>, vector<1x32xf32>
    %261 = vector.broadcast %260 : vector<1x32xf32> to vector<16x32xf32>
    %262 = arith.addf %259, %261 : vector<16x32xf32>
    %c0_191 = arith.constant 0 : index
    %c0_192 = arith.constant 0 : index
    %263 = vector.load %arg23[%c0_191, %c0_192] : memref<16x32xf32, #tpu.memory_space<vmem>>, vector<16x32xf32>
    %264 = arith.addf %262, %263 : vector<16x32xf32>
    %265 = arith.truncf %264 : vector<16x32xf32> to vector<16x32xbf16>
    %c0_193 = arith.constant 0 : index
    %c0_194 = arith.constant 0 : index
    %266 = vector.load %arg17[%c0_193, %c0_194] : memref<32x16xbf16, #tpu.memory_space<vmem>>, vector<32x16xbf16>
    %cst_195 = arith.constant dense<0.000000e+00> : vector<16x16xf32>
    %267 = tpu.matmul %265, %266, %cst_195 {dimension_numbers = #tpu.dot_dimension_numbers<[1], [0], [0], [1], [0, 0, 1, 1], [], []>} : vector<16x32xbf16>, vector<32x16xbf16>, vector<16x16xf32> -> vector<16x16xf32>
    %c0_196 = arith.constant 0 : index
    %c0_197 = arith.constant 0 : index
    %268 = vector.load %arg18[%c0_196, %c0_197] : memref<1x16xf32, #tpu.memory_space<vmem>>, vector<1x16xf32>
    %269 = vector.broadcast %268 : vector<1x16xf32> to vector<16x16xf32>
    %270 = arith.addf %267, %269 : vector<16x16xf32>
    %cst_198 = arith.constant 0.000000e+00 : f32
    %271 = vector.broadcast %cst_198 : f32 to vector<16x16xf32>
    %272 = arith.maximumf %270, %271 : vector<16x16xf32>
    %273 = arith.truncf %272 : vector<16x16xf32> to vector<16x16xbf16>
    %c0_199 = arith.constant 0 : index
    %c0_200 = arith.constant 0 : index
    %274 = vector.load %arg19[%c0_199, %c0_200] : memref<16x8xbf16, #tpu.memory_space<vmem>>, vector<16x8xbf16>
    %cst_201 = arith.constant dense<0.000000e+00> : vector<16x8xf32>
    %275 = tpu.matmul %273, %274, %cst_201 {dimension_numbers = #tpu.dot_dimension_numbers<[1], [0], [0], [1], [0, 0, 1, 1], [], []>} : vector<16x16xbf16>, vector<16x8xbf16>, vector<16x8xf32> -> vector<16x8xf32>
    %c0_202 = arith.constant 0 : index
    %c0_203 = arith.constant 0 : index
    %276 = vector.load %arg20[%c0_202, %c0_203] : memref<1x8xf32, #tpu.memory_space<vmem>>, vector<1x8xf32>
    %277 = vector.broadcast %276 : vector<1x8xf32> to vector<16x8xf32>
    %278 = arith.addf %275, %277 : vector<16x8xf32>
    %cst_204 = arith.constant 0.000000e+00 : f32
    %279 = vector.broadcast %cst_204 : f32 to vector<16x8xf32>
    %280 = arith.maximumf %278, %279 : vector<16x8xf32>
    %c0_205 = arith.constant 0 : index
    %c0_206 = arith.constant 0 : index
    %281 = vector.load %arg21[%c0_205, %c0_206] : memref<16x8xf32, #tpu.memory_space<vmem>>, vector<16x8xf32>
    tpu.vector_store %arg21[%c0_205, %c0_206], %280 {strides = array<i32>} : memref<16x8xf32, #tpu.memory_space<vmem>>, vector<16x8xf32>,
    return
  }
  func.func @transform_0(%arg0: i32) -> (i32, i32, i32) {
    %c0_i32 = arith.constant 0 : i32
    %c0_i32_0 = arith.constant 0 : i32
    %c0_i32_1 = arith.constant 0 : i32
    return %arg0, %c0_i32, %c0_i32_0 : i32, i32, i32
  }
  func.func @transform_1(%arg0: i32) -> (i32, i32, i32) {
    %c0_i32 = arith.constant 0 : i32
    %c0_i32_0 = arith.constant 0 : i32
    %c0_i32_1 = arith.constant 0 : i32
    return %arg0, %c0_i32, %c0_i32_0 : i32, i32, i32
  }
  func.func @transform_2(%arg0: i32) -> (i32, i32) {
    %c0_i32 = arith.constant 0 : i32
    %c0_i32_0 = arith.constant 0 : i32
    %c0_i32_1 = arith.constant 0 : i32
    return %c0_i32, %c0_i32_0 : i32, i32
  }
  func.func @transform_3(%arg0: i32) -> (i32, i32) {
    %c0_i32 = arith.constant 0 : i32
    %c0_i32_0 = arith.constant 0 : i32
    %c0_i32_1 = arith.constant 0 : i32
    return %c0_i32, %c0_i32_0 : i32, i32
  }
  func.func @transform_4(%arg0: i32) -> (i32, i32) {
    %c0_i32 = arith.constant 0 : i32
    %c0_i32_0 = arith.constant 0 : i32
    %c0_i32_1 = arith.constant 0 : i32
    return %c0_i32, %c0_i32_0 : i32, i32
  }
  func.func @transform_5(%arg0: i32) -> (i32, i32) {
    %c0_i32 = arith.constant 0 : i32
    %c0_i32_0 = arith.constant 0 : i32
    %c0_i32_1 = arith.constant 0 : i32
    return %c0_i32, %c0_i32_0 : i32, i32
  }
  func.func @transform_6(%arg0: i32) -> (i32, i32) {
    %c0_i32 = arith.constant 0 : i32
    %c0_i32_0 = arith.constant 0 : i32
    %c0_i32_1 = arith.constant 0 : i32
    return %c0_i32, %c0_i32_0 : i32, i32
  }
  func.func @transform_7(%arg0: i32) -> (i32, i32) {
    %c0_i32 = arith.constant 0 : i32
    %c0_i32_0 = arith.constant 0 : i32
    %c0_i32_1 = arith.constant 0 : i32
    return %c0_i32, %c0_i32_0 : i32, i32
  }
  func.func @transform_8(%arg0: i32) -> (i32, i32) {
    %c0_i32 = arith.constant 0 : i32
    %c0_i32_0 = arith.constant 0 : i32
    %c0_i32_1 = arith.constant 0 : i32
    return %c0_i32, %c0_i32_0 : i32, i32
  }
  func.func @transform_9(%arg0: i32) -> (i32, i32) {
    %c0_i32 = arith.constant 0 : i32
    %c0_i32_0 = arith.constant 0 : i32
    %c0_i32_1 = arith.constant 0 : i32
    return %c0_i32, %c0_i32_0 : i32, i32
  }
  func.func @transform_10(%arg0: i32) -> (i32, i32, i32) {
    %c0_i32 = arith.constant 0 : i32
    %c0_i32_0 = arith.constant 0 : i32
    %c0_i32_1 = arith.constant 0 : i32
    %c0_i32_2 = arith.constant 0 : i32
    return %c0_i32, %c0_i32_0, %c0_i32_1 : i32, i32, i32
  }
  func.func @transform_11(%arg0: i32) -> (i32, i32) {
    %c0_i32 = arith.constant 0 : i32
    %c0_i32_0 = arith.constant 0 : i32
    %c0_i32_1 = arith.constant 0 : i32
    return %c0_i32, %c0_i32_0 : i32, i32
  }
  func.func @transform_12(%arg0: i32) -> (i32, i32) {
    %c0_i32 = arith.constant 0 : i32
    %c0_i32_0 = arith.constant 0 : i32
    %c0_i32_1 = arith.constant 0 : i32
    return %c0_i32, %c0_i32_0 : i32, i32
  }
  func.func @transform_13(%arg0: i32) -> (i32, i32) {
    %c0_i32 = arith.constant 0 : i32
    %c0_i32_0 = arith.constant 0 : i32
    %c0_i32_1 = arith.constant 0 : i32
    return %c0_i32, %c0_i32_0 : i32, i32
  }
  func.func @transform_14(%arg0: i32) -> (i32, i32) {
    %c0_i32 = arith.constant 0 : i32
    %c0_i32_0 = arith.constant 0 : i32
    %c0_i32_1 = arith.constant 0 : i32
    return %c0_i32, %c0_i32_0 : i32, i32
  }
  func.func @transform_15(%arg0: i32) -> (i32, i32) {
    %c0_i32 = arith.constant 0 : i32
    %c0_i32_0 = arith.constant 0 : i32
    %c0_i32_1 = arith.constant 0 : i32
    return %c0_i32, %c0_i32_0 : i32, i32
  }
  func.func @transform_16(%arg0: i32) -> (i32, i32) {
    %c0_i32 = arith.constant 0 : i32
    %c0_i32_0 = arith.constant 0 : i32
    %c0_i32_1 = arith.constant 0 : i32
    return %c0_i32, %c0_i32_0 : i32, i32
  }
  func.func @transform_17(%arg0: i32) -> (i32, i32) {
    %c0_i32 = arith.constant 0 : i32
    %c0_i32_0 = arith.constant 0 : i32
    %c0_i32_1 = arith.constant 0 : i32
    return %c0_i32, %c0_i32_0 : i32, i32
  }
  func.func @transform_18(%arg0: i32) -> (i32, i32) {
    %c0_i32 = arith.constant 0 : i32
    %c0_i32_0 = arith.constant 0 : i32
    %c0_i32_1 = arith.constant 0 : i32
    return %c0_i32, %c0_i32_0 : i32, i32
  }
  func.func @transform_19(%arg0: i32) -> (i32, i32) {
    %c0_i32 = arith.constant 0 : i32
    %c0_i32_0 = arith.constant 0 : i32
    %c0_i32_1 = arith.constant 0 : i32
    return %c0_i32, %c0_i32_0 : i32, i32
  }
  func.func @transform_20(%arg0: i32) -> (i32, i32) {
    %c0_i32 = arith.constant 0 : i32
    %c0_i32_0 = arith.constant 0 : i32
    return %arg0, %c0_i32 : i32, i32
  }
}

module attributes {stable_mosaic.version = 11 : i64} {
  func.func @_interp3_kernel(%arg0: i32, %arg1: memref<32x3xf32, #tpu.memory_space<vmem>>, %arg2: memref<32x3x8xf32, #tpu.memory_space<vmem>>, %arg3: memref<32x8xf32, #tpu.memory_space<vmem>>) attributes {dimension_semantics = [#tpu.dimension_semantics<parallel>], iteration_bounds = array<i64: 2>, scalar_prefetch = 0 : i64, scratch_operands = 0 : i64, tpu.core_type = #tpu.core_type<tc>, window_params = [{transform_indices = @transform_0, window_bounds = array<i64: 32, 3>}, {transform_indices = @transform_1, window_bounds = array<i64: 32, 3, 8>}, {transform_indices = @transform_2, window_bounds = array<i64: 32, 8>}]} {
    %c0 = arith.constant 0 : index
    %c0_0 = arith.constant 0 : index
    %0 = vector.load %arg1[%c0, %c0_0] : memref<32x3xf32, #tpu.memory_space<vmem>>, vector<32x3xf32>
    %1 = vector.extract_strided_slice %0 {offsets = [0, 0], sizes = [32, 1], strides = [1, 1]} : vector<32x3xf32> to vector<32x1xf32>
    %c0_1 = arith.constant 0 : index
    %c0_2 = arith.constant 0 : index
    %c0_3 = arith.constant 0 : index
    %2 = vector.load %arg2[%c0_1, %c0_2, %c0_3] : memref<32x3x8xf32, #tpu.memory_space<vmem>>, vector<32x1x8xf32>
    %3 = vector.shape_cast %2 : vector<32x1x8xf32> to vector<32x8xf32>
    %4 = vector.broadcast %1 : vector<32x1xf32> to vector<32x8xf32>
    %5 = arith.mulf %4, %3 : vector<32x8xf32>
    %6 = vector.extract_strided_slice %0 {offsets = [0, 1], sizes = [32, 1], strides = [1, 1]} : vector<32x3xf32> to vector<32x1xf32>
    %c0_4 = arith.constant 0 : index
    %c1 = arith.constant 1 : index
    %c0_5 = arith.constant 0 : index
    %7 = vector.load %arg2[%c0_4, %c1, %c0_5] : memref<32x3x8xf32, #tpu.memory_space<vmem>>, vector<32x1x8xf32>
    %8 = vector.shape_cast %7 : vector<32x1x8xf32> to vector<32x8xf32>
    %9 = vector.broadcast %6 : vector<32x1xf32> to vector<32x8xf32>
    %10 = arith.mulf %9, %8 : vector<32x8xf32>
    %11 = arith.addf %5, %10 : vector<32x8xf32>
    %12 = vector.extract_strided_slice %0 {offsets = [0, 2], sizes = [32, 1], strides = [1, 1]} : vector<32x3xf32> to vector<32x1xf32>
    %c0_6 = arith.constant 0 : index
    %c2 = arith.constant 2 : index
    %c0_7 = arith.constant 0 : index
    %13 = vector.load %arg2[%c0_6, %c2, %c0_7] : memref<32x3x8xf32, #tpu.memory_space<vmem>>, vector<32x1x8xf32>
    %14 = vector.shape_cast %13 : vector<32x1x8xf32> to vector<32x8xf32>
    %15 = vector.broadcast %12 : vector<32x1xf32> to vector<32x8xf32>
    %16 = arith.mulf %15, %14 : vector<32x8xf32>
    %17 = arith.addf %11, %16 : vector<32x8xf32>
    %c0_8 = arith.constant 0 : index
    %c0_9 = arith.constant 0 : index
    %18 = vector.load %arg3[%c0_8, %c0_9] : memref<32x8xf32, #tpu.memory_space<vmem>>, vector<32x8xf32>
    tpu.vector_store %arg3[%c0_8, %c0_9], %17 {strides = array<i32>} : memref<32x8xf32, #tpu.memory_space<vmem>>, vector<32x8xf32>,
    return
  }
  func.func @transform_0(%arg0: i32) -> (i32, i32) {
    %c0_i32 = arith.constant 0 : i32
    %c0_i32_0 = arith.constant 0 : i32
    return %arg0, %c0_i32 : i32, i32
  }
  func.func @transform_1(%arg0: i32) -> (i32, i32, i32) {
    %c0_i32 = arith.constant 0 : i32
    %c0_i32_0 = arith.constant 0 : i32
    %c0_i32_1 = arith.constant 0 : i32
    return %arg0, %c0_i32, %c0_i32_0 : i32, i32, i32
  }
  func.func @transform_2(%arg0: i32) -> (i32, i32) {
    %c0_i32 = arith.constant 0 : i32
    %c0_i32_0 = arith.constant 0 : i32
    return %arg0, %c0_i32 : i32, i32
  }
}

module attributes {stable_mosaic.version = 11 : i64} {
  func.func @_fuse_proj_kernel(%arg0: i32, %arg1: i32, %arg2: memref<1x32x128xbf16, #tpu.memory_space<vmem>>, %arg3: memref<1x32x128xbf16, #tpu.memory_space<vmem>>, %arg4: memref<1x32x32xbf16, #tpu.memory_space<vmem>>, %arg5: memref<1x32x8xbf16, #tpu.memory_space<vmem>>, %arg6: memref<128x128xbf16, #tpu.memory_space<vmem>>, %arg7: memref<128x128xbf16, #tpu.memory_space<vmem>>, %arg8: memref<32x128xbf16, #tpu.memory_space<vmem>>, %arg9: memref<8x128xbf16, #tpu.memory_space<vmem>>, %arg10: memref<1x128x32xf32, #tpu.memory_space<vmem>>) attributes {dimension_semantics = [#tpu.dimension_semantics<parallel>, #tpu.dimension_semantics<parallel>], iteration_bounds = array<i64: 2, 1>, scalar_prefetch = 0 : i64, scratch_operands = 0 : i64, tpu.core_type = #tpu.core_type<tc>, window_params = [{transform_indices = @transform_0, window_bounds = array<i64: 1, 32, 128>}, {transform_indices = @transform_1, window_bounds = array<i64: 1, 32, 128>}, {transform_indices = @transform_2, window_bounds = array<i64: 1, 32, 32>}, {transform_indices = @transform_3, window_bounds = array<i64: 1, 32, 8>}, {pipeline_mode = #tpu.pipeline_mode<synchronous>, transform_indices = @transform_4, window_bounds = array<i64: 128, 128>}, {pipeline_mode = #tpu.pipeline_mode<synchronous>, transform_indices = @transform_5, window_bounds = array<i64: 128, 128>}, {pipeline_mode = #tpu.pipeline_mode<synchronous>, transform_indices = @transform_6, window_bounds = array<i64: 32, 128>}, {pipeline_mode = #tpu.pipeline_mode<synchronous>, transform_indices = @transform_7, window_bounds = array<i64: 8, 128>}, {transform_indices = @transform_8, window_bounds = array<i64: 1, 128, 32>}]} {
    %c0 = arith.constant 0 : index
    %c0_0 = arith.constant 0 : index
    %c0_1 = arith.constant 0 : index
    %0 = vector.load %arg2[%c0, %c0_0, %c0_1] : memref<1x32x128xbf16, #tpu.memory_space<vmem>>, vector<1x32x128xbf16>
    %1 = vector.shape_cast %0 : vector<1x32x128xbf16> to vector<32x128xbf16>
    %c0_2 = arith.constant 0 : index
    %c0_3 = arith.constant 0 : index
    %2 = vector.load %arg6[%c0_2, %c0_3] : memref<128x128xbf16, #tpu.memory_space<vmem>>, vector<128x128xbf16>
    %cst = arith.constant dense<0.000000e+00> : vector<32x128xf32>
    %3 = tpu.matmul %1, %2, %cst {dimension_numbers = #tpu.dot_dimension_numbers<[1], [0], [0], [1], [0, 0, 1, 1], [], []>} : vector<32x128xbf16>, vector<128x128xbf16>, vector<32x128xf32> -> vector<32x128xf32>
    %c0_4 = arith.constant 0 : index
    %c0_5 = arith.constant 0 : index
    %c0_6 = arith.constant 0 : index
    %4 = vector.load %arg3[%c0_4, %c0_5, %c0_6] : memref<1x32x128xbf16, #tpu.memory_space<vmem>>, vector<1x32x128xbf16>
    %5 = vector.shape_cast %4 : vector<1x32x128xbf16> to vector<32x128xbf16>
    %c0_7 = arith.constant 0 : index
    %c0_8 = arith.constant 0 : index
    %6 = vector.load %arg7[%c0_7, %c0_8] : memref<128x128xbf16, #tpu.memory_space<vmem>>, vector<128x128xbf16>
    %cst_9 = arith.constant dense<0.000000e+00> : vector<32x128xf32>
    %7 = tpu.matmul %5, %6, %cst_9 {dimension_numbers = #tpu.dot_dimension_numbers<[1], [0], [0], [1], [0, 0, 1, 1], [], []>} : vector<32x128xbf16>, vector<128x128xbf16>, vector<32x128xf32> -> vector<32x128xf32>
    %8 = arith.addf %3, %7 : vector<32x128xf32>
    %c0_10 = arith.constant 0 : index
    %c0_11 = arith.constant 0 : index
    %c0_12 = arith.constant 0 : index
    %9 = vector.load %arg4[%c0_10, %c0_11, %c0_12] : memref<1x32x32xbf16, #tpu.memory_space<vmem>>, vector<1x32x32xbf16>
    %10 = vector.shape_cast %9 : vector<1x32x32xbf16> to vector<32x32xbf16>
    %c0_13 = arith.constant 0 : index
    %c0_14 = arith.constant 0 : index
    %11 = vector.load %arg8[%c0_13, %c0_14] : memref<32x128xbf16, #tpu.memory_space<vmem>>, vector<32x128xbf16>
    %cst_15 = arith.constant dense<0.000000e+00> : vector<32x128xf32>
    %12 = tpu.matmul %10, %11, %cst_15 {dimension_numbers = #tpu.dot_dimension_numbers<[1], [0], [0], [1], [0, 0, 1, 1], [], []>} : vector<32x32xbf16>, vector<32x128xbf16>, vector<32x128xf32> -> vector<32x128xf32>
    %13 = arith.addf %8, %12 : vector<32x128xf32>
    %c0_16 = arith.constant 0 : index
    %c0_17 = arith.constant 0 : index
    %c0_18 = arith.constant 0 : index
    %14 = vector.load %arg5[%c0_16, %c0_17, %c0_18] : memref<1x32x8xbf16, #tpu.memory_space<vmem>>, vector<1x32x8xbf16>
    %15 = vector.shape_cast %14 : vector<1x32x8xbf16> to vector<32x8xbf16>
    %c0_19 = arith.constant 0 : index
    %c0_20 = arith.constant 0 : index
    %16 = vector.load %arg9[%c0_19, %c0_20] : memref<8x128xbf16, #tpu.memory_space<vmem>>, vector<8x128xbf16>
    %cst_21 = arith.constant dense<0.000000e+00> : vector<32x128xf32>
    %17 = tpu.matmul %15, %16, %cst_21 {dimension_numbers = #tpu.dot_dimension_numbers<[1], [0], [0], [1], [0, 0, 1, 1], [], []>} : vector<32x8xbf16>, vector<8x128xbf16>, vector<32x128xf32> -> vector<32x128xf32>
    %18 = arith.addf %13, %17 : vector<32x128xf32>
    %19 = tpu.transpose %18, [1, 0] : vector<32x128xf32> -> vector<128x32xf32>
    %c0_22 = arith.constant 0 : index
    %c0_23 = arith.constant 0 : index
    %c0_24 = arith.constant 0 : index
    %20 = vector.load %arg10[%c0_22, %c0_23, %c0_24] : memref<1x128x32xf32, #tpu.memory_space<vmem>>, vector<1x128x32xf32>
    %21 = vector.shape_cast %20 : vector<1x128x32xf32> to vector<128x32xf32>
    %22 = vector.shape_cast %19 : vector<128x32xf32> to vector<1x128x32xf32>
    tpu.vector_store %arg10[%c0_22, %c0_23, %c0_24], %22 {strides = array<i32>} : memref<1x128x32xf32, #tpu.memory_space<vmem>>, vector<1x128x32xf32>,
    return
  }
  func.func @transform_0(%arg0: i32, %arg1: i32) -> (i32, i32, i32) {
    %c0_i32 = arith.constant 0 : i32
    %c0_i32_0 = arith.constant 0 : i32
    return %arg0, %arg1, %c0_i32 : i32, i32, i32
  }
  func.func @transform_1(%arg0: i32, %arg1: i32) -> (i32, i32, i32) {
    %c0_i32 = arith.constant 0 : i32
    %c0_i32_0 = arith.constant 0 : i32
    return %arg0, %arg1, %c0_i32 : i32, i32, i32
  }
  func.func @transform_2(%arg0: i32, %arg1: i32) -> (i32, i32, i32) {
    %c0_i32 = arith.constant 0 : i32
    %c0_i32_0 = arith.constant 0 : i32
    return %arg0, %arg1, %c0_i32 : i32, i32, i32
  }
  func.func @transform_3(%arg0: i32, %arg1: i32) -> (i32, i32, i32) {
    %c0_i32 = arith.constant 0 : i32
    %c0_i32_0 = arith.constant 0 : i32
    return %arg0, %arg1, %c0_i32 : i32, i32, i32
  }
  func.func @transform_4(%arg0: i32, %arg1: i32) -> (i32, i32) {
    %c0_i32 = arith.constant 0 : i32
    %c0_i32_0 = arith.constant 0 : i32
    %c0_i32_1 = arith.constant 0 : i32
    return %c0_i32, %c0_i32_0 : i32, i32
  }
  func.func @transform_5(%arg0: i32, %arg1: i32) -> (i32, i32) {
    %c0_i32 = arith.constant 0 : i32
    %c0_i32_0 = arith.constant 0 : i32
    %c0_i32_1 = arith.constant 0 : i32
    return %c0_i32, %c0_i32_0 : i32, i32
  }
  func.func @transform_6(%arg0: i32, %arg1: i32) -> (i32, i32) {
    %c0_i32 = arith.constant 0 : i32
    %c0_i32_0 = arith.constant 0 : i32
    %c0_i32_1 = arith.constant 0 : i32
    return %c0_i32, %c0_i32_0 : i32, i32
  }
  func.func @transform_7(%arg0: i32, %arg1: i32) -> (i32, i32) {
    %c0_i32 = arith.constant 0 : i32
    %c0_i32_0 = arith.constant 0 : i32
    %c0_i32_1 = arith.constant 0 : i32
    return %c0_i32, %c0_i32_0 : i32, i32
  }
  func.func @transform_8(%arg0: i32, %arg1: i32) -> (i32, i32, i32) {
    %c0_i32 = arith.constant 0 : i32
    %c0_i32_0 = arith.constant 0 : i32
    return %arg0, %c0_i32, %arg1 : i32, i32, i32
  }
}

</mosaic_0001>

<llo_original>
// kernel: sub.48.clone
$region0: #{sub.48.clone}
  #allocation0 [shape = 's32[1]{0}', space=sflag, size = 0x4, scoped, tag = 'scoped memory for sub.48.clone']
  %s0 = inlined_call_operand.vmem [shape: f32[2,32,3], index: 0, kind: input, shape index: {}]
  %s1 = inlined_call_operand.vmem [shape: f32[2,32,5,3], index: 1, kind: output, shape index: {}]
  // Predicated region
  $region2: #{sub.48.clone} parent=0 // pred_check
    _
  $region3: #{sub.48.clone} parent=0 // pred_check_branch
    %3 = sbr.rel (0) target = $region5
  $region4: #{sub.48.clone} parent=0 // pred_region
    _
  $region5: #{sub.48.clone} parent=0 // pred_fallthru
    _
  %v4 = vld [vmem:[%s0] sm:$0x3]
  %5 = vst [vmem:[%s1] sm:$0x3] %v4
  %s6 = scalar_lea.vmem %s1, 6
  %7 = vst [vmem:[%s6] sm:$0x3] %v4
  %s8 = scalar_lea.vmem %s1, 12
  %9 = vst [vmem:[%s8] sm:$0x3] %v4
  %s10 = scalar_lea.vmem %s1, 18
  %11 = vst [vmem:[%s10] sm:$0x3] %v4
  %s12 = scalar_lea.vmem %s1, 24
  %13 = vst [vmem:[%s12] sm:$0x3] %v4
  %s14 = scalar_lea.vmem %s0, 2
  %v15 = vld [vmem:[%s14] sm:$0x3]
  %s16 = scalar_lea.vmem %s1, 2
  %17 = vst [vmem:[%s16] sm:$0x3] %v15
  %s18 = scalar_lea.vmem %s1, 8
  %19 = vst [vmem:[%s18] sm:$0x3] %v15
  %s20 = scalar_lea.vmem %s1, 14
  %21 = vst [vmem:[%s20] sm:$0x3] %v15
  %s22 = scalar_lea.vmem %s1, 20
  %23 = vst [vmem:[%s22] sm:$0x3] %v15
  %s24 = scalar_lea.vmem %s1, 26
  %25 = vst [vmem:[%s24] sm:$0x3] %v15
  %s26 = scalar_lea.vmem %s0, 4
  %v27 = vld [vmem:[%s26] sm:$0x3]
  %s28 = scalar_lea.vmem %s1, 4
  %29 = vst [vmem:[%s28] sm:$0x3] %v27
  %s30 = scalar_lea.vmem %s1, 10
  %31 = vst [vmem:[%s30] sm:$0x3] %v27
  %s32 = scalar_lea.vmem %s1, 16
  %33 = vst [vmem:[%s32] sm:$0x3] %v27
  %s34 = scalar_lea.vmem %s1, 22
  %35 = vst [vmem:[%s34] sm:$0x3] %v27
  %s36 = scalar_lea.vmem %s1, 28
  %37 = vst [vmem:[%s36] sm:$0x3] %v27

// kernel: sub.9
$region0: #{sub.9}
  #allocation0 [shape = 's32[1]{0}', space=sflag, size = 0x4, scoped, tag = 'scoped memory for sub.9']
  %s0 = inlined_call_operand.vmem [shape: f32[64,15], index: 0, kind: input, shape index: {}]
  %s1 = inlined_call_operand.vmem [shape: f32[64,15], index: 1, kind: input, shape index: {}]
  %s2 = inlined_call_operand.vmem [shape: f32[64,15], index: 2, kind: output, shape index: {}]
  %v3 = vld [vmem:[%s0] sm:$0xff]
  %v4 = vld [vmem:[%s1] sm:$0xff]
  %5 = xla_tuple %v3, %v4
  %6 = xla_tuple %5
  %v7 = vsub.f32 %v3, %v4
  %8 = xla_tuple %v7
  %9 = vst [vmem:[%s2] sm:$0xff] %v7
  %s10 = scalar_lea.vmem %s0, 8
  %v11 = vld [vmem:[%s10] sm:$0xff]
  %s12 = scalar_lea.vmem %s1, 8
  %v13 = vld [vmem:[%s12] sm:$0xff]
  %14 = xla_tuple %v11, %v13
  %15 = xla_tuple %14
  %v16 = vsub.f32 %v11, %v13
  %17 = xla_tuple %v16
  %s18 = scalar_lea.vmem %s2, 8
  %19 = vst [vmem:[%s18] sm:$0xff] %v16
  %s20 = scalar_lea.vmem %s0, 16
  %v21 = vld [vmem:[%s20] sm:$0xff]
  %s22 = scalar_lea.vmem %s1, 16
  %v23 = vld [vmem:[%s22] sm:$0xff]
  %24 = xla_tuple %v21, %v23
  %25 = xla_tuple %24
  %v26 = vsub.f32 %v21, %v23
  %27 = xla_tuple %v26
  %s28 = scalar_lea.vmem %s2, 16
  %29 = vst [vmem:[%s28] sm:$0xff] %v26
  %s30 = scalar_lea.vmem %s0, 24
  %v31 = vld [vmem:[%s30] sm:$0xff]
  %s32 = scalar_lea.vmem %s1, 24
  %v33 = vld [vmem:[%s32] sm:$0xff]
  %34 = xla_tuple %v31, %v33
  %35 = xla_tuple %34
  %v36 = vsub.f32 %v31, %v33
  %37 = xla_tuple %v36
  %s38 = scalar_lea.vmem %s2, 24
  %39 = vst [vmem:[%s38] sm:$0xff] %v36
  %s40 = scalar_lea.vmem %s0, 32
  %v41 = vld [vmem:[%s40] sm:$0xff]
  %s42 = scalar_lea.vmem %s1, 32
  %v43 = vld [vmem:[%s42] sm:$0xff]
  %44 = xla_tuple %v41, %v43
  %45 = xla_tuple %44
  %v46 = vsub.f32 %v41, %v43
  %47 = xla_tuple %v46
  %s48 = scalar_lea.vmem %s2, 32
  %49 = vst [vmem:[%s48] sm:$0xff] %v46
  %s50 = scalar_lea.vmem %s0, 40
  %v51 = vld [vmem:[%s50] sm:$0xff]
  %s52 = scalar_lea.vmem %s1, 40
  %v53 = vld [vmem:[%s52] sm:$0xff]
  %54 = xla_tuple %v51, %v53
  %55 = xla_tuple %54
  %v56 = vsub.f32 %v51, %v53
  %57 = xla_tuple %v56
  %s58 = scalar_lea.vmem %s2, 40
  %59 = vst [vmem:[%s58] sm:$0xff] %v56
  %s60 = scalar_lea.vmem %s0, 48
  %v61 = vld [vmem:[%s60] sm:$0xff]
  %s62 = scalar_lea.vmem %s1, 48
  %v63 = vld [vmem:[%s62] sm:$0xff]
  %64 = xla_tuple %v61, %v63
  %65 = xla_tuple %64
  %v66 = vsub.f32 %v61, %v63
  %67 = xla_tuple %v66
  %s68 = scalar_lea.vmem %s2, 48
  %69 = vst [vmem:[%s68] sm:$0xff] %v66
  %s70 = scalar_lea.vmem %s0, 56
  %v71 = vld [vmem:[%s70] sm:$0xff]
  %s72 = scalar_lea.vmem %s1, 56
  %v73 = vld [vmem:[%s72] sm:$0xff]
  %74 = xla_tuple %v71, %v73
  %75 = xla_tuple %74
  %v76 = vsub.f32 %v71, %v73
  %77 = xla_tuple %v76
  %s78 = scalar_lea.vmem %s2, 56
  %79 = vst [vmem:[%s78] sm:$0xff] %v76

</llo_original>
